<compile_context>
chip_gen: v7x
topology: tpu7x:2x2x1
jax: 0.10.0
libtpu: 0.0.40
codegen_flags: <defaults>
</compile_context>

<pallas_src>
import functools

import jax
import jax.numpy as jnp
from jax import lax
from jax.experimental import pallas as pl
from jax.experimental.pallas import tpu as pltpu


# Tile targets: sized to fit comfortably in v7x's 64 MiB VMEM with
# double-buffering (also fine on v5e/v6e; bump _TM/_TN/_TK there if desired).
_TM, _TN, _TK = 256, 256, 512
_WKV_CT = 128
_VMEM_LIMIT = 48 * 1024 * 1024


def _pick_tile(dim, target, align):
    """Largest block <= target that divides dim and is a multiple of align;
    falls back to the full dim (always a legal Pallas block)."""
    if dim <= target:
        return dim
    t = (target // align) * align
    while t >= align:
        if dim % t == 0:
            return t
        t -= align
    return dim


# ---------------------------------------------------------------------------
# Kernel 1: fused time-mix blend + stacked {r,k,v,g} projections
# ---------------------------------------------------------------------------

def _blend_proj_kernel(x_ref, xx_ref, tm_ref, w_ref, o_ref, acc_ref):
    k_id = pl.program_id(3)

    @pl.when(k_id == 0)
    def _():
        acc_ref[...] = jnp.zeros_like(acc_ref)

    tm = tm_ref[0]                                       # (1, tk) f32
    xb = x_ref[...] * tm + xx_ref[...] * (1.0 - tm)      # blend in f32
    acc_ref[...] += lax.dot_general(
        xb.astype(jnp.bfloat16), w_ref[0],
        (((1,), (1,)), ((), ())),
        preferred_element_type=jnp.float32)

    @pl.when(k_id == pl.num_programs(3) - 1)
    def _():
        o_ref[0] = acc_ref[...].astype(o_ref.dtype)


def blend_projections(x, xx, tm_stack, w_stack):
    """x, xx: (M, Cin) f32; tm_stack: (P, 1, Cin) f32; w_stack: (P, N, Cin)
    bf16 torch-layout weights -> (P, M, N) f32."""
    M, Cin = x.shape
    P, N, _ = w_stack.shape
    tm_m = _pick_tile(M, _TM, 16)
    tn = _pick_tile(N, _TN, 128)
    tk = _pick_tile(Cin, _TK, 128)
    grid = (P, M // tm_m, N // tn, Cin // tk)
    return pl.pallas_call(
        _blend_proj_kernel,
        grid=grid,
        in_specs=[
            pl.BlockSpec((tm_m, tk), lambda p, i, j, k: (i, k)),
            pl.BlockSpec((tm_m, tk), lambda p, i, j, k: (i, k)),
            pl.BlockSpec((1, 1, tk), lambda p, i, j, k: (p, 0, k)),
            pl.BlockSpec((1, tn, tk), lambda p, i, j, k: (p, j, k)),
        ],
        out_specs=pl.BlockSpec((1, tm_m, tn), lambda p, i, j, k: (p, i, j)),
        out_shape=jax.ShapeDtypeStruct((P, M, N), jnp.float32),
        scratch_shapes=[pltpu.VMEM((tm_m, tn), jnp.float32)],
        compiler_params=pltpu.CompilerParams(
            dimension_semantics=("parallel", "parallel", "parallel",
                                 "arbitrary"),
            vmem_limit_bytes=_VMEM_LIMIT),
    )(x, xx, tm_stack, w_stack)


# ---------------------------------------------------------------------------
# Kernel 2: plain tiled linear (torch-layout bf16 weight, f32 accumulate)
# ---------------------------------------------------------------------------

def _matmul_kernel(x_ref, w_ref, o_ref, acc_ref):
    k_id = pl.program_id(2)

    @pl.when(k_id == 0)
    def _():
        acc_ref[...] = jnp.zeros_like(acc_ref)

    acc_ref[...] += lax.dot_general(
        x_ref[...].astype(jnp.bfloat16), w_ref[...],
        (((1,), (1,)), ((), ())),
        preferred_element_type=jnp.float32)

    @pl.when(k_id == pl.num_programs(2) - 1)
    def _():
        o_ref[...] = acc_ref[...].astype(o_ref.dtype)


def linear(x, w_t):
    """x: (M, K) f32/bf16; w_t: (N, K) bf16 torch-layout -> (M, N) f32."""
    M, K = x.shape
    N = w_t.shape[0]
    tm = _pick_tile(M, _TM, 16)
    tn = _pick_tile(N, _TN, 128)
    tk = _pick_tile(K, _TK, 128)
    grid = (M // tm, N // tn, K // tk)
    return pl.pallas_call(
        _matmul_kernel,
        grid=grid,
        in_specs=[
            pl.BlockSpec((tm, tk), lambda i, j, k: (i, k)),
            pl.BlockSpec((tn, tk), lambda i, j, k: (j, k)),
        ],
        out_specs=pl.BlockSpec((tm, tn), lambda i, j, k: (i, j)),
        out_shape=jax.ShapeDtypeStruct((M, N), jnp.float32),
        scratch_shapes=[pltpu.VMEM((tm, tn), jnp.float32)],
        compiler_params=pltpu.CompilerParams(
            dimension_semantics=("parallel", "parallel", "arbitrary"),
            vmem_limit_bytes=_VMEM_LIMIT),
    )(x, w_t)


# ---------------------------------------------------------------------------
# Kernel 3: WKV core, chunked over T with a carried per-head (K,K) state
# ---------------------------------------------------------------------------

def _wkv_kernel(r_ref, k_ref, v_ref, s_ref, lw_ref, u_ref, gmat_ref, o_ref,
                a_ref, *, H, K, T, CT):
    c = pl.program_id(1)

    @pl.when(c == 0)
    def _():
        a_ref[...] = jnp.zeros_like(a_ref)      # cross-chunk sum per head

    r = r_ref[0]                                # (CT, C) f32, head-major C
    k = k_ref[0]
    v = v_ref[0]
    lw = lw_ref[...]                            # (1, C) = -exp(time_decay)
    u = u_ref[...]                              # (1, C) = time_faaaa
    gmat = gmat_ref[...]                        # (C, H) group-indicator

    t0 = (c * CT).astype(jnp.float32)           # global offset of this chunk
    t_loc = lax.broadcasted_iota(jnp.int32, (CT, 1), 0).astype(jnp.float32)
    tq = t0 + t_loc                             # (CT, 1) global query index

    # Per-channel decay powers at full lane-dense width (single EUP passes).
    wt = jnp.exp(tq * lw)                                 # (CT, C) = w^t
    wback = jnp.exp((float(T) - 1.0 - tq) * lw)           # (CT, C) = w^(T-1-s)
    rw = r * wt
    kd = k * wback

    # Diagonal (bonus) term for all heads at once: per-head reduction via a
    # small MXU dot against the group-indicator matrix, then broadcast back.
    bsum = lax.dot_general(k * u * r, gmat, (((1,), (0,)), ((), ())),
                           preferred_element_type=jnp.float32)       # (CT, H)
    bonus = lax.dot_general(bsum, gmat, (((1,), (1,)), ((), ())),
                            preferred_element_type=jnp.float32) * v  # (CT, C)

    ti = lax.broadcasted_iota(jnp.int32, (CT, CT), 0)
    si = lax.broadcasted_iota(jnp.int32, (CT, CT), 1)
    causal = si < ti                            # strictly causal (s < t)

    outs = []
    for h in range(H):
        lo, hi = h * K, (h + 1) * K
        rh, rwh = r[:, lo:hi], rw[:, lo:hi]
        kdh, vh = kd[:, lo:hi], v[:, lo:hi]
        s0 = s_ref[h]                           # (K, K) initial wkv state
        a_prev = a_ref[h]                       # (K, K) carried sum

        # state term: (r_t * w^t) @ S0   (reference uses the same S0 for all t)
        y = lax.dot_general(rwh, s0, (((1,), (0,)), ((), ())),
                            preferred_element_type=jnp.float32)
        # cross-chunk causal term via carried (K,K) sum
        y = y + lax.dot_general(rh, a_prev, (((1,), (0,)), ((), ())),
                                preferred_element_type=jnp.float32)
        # intra-chunk strictly-causal term (weights w^(T-1-s), per reference)
        scores = lax.dot_general(rh, kdh, (((1,), (1,)), ((), ())),
                                 preferred_element_type=jnp.float32)
        scores = jnp.where(causal, scores, 0.0)
        y = y + lax.dot_general(scores, vh, (((1,), (0,)), ((), ())),
                                preferred_element_type=jnp.float32)
        outs.append(y)

        # carry forward: A += sum_s (k_s * w^(T-1-s)) v_s^T
        a_ref[h] = a_prev + lax.dot_general(kdh, vh, (((0,), (0,)), ((), ())),
                                            preferred_element_type=jnp.float32)

    # lane-dense full-C store; bf16 cast matches the reference .bfloat16()
    o_ref[0] = (jnp.concatenate(outs, axis=-1) + bonus).astype(o_ref.dtype)


def wkv_attention(r, k, v, state, logw, u, gmat, *, n_head, head_size):
    """r/k/v: (B, T, C) f32 head-major; state: (H, K, K); logw/u: (H, K);
    gmat: (C, H) -> (B, T, C) bf16."""
    B, T, C = r.shape
    CT = _pick_tile(T, _WKV_CT, 16)
    grid = (B, T // CT)
    lw_flat = logw.reshape(1, C)
    u_flat = u.reshape(1, C)
    kern = functools.partial(_wkv_kernel, H=n_head, K=head_size, T=T, CT=CT)
    btc = pl.BlockSpec((1, CT, C), lambda b, c: (b, c, 0))
    return pl.pallas_call(
        kern,
        grid=grid,
        in_specs=[btc, btc, btc,
                  pl.BlockSpec((n_head, head_size, head_size),
                               lambda b, c: (0, 0, 0)),
                  pl.BlockSpec((1, C), lambda b, c: (0, 0)),
                  pl.BlockSpec((1, C), lambda b, c: (0, 0)),
                  pl.BlockSpec((C, n_head), lambda b, c: (0, 0))],
        out_specs=btc,
        out_shape=jax.ShapeDtypeStruct((B, T, C), jnp.bfloat16),
        scratch_shapes=[pltpu.VMEM((n_head, head_size, head_size),
                                   jnp.float32)],
        compiler_params=pltpu.CompilerParams(
            dimension_semantics=("parallel", "arbitrary"),
            vmem_limit_bytes=_VMEM_LIMIT),
    )(r, k, v, state, lw_flat, u_flat, gmat)


# ---------------------------------------------------------------------------
# Kernel 4: fused GroupNorm(y) * SiLU(g)
# ---------------------------------------------------------------------------

def _gn_gate_kernel(y_ref, g_ref, gmat_ref, w_ref, b_ref, o_ref,
                    *, inv_group, eps):
    y = y_ref[...].astype(jnp.float32)
    gmat = gmat_ref[...]                              # (C, H) group indicator
    mean_g = lax.dot_general(y, gmat, (((1,), (0,)), ((), ())),
                             preferred_element_type=jnp.float32) * inv_group
    mean = lax.dot_general(mean_g, gmat, (((1,), (1,)), ((), ())),
                           preferred_element_type=jnp.float32)
    d = y - mean
    var_g = lax.dot_general(d * d, gmat, (((1,), (0,)), ((), ())),
                            preferred_element_type=jnp.float32) * inv_group
    var = lax.dot_general(var_g, gmat, (((1,), (1,)), ((), ())),
                          preferred_element_type=jnp.float32)
    gn = d * lax.rsqrt(var + eps) * w_ref[...] + b_ref[...]

    gate = g_ref[...]
    silu = gate * pl.reciprocal(1.0 + jnp.exp(-gate), approx=True)
    o_ref[...] = (gn * silu).astype(o_ref.dtype)


def groupnorm_gate(y, g, gmat, w, b, *, n_head, head_size):
    M, C = y.shape
    tm = _pick_tile(M, _TM, 16)
    kern = functools.partial(_gn_gate_kernel,
                             inv_group=1.0 / float(head_size), eps=0.00064)
    return pl.pallas_call(
        kern,
        grid=(M // tm,),
        in_specs=[pl.BlockSpec((tm, C), lambda i: (i, 0)),
                  pl.BlockSpec((tm, C), lambda i: (i, 0)),
                  pl.BlockSpec((C, n_head), lambda i: (0, 0)),
                  pl.BlockSpec((1, C), lambda i: (0, 0)),
                  pl.BlockSpec((1, C), lambda i: (0, 0))],
        out_specs=pl.BlockSpec((tm, C), lambda i: (i, 0)),
        out_shape=jax.ShapeDtypeStruct((M, C), jnp.bfloat16),
        compiler_params=pltpu.CompilerParams(
            dimension_semantics=("parallel",),
            vmem_limit_bytes=_VMEM_LIMIT),
    )(y, g, gmat, w, b)


# ---------------------------------------------------------------------------
# Kernel 5: fused channel-mix (blend + key + relu^2 + value + sigmoid(recept))
# ---------------------------------------------------------------------------

def _cmix_kernel(x_ref, xx_ref, tmk_ref, tmr_ref, wk_ref, wv_ref, wr_ref,
                 o_ref, kv_acc):
    f = pl.program_id(1)

    @pl.when(f == 0)
    def _():
        kv_acc[...] = jnp.zeros_like(kv_acc)

    x = x_ref[...]
    xx = xx_ref[...]
    tmk = tmk_ref[...]
    xk = x * tmk + xx * (1.0 - tmk)
    kk = lax.dot_general(xk.astype(jnp.bfloat16), wk_ref[...],
                         (((1,), (1,)), ((), ())),
                         preferred_element_type=jnp.float32)        # (tm, tf)
    kk = jnp.maximum(kk, 0.0)
    kk = kk * kk
    kv_acc[...] += lax.dot_general(kk.astype(jnp.bfloat16), wv_ref[...],
                                   (((1,), (1,)), ((), ())),
                                   preferred_element_type=jnp.float32)

    @pl.when(f == pl.num_programs(1) - 1)
    def _():
        tmr = tmr_ref[...]
        xr = x * tmr + xx * (1.0 - tmr)
        # NOTE: receptance weight kept as one VMEM block (fine up to C~2048
        # in bf16); tile its contraction too if C grows beyond that.
        r = lax.dot_general(xr.astype(jnp.bfloat16), wr_ref[...],
                            (((1,), (1,)), ((), ())),
                            preferred_element_type=jnp.float32)
        sig = pl.reciprocal(1.0 + jnp.exp(-r), approx=True)
        o_ref[...] = (sig * kv_acc[...]).astype(o_ref.dtype)


def channel_mix(x, xx, tmk, tmr, key_w, value_w, recept_w):
    M, C = x.shape
    F = key_w.shape[0]
    tm = _pick_tile(M, _TM, 16)
    tf = _pick_tile(F, _TN, 128)
    grid = (M // tm, F // tf)
    return pl.pallas_call(
        _cmix_kernel,
        grid=grid,
        in_specs=[pl.BlockSpec((tm, C), lambda i, f: (i, 0)),
                  pl.BlockSpec((tm, C), lambda i, f: (i, 0)),
                  pl.BlockSpec((1, C), lambda i, f: (0, 0)),
                  pl.BlockSpec((1, C), lambda i, f: (0, 0)),
                  pl.BlockSpec((tf, C), lambda i, f: (f, 0)),
                  pl.BlockSpec((C, tf), lambda i, f: (0, f)),
                  pl.BlockSpec((C, C), lambda i, f: (0, 0))],
        out_specs=pl.BlockSpec((tm, C), lambda i, f: (i, 0)),
        out_shape=jax.ShapeDtypeStruct((M, C), jnp.float32),
        scratch_shapes=[pltpu.VMEM((tm, C), jnp.float32)],
        compiler_params=pltpu.CompilerParams(
            dimension_semantics=("parallel", "arbitrary"),
            vmem_limit_bytes=_VMEM_LIMIT),
    )(x, xx, tmk, tmr, key_w, value_w, recept_w)


# ---------------------------------------------------------------------------
# Plain-JAX glue (embedding, norms, time-shift, residuals)
# ---------------------------------------------------------------------------

def layer_norm(x, w, b, eps=1e-5):
    mean = jnp.mean(x, axis=-1, keepdims=True)
    var = jnp.mean((x - mean) ** 2, axis=-1, keepdims=True)
    return (x - mean) * lax.rsqrt(var + eps) * w + b


def time_shift(x, state):
    # training-mode TimeShift: cat(state.repeat(B,1,1), x[:, :-1])
    B, _, C = x.shape
    prev = jnp.broadcast_to(state, (B, 1, C))
    return jnp.concatenate([prev, x[:, :-1]], axis=1)


# ---------------------------------------------------------------------------
# Module forwards
# ---------------------------------------------------------------------------

def time_mix_forward(p, x, n_head, head_size):
    B, T, C = x.shape
    xx = time_shift(x, p["shift_state"])
    x2, xx2 = x.reshape(B * T, C), xx.reshape(B * T, C)

    # fused blend + stacked {r,k,v,g} projections
    proj = blend_projections(x2, xx2, p["tm_rkvg"], p["w_rkvg"])    # (4,BT,C)
    r = proj[0].reshape(B, T, C)
    k = proj[1].reshape(B, T, C)
    v = proj[2].reshape(B, T, C)
    g = proj[3]                                                     # (BT, C)

    # group-indicator matrix (channel c -> head c // head_size), constant
    gmat = jnp.repeat(jnp.eye(n_head, dtype=jnp.float32), head_size, axis=0)

    logw = -jnp.exp(p["time_decay"])                                # (H, K)
    y = wkv_attention(r, k, v, p["wkvstate"], logw, p["time_faaaa"], gmat,
                      n_head=n_head, head_size=head_size)           # bf16

    yg = groupnorm_gate(y.reshape(B * T, C), g, gmat,
                        p["ln_x_w"], p["ln_x_b"],
                        n_head=n_head, head_size=head_size)         # bf16

    out = linear(yg, p["output_w"])                                 # f32
    return out.reshape(B, T, C)


def channel_mix_forward(p, x):
    B, T, C = x.shape
    xx = time_shift(x, p["shift_state"])
    out = channel_mix(x.reshape(B * T, C), xx.reshape(B * T, C),
                      p["time_mix_k"], p["time_mix_r"],
                      p["key_w"], p["value_w"], p["recept_w"])
    return out.reshape(B, T, C)


@functools.partial(jax.jit, static_argnames=("n_head", "head_size"))
def v5tune_forward(params, idx, *, n_head, head_size):
    x = jnp.take(params["emb"], idx, axis=0)                        # (B, T, C)
    x = layer_norm(x, params["ln_in_w"], params["ln_in_b"])
    for blk in params["blocks"]:
        x = x + time_mix_forward(
            blk["att"], layer_norm(x, blk["ln1_w"], blk["ln1_b"]),
            n_head, head_size)
        x = x + channel_mix_forward(
            blk["ffn"], layer_norm(x, blk["ln2_w"], blk["ln2_b"]))
    x = layer_norm(x, params["ln_out_w"], params["ln_out_b"])
    B, T, C = x.shape
    logits = linear(x.reshape(B * T, C), params["head_w"])
    return logits.reshape(B, T, -1)


# ---------------------------------------------------------------------------
# Deterministic synthetic parameter init (no checkpoint loading)
# ---------------------------------------------------------------------------

def init_params(key, n_layer=2, n_embd=32, n_head=4, dim_ffn=64, vocab=48):
    head_size = n_embd // n_head
    keys = list(jax.random.split(key, 1024))
    it = iter(keys)

    def nrm(shape, scale):
        return jax.random.normal(next(it), shape, jnp.float32) * scale

    def uni(shape):
        return jax.random.uniform(next(it), shape, jnp.float32)

    def lin_w(out_d, in_d):
        # torch nn.Linear layout (out, in); stored bf16 for the MXU.
        return (nrm((out_d, in_d), 1.0 / float(in_d) ** 0.5)
                ).astype(jnp.bfloat16)

    blocks = []
    for _ in range(n_layer):
        att = dict(
            # time-mix vectors & weights stacked in [r, k, v, g] order
            tm_rkvg=jnp.stack([uni((1, n_embd)) for _ in range(4)], axis=0),
            w_rkvg=jnp.stack([lin_w(n_embd, n_embd) for _ in range(4)],
                             axis=0),
            output_w=lin_w(n_embd, n_embd),
            ln_x_w=1.0 + nrm((1, n_embd), 0.1),
            ln_x_b=nrm((1, n_embd), 0.1),
            time_decay=nrm((n_head, head_size), 0.5),
            time_faaaa=nrm((n_head, head_size), 0.1),
            shift_state=nrm((1, 1, n_embd), 0.1),
            wkvstate=nrm((n_head, head_size, head_size), 0.1),
        )
        ffn = dict(
            time_mix_k=uni((1, n_embd)),
            time_mix_r=uni((1, n_embd)),
            key_w=lin_w(dim_ffn, n_embd),
            recept_w=lin_w(n_embd, n_embd),
            value_w=lin_w(n_embd, dim_ffn),
            shift_state=nrm((1, 1, n_embd), 0.1),
        )
        blocks.append(dict(
            ln1_w=1.0 + nrm((n_embd,), 0.05), ln1_b=nrm((n_embd,), 0.05),
            ln2_w=1.0 + nrm((n_embd,), 0.05), ln2_b=nrm((n_embd,), 0.05),
            att=att, ffn=ffn,
        ))

    return dict(
        emb=nrm((vocab, n_embd), 0.1),
        ln_in_w=1.0 + nrm((n_embd,), 0.05), ln_in_b=nrm((n_embd,), 0.05),
        ln_out_w=1.0 + nrm((n_embd,), 0.05), ln_out_b=nrm((n_embd,), 0.05),
        head_w=lin_w(vocab, n_embd),
        blocks=blocks,
    )


if __name__ == "__main__":
    key = jax.random.PRNGKey(0)
    pkey, ikey = jax.random.split(key)
    n_layer, n_embd, n_head, dim_ffn, vocab = 2, 32, 4, 64, 48
    head_size = n_embd // n_head
    params = init_params(pkey, n_layer=n_layer, n_embd=n_embd, n_head=n_head,
                         dim_ffn=dim_ffn, vocab=vocab)
    B, T = 2, 8
    idx = jax.random.randint(ikey, (B, T), 0, vocab, dtype=jnp.int32)

    logits = v5tune_forward(params, idx, n_head=n_head, head_size=head_size)
    logits = jax.block_until_ready(logits)
    assert logits.shape == (B, T, vocab)
    assert bool(jnp.all(jnp.isfinite(logits)))
    print("KERNEL_OK")
</pallas_src>

<mosaic_0001>
module attributes {stable_mosaic.version = 11 : i64} {
  func.func @_blend_proj_kernel(%arg0: i32, %arg1: i32, %arg2: i32, %arg3: i32, %arg4: memref<16x32xf32, #tpu.memory_space<vmem>>, %arg5: memref<16x32xf32, #tpu.memory_space<vmem>>, %arg6: memref<1x1x32xf32, #tpu.memory_space<vmem>>, %arg7: memref<1x32x32xbf16, #tpu.memory_space<vmem>>, %arg8: memref<1x16x32xf32, #tpu.memory_space<vmem>>, %arg9: memref<16x32xf32, #tpu.memory_space<vmem>>) attributes {dimension_semantics = [#tpu.dimension_semantics<parallel>, #tpu.dimension_semantics<parallel>, #tpu.dimension_semantics<parallel>, #tpu.dimension_semantics<arbitrary>], iteration_bounds = array<i64: 4, 1, 1, 1>, scalar_prefetch = 0 : i64, scratch_operands = 1 : i64, tpu.core_type = #tpu.core_type<tc>, window_params = [{transform_indices = @transform_0, window_bounds = array<i64: 16, 32>}, {transform_indices = @transform_1, window_bounds = array<i64: 16, 32>}, {transform_indices = @transform_2, window_bounds = array<i64: 1, 1, 32>}, {transform_indices = @transform_3, window_bounds = array<i64: 1, 32, 32>}, {transform_indices = @transform_4, window_bounds = array<i64: 1, 16, 32>}]} {
    %c0_i32 = arith.constant 0 : i32
    %0 = arith.cmpi eq, %arg3, %c0_i32 : i32
    %1 = arith.extui %0 : i1 to i32
    %c0_i32_0 = arith.constant 0 : i32
    %2 = arith.cmpi ne, %1, %c0_i32_0 : i32
    scf.if %2 {
      %cst_17 = arith.constant 0.000000e+00 : f32
      %24 = vector.broadcast %cst_17 : f32 to vector<16x32xf32>
      %c0_18 = arith.constant 0 : index
      %c0_19 = arith.constant 0 : index
      %25 = vector.load %arg9[%c0_18, %c0_19] : memref<16x32xf32, #tpu.memory_space<vmem>>, vector<16x32xf32>
      tpu.vector_store %arg9[%c0_18, %c0_19], %24 {strides = array<i32>} : memref<16x32xf32, #tpu.memory_space<vmem>>, vector<16x32xf32>,
    } else {
    }
    %c0 = arith.constant 0 : index
    %c0_1 = arith.constant 0 : index
    %c0_2 = arith.constant 0 : index
    %3 = vector.load %arg6[%c0, %c0_1, %c0_2] : memref<1x1x32xf32, #tpu.memory_space<vmem>>, vector<1x1x32xf32>
    %4 = vector.shape_cast %3 : vector<1x1x32xf32> to vector<1x32xf32>
    %c0_3 = arith.constant 0 : index
    %c0_4 = arith.constant 0 : index
    %5 = vector.load %arg4[%c0_3, %c0_4] : memref<16x32xf32, #tpu.memory_space<vmem>>, vector<16x32xf32>
    %6 = vector.broadcast %4 : vector<1x32xf32> to vector<16x32xf32>
    %7 = arith.mulf %5, %6 : vector<16x32xf32>
    %c0_5 = arith.constant 0 : index
    %c0_6 = arith.constant 0 : index
    %8 = vector.load %arg5[%c0_5, %c0_6] : memref<16x32xf32, #tpu.memory_space<vmem>>, vector<16x32xf32>
    %cst = arith.constant 1.000000e+00 : f32
    %9 = vector.broadcast %cst : f32 to vector<1x32xf32>
    %10 = arith.subf %9, %4 : vector<1x32xf32>
    %11 = vector.broadcast %10 : vector<1x32xf32> to vector<16x32xf32>
    %12 = arith.mulf %8, %11 : vector<16x32xf32>
    %13 = arith.addf %7, %12 : vector<16x32xf32>
    %c0_7 = arith.constant 0 : index
    %c0_8 = arith.constant 0 : index
    %14 = vector.load %arg9[%c0_7, %c0_8] : memref<16x32xf32, #tpu.memory_space<vmem>>, vector<16x32xf32>
    %15 = arith.truncf %13 : vector<16x32xf32> to vector<16x32xbf16>
    %c0_9 = arith.constant 0 : index
    %c0_10 = arith.constant 0 : index
    %c0_11 = arith.constant 0 : index
    %16 = vector.load %arg7[%c0_9, %c0_10, %c0_11] : memref<1x32x32xbf16, #tpu.memory_space<vmem>>, vector<1x32x32xbf16>
    %17 = vector.shape_cast %16 : vector<1x32x32xbf16> to vector<32x32xbf16>
    %cst_12 = arith.constant dense<0.000000e+00> : vector<16x32xf32>
    %18 = tpu.matmul %15, %17, %cst_12 {dimension_numbers = #tpu.dot_dimension_numbers<[1], [1], [0], [0], [0, 0, 1, 0], [], []>} : vector<16x32xbf16>, vector<32x32xbf16>, vector<16x32xf32> -> vector<16x32xf32>
    %19 = arith.addf %14, %18 : vector<16x32xf32>
    %c0_13 = arith.constant 0 : index
    %c0_14 = arith.constant 0 : index
    %20 = vector.load %arg9[%c0_13, %c0_14] : memref<16x32xf32, #tpu.memory_space<vmem>>, vector<16x32xf32>
    tpu.vector_store %arg9[%c0_13, %c0_14], %19 {strides = array<i32>} : memref<16x32xf32, #tpu.memory_space<vmem>>, vector<16x32xf32>,
    %c0_i32_15 = arith.constant 0 : i32
    %21 = arith.cmpi eq, %arg3, %c0_i32_15 : i32
    %22 = arith.extui %21 : i1 to i32
    %c0_i32_16 = arith.constant 0 : i32
    %23 = arith.cmpi ne, %22, %c0_i32_16 : i32
    scf.if %23 {
      %c0_17 = arith.constant 0 : index
      %c0_18 = arith.constant 0 : index
      %24 = vector.load %arg9[%c0_17, %c0_18] : memref<16x32xf32, #tpu.memory_space<vmem>>, vector<16x32xf32>
      %c0_19 = arith.constant 0 : index
      %c0_20 = arith.constant 0 : index
      %c0_21 = arith.constant 0 : index
      %25 = vector.load %arg8[%c0_19, %c0_20, %c0_21] : memref<1x16x32xf32, #tpu.memory_space<vmem>>, vector<1x16x32xf32>
      %26 = vector.shape_cast %25 : vector<1x16x32xf32> to vector<16x32xf32>
      %27 = vector.shape_cast %24 : vector<16x32xf32> to vector<1x16x32xf32>
      tpu.vector_store %arg8[%c0_19, %c0_20, %c0_21], %27 {strides = array<i32>} : memref<1x16x32xf32, #tpu.memory_space<vmem>>, vector<1x16x32xf32>,
    } else {
    }
    return
  }
  func.func @transform_0(%arg0: i32, %arg1: i32, %arg2: i32, %arg3: i32) -> (i32, i32) {
    %c0_i32 = arith.constant 0 : i32
    return %arg1, %arg3 : i32, i32
  }
  func.func @transform_1(%arg0: i32, %arg1: i32, %arg2: i32, %arg3: i32) -> (i32, i32) {
    %c0_i32 = arith.constant 0 : i32
    return %arg1, %arg3 : i32, i32
  }
  func.func @transform_2(%arg0: i32, %arg1: i32, %arg2: i32, %arg3: i32) -> (i32, i32, i32) {
    %c0_i32 = arith.constant 0 : i32
    %c0_i32_0 = arith.constant 0 : i32
    return %arg0, %c0_i32, %arg3 : i32, i32, i32
  }
  func.func @transform_3(%arg0: i32, %arg1: i32, %arg2: i32, %arg3: i32) -> (i32, i32, i32) {
    %c0_i32 = arith.constant 0 : i32
    return %arg0, %arg2, %arg3 : i32, i32, i32
  }
  func.func @transform_4(%arg0: i32, %arg1: i32, %arg2: i32, %arg3: i32) -> (i32, i32, i32) {
    %c0_i32 = arith.constant 0 : i32
    return %arg0, %arg1, %arg2 : i32, i32, i32
  }
}

module attributes {stable_mosaic.version = 11 : i64} {
  func.func @_gn_gate_kernel(%arg0: i32, %arg1: memref<16x32xbf16, #tpu.memory_space<vmem>>, %arg2: memref<16x32xf32, #tpu.memory_space<vmem>>, %arg3: memref<32x4xf32, #tpu.memory_space<vmem>>, %arg4: memref<1x32xf32, #tpu.memory_space<vmem>>, %arg5: memref<1x32xf32, #tpu.memory_space<vmem>>, %arg6: memref<16x32xbf16, #tpu.memory_space<vmem>>) attributes {dimension_semantics = [#tpu.dimension_semantics<parallel>], iteration_bounds = array<i64: 1>, scalar_prefetch = 0 : i64, scratch_operands = 0 : i64, tpu.core_type = #tpu.core_type<tc>, window_params = [{transform_indices = @transform_0, window_bounds = array<i64: 16, 32>}, {transform_indices = @transform_1, window_bounds = array<i64: 16, 32>}, {pipeline_mode = #tpu.pipeline_mode<synchronous>, transform_indices = @transform_2, window_bounds = array<i64: 32, 4>}, {pipeline_mode = #tpu.pipeline_mode<synchronous>, transform_indices = @transform_3, window_bounds = array<i64: 1, 32>}, {pipeline_mode = #tpu.pipeline_mode<synchronous>, transform_indices = @transform_4, window_bounds = array<i64: 1, 32>}, {transform_indices = @transform_5, window_bounds = array<i64: 16, 32>}]} {
    %c0 = arith.constant 0 : index
    %c0_0 = arith.constant 0 : index
    %0 = vector.load %arg1[%c0, %c0_0] : memref<16x32xbf16, #tpu.memory_space<vmem>>, vector<16x32xbf16>
    %1 = arith.extf %0 : vector<16x32xbf16> to vector<16x32xf32>
    %c0_1 = arith.constant 0 : index
    %c0_2 = arith.constant 0 : index
    %2 = vector.load %arg3[%c0_1, %c0_2] : memref<32x4xf32, #tpu.memory_space<vmem>>, vector<32x4xf32>
    %cst = arith.constant dense<0.000000e+00> : vector<16x4xf32>
    %3 = tpu.matmul %1, %2, %cst {dimension_numbers = #tpu.dot_dimension_numbers<[1], [0], [0], [1], [0, 0, 1, 1], [], []>} : vector<16x32xf32>, vector<32x4xf32>, vector<16x4xf32> -> vector<16x4xf32>
    %cst_3 = arith.constant 1.250000e-01 : f32
    %4 = vector.broadcast %cst_3 : f32 to vector<16x4xf32>
    %5 = arith.mulf %3, %4 : vector<16x4xf32>
    %cst_4 = arith.constant dense<0.000000e+00> : vector<16x32xf32>
    %6 = tpu.matmul %5, %2, %cst_4 {dimension_numbers = #tpu.dot_dimension_numbers<[1], [1], [0], [0], [0, 0, 1, 0], [], []>} : vector<16x4xf32>, vector<32x4xf32>, vector<16x32xf32> -> vector<16x32xf32>
    %7 = arith.subf %1, %6 : vector<16x32xf32>
    %8 = arith.mulf %7, %7 : vector<16x32xf32>
    %cst_5 = arith.constant dense<0.000000e+00> : vector<16x4xf32>
    %9 = tpu.matmul %8, %2, %cst_5 {dimension_numbers = #tpu.dot_dimension_numbers<[1], [0], [0], [1], [0, 0, 1, 1], [], []>} : vector<16x32xf32>, vector<32x4xf32>, vector<16x4xf32> -> vector<16x4xf32>
    %cst_6 = arith.constant 1.250000e-01 : f32
    %10 = vector.broadcast %cst_6 : f32 to vector<16x4xf32>
    %11 = arith.mulf %9, %10 : vector<16x4xf32>
    %cst_7 = arith.constant dense<0.000000e+00> : vector<16x32xf32>
    %12 = tpu.matmul %11, %2, %cst_7 {dimension_numbers = #tpu.dot_dimension_numbers<[1], [1], [0], [0], [0, 0, 1, 0], [], []>} : vector<16x4xf32>, vector<32x4xf32>, vector<16x32xf32> -> vector<16x32xf32>
    %cst_8 = arith.constant 6.400000e-04 : f32
    %13 = vector.broadcast %cst_8 : f32 to vector<16x32xf32>
    %14 = arith.addf %12, %13 : vector<16x32xf32>
    %15 = math.rsqrt %14 : vector<16x32xf32>
    %16 = arith.mulf %7, %15 : vector<16x32xf32>
    %c0_9 = arith.constant 0 : index
    %c0_10 = arith.constant 0 : index
    %17 = vector.load %arg4[%c0_9, %c0_10] : memref<1x32xf32, #tpu.memory_space<vmem>>, vector<1x32xf32>
    %18 = vector.broadcast %17 : vector<1x32xf32> to vector<16x32xf32>
    %19 = arith.mulf %16, %18 : vector<16x32xf32>
    %c0_11 = arith.constant 0 : index
    %c0_12 = arith.constant 0 : index
    %20 = vector.load %arg5[%c0_11, %c0_12] : memref<1x32xf32, #tpu.memory_space<vmem>>, vector<1x32xf32>
    %21 = vector.broadcast %20 : vector<1x32xf32> to vector<16x32xf32>
    %22 = arith.addf %19, %21 : vector<16x32xf32>
    %c0_13 = arith.constant 0 : index
    %c0_14 = arith.constant 0 : index
    %23 = vector.load %arg2[%c0_13, %c0_14] : memref<16x32xf32, #tpu.memory_space<vmem>>, vector<16x32xf32>
    %cst_15 = arith.constant 0.000000e+00 : f32
    %24 = vector.broadcast %cst_15 : f32 to vector<16x32xf32>
    %25 = arith.subf %24, %23 : vector<16x32xf32>
    %26 = math.exp %25 : vector<16x32xf32>
    %cst_16 = arith.constant 1.000000e+00 : f32
    %27 = vector.broadcast %cst_16 : f32 to vector<16x32xf32>
    %28 = arith.addf %27, %26 : vector<16x32xf32>
    %29 = tpu.reciprocal %28 {approx = true} : vector<16x32xf32> -> vector<16x32xf32>
    %30 = arith.mulf %23, %29 : vector<16x32xf32>
    %31 = arith.mulf %22, %30 : vector<16x32xf32>
    %32 = arith.truncf %31 : vector<16x32xf32> to vector<16x32xbf16>
    %c0_17 = arith.constant 0 : index
    %c0_18 = arith.constant 0 : index
    %33 = vector.load %arg6[%c0_17, %c0_18] : memref<16x32xbf16, #tpu.memory_space<vmem>>, vector<16x32xbf16>
    tpu.vector_store %arg6[%c0_17, %c0_18], %32 {strides = array<i32>} : memref<16x32xbf16, #tpu.memory_space<vmem>>, vector<16x32xbf16>,
    return
  }
  func.func @transform_0(%arg0: i32) -> (i32, i32) {
    %c0_i32 = arith.constant 0 : i32
    %c0_i32_0 = arith.constant 0 : i32
    return %arg0, %c0_i32 : i32, i32
  }
  func.func @transform_1(%arg0: i32) -> (i32, i32) {
    %c0_i32 = arith.constant 0 : i32
    %c0_i32_0 = arith.constant 0 : i32
    return %arg0, %c0_i32 : i32, i32
  }
  func.func @transform_2(%arg0: i32) -> (i32, i32) {
    %c0_i32 = arith.constant 0 : i32
    %c0_i32_0 = arith.constant 0 : i32
    %c0_i32_1 = arith.constant 0 : i32
    return %c0_i32, %c0_i32_0 : i32, i32
  }
  func.func @transform_3(%arg0: i32) -> (i32, i32) {
    %c0_i32 = arith.constant 0 : i32
    %c0_i32_0 = arith.constant 0 : i32
    %c0_i32_1 = arith.constant 0 : i32
    return %c0_i32, %c0_i32_0 : i32, i32
  }
  func.func @transform_4(%arg0: i32) -> (i32, i32) {
    %c0_i32 = arith.constant 0 : i32
    %c0_i32_0 = arith.constant 0 : i32
    %c0_i32_1 = arith.constant 0 : i32
    return %c0_i32, %c0_i32_0 : i32, i32
  }
  func.func @transform_5(%arg0: i32) -> (i32, i32) {
    %c0_i32 = arith.constant 0 : i32
    %c0_i32_0 = arith.constant 0 : i32
    return %arg0, %c0_i32 : i32, i32
  }
}

module attributes {stable_mosaic.version = 11 : i64} {
  func.func @_matmul_kernel(%arg0: i32, %arg1: i32, %arg2: i32, %arg3: memref<16x32xbf16, #tpu.memory_space<vmem>>, %arg4: memref<32x32xbf16, #tpu.memory_space<vmem>>, %arg5: memref<16x32xf32, #tpu.memory_space<vmem>>, %arg6: memref<16x32xf32, #tpu.memory_space<vmem>>) attributes {dimension_semantics = [#tpu.dimension_semantics<parallel>, #tpu.dimension_semantics<parallel>, #tpu.dimension_semantics<arbitrary>], iteration_bounds = array<i64: 1, 1, 1>, scalar_prefetch = 0 : i64, scratch_operands = 1 : i64, tpu.core_type = #tpu.core_type<tc>, window_params = [{transform_indices = @transform_0, window_bounds = array<i64: 16, 32>}, {transform_indices = @transform_1, window_bounds = array<i64: 32, 32>}, {transform_indices = @transform_2, window_bounds = array<i64: 16, 32>}]} {
    %c0_i32 = arith.constant 0 : i32
    %0 = arith.cmpi eq, %arg2, %c0_i32 : i32
    %1 = arith.extui %0 : i1 to i32
    %c0_i32_0 = arith.constant 0 : i32
    %2 = arith.cmpi ne, %1, %c0_i32_0 : i32
    scf.if %2 {
      %cst_10 = arith.constant 0.000000e+00 : f32
      %12 = vector.broadcast %cst_10 : f32 to vector<16x32xf32>
      %c0_11 = arith.constant 0 : index
      %c0_12 = arith.constant 0 : index
      %13 = vector.load %arg6[%c0_11, %c0_12] : memref<16x32xf32, #tpu.memory_space<vmem>>, vector<16x32xf32>
      tpu.vector_store %arg6[%c0_11, %c0_12], %12 {strides = array<i32>} : memref<16x32xf32, #tpu.memory_space<vmem>>, vector<16x32xf32>,
    } else {
    }
    %c0 = arith.constant 0 : index
    %c0_1 = arith.constant 0 : index
    %3 = vector.load %arg6[%c0, %c0_1] : memref<16x32xf32, #tpu.memory_space<vmem>>, vector<16x32xf32>
    %c0_2 = arith.constant 0 : index
    %c0_3 = arith.constant 0 : index
    %4 = vector.load %arg3[%c0_2, %c0_3] : memref<16x32xbf16, #tpu.memory_space<vmem>>, vector<16x32xbf16>
    %c0_4 = arith.constant 0 : index
    %c0_5 = arith.constant 0 : index
    %5 = vector.load %arg4[%c0_4, %c0_5] : memref<32x32xbf16, #tpu.memory_space<vmem>>, vector<32x32xbf16>
    %cst = arith.constant dense<0.000000e+00> : vector<16x32xf32>
    %6 = tpu.matmul %4, %5, %cst {dimension_numbers = #tpu.dot_dimension_numbers<[1], [1], [0], [0], [0, 0, 1, 0], [], []>} : vector<16x32xbf16>, vector<32x32xbf16>, vector<16x32xf32> -> vector<16x32xf32>
    %7 = arith.addf %3, %6 : vector<16x32xf32>
    %c0_6 = arith.constant 0 : index
    %c0_7 = arith.constant 0 : index
    %8 = vector.load %arg6[%c0_6, %c0_7] : memref<16x32xf32, #tpu.memory_space<vmem>>, vector<16x32xf32>
    tpu.vector_store %arg6[%c0_6, %c0_7], %7 {strides = array<i32>} : memref<16x32xf32, #tpu.memory_space<vmem>>, vector<16x32xf32>,
    %c0_i32_8 = arith.constant 0 : i32
    %9 = arith.cmpi eq, %arg2, %c0_i32_8 : i32
    %10 = arith.extui %9 : i1 to i32
    %c0_i32_9 = arith.constant 0 : i32
    %11 = arith.cmpi ne, %10, %c0_i32_9 : i32
    scf.if %11 {
      %c0_10 = arith.constant 0 : index
      %c0_11 = arith.constant 0 : index
      %12 = vector.load %arg6[%c0_10, %c0_11] : memref<16x32xf32, #tpu.memory_space<vmem>>, vector<16x32xf32>
      %c0_12 = arith.constant 0 : index
      %c0_13 = arith.constant 0 : index
      %13 = vector.load %arg5[%c0_12, %c0_13] : memref<16x32xf32, #tpu.memory_space<vmem>>, vector<16x32xf32>
      tpu.vector_store %arg5[%c0_12, %c0_13], %12 {strides = array<i32>} : memref<16x32xf32, #tpu.memory_space<vmem>>, vector<16x32xf32>,
    } else {
    }
    return
  }
  func.func @transform_0(%arg0: i32, %arg1: i32, %arg2: i32) -> (i32, i32) {
    %c0_i32 = arith.constant 0 : i32
    return %arg0, %arg2 : i32, i32
  }
  func.func @transform_1(%arg0: i32, %arg1: i32, %arg2: i32) -> (i32, i32) {
    %c0_i32 = arith.constant 0 : i32
    return %arg1, %arg2 : i32, i32
  }
  func.func @transform_2(%arg0: i32, %arg1: i32, %arg2: i32) -> (i32, i32) {
    %c0_i32 = arith.constant 0 : i32
    return %arg0, %arg1 : i32, i32
  }
}

module attributes {stable_mosaic.version = 11 : i64} {
  func.func @_wkv_kernel(%arg0: i32, %arg1: i32, %arg2: memref<1x8x32xf32, #tpu.memory_space<vmem>>, %arg3: memref<1x8x32xf32, #tpu.memory_space<vmem>>, %arg4: memref<1x8x32xf32, #tpu.memory_space<vmem>>, %arg5: memref<4x8x8xf32, #tpu.memory_space<vmem>>, %arg6: memref<1x32xf32, #tpu.memory_space<vmem>>, %arg7: memref<1x32xf32, #tpu.memory_space<vmem>>, %arg8: memref<32x4xf32, #tpu.memory_space<vmem>>, %arg9: memref<1x8x32xbf16, #tpu.memory_space<vmem>>, %arg10: memref<4x8x8xf32, #tpu.memory_space<vmem>>) attributes {dimension_semantics = [#tpu.dimension_semantics<parallel>, #tpu.dimension_semantics<arbitrary>], iteration_bounds = array<i64: 2, 1>, scalar_prefetch = 0 : i64, scratch_operands = 1 : i64, tpu.core_type = #tpu.core_type<tc>, window_params = [{transform_indices = @transform_0, window_bounds = array<i64: 1, 8, 32>}, {transform_indices = @transform_1, window_bounds = array<i64: 1, 8, 32>}, {transform_indices = @transform_2, window_bounds = array<i64: 1, 8, 32>}, {pipeline_mode = #tpu.pipeline_mode<synchronous>, transform_indices = @transform_3, window_bounds = array<i64: 4, 8, 8>}, {pipeline_mode = #tpu.pipeline_mode<synchronous>, transform_indices = @transform_4, window_bounds = array<i64: 1, 32>}, {pipeline_mode = #tpu.pipeline_mode<synchronous>, transform_indices = @transform_5, window_bounds = array<i64: 1, 32>}, {pipeline_mode = #tpu.pipeline_mode<synchronous>, transform_indices = @transform_6, window_bounds = array<i64: 32, 4>}, {transform_indices = @transform_7, window_bounds = array<i64: 1, 8, 32>}]} {
    %c0_i32 = arith.constant 0 : i32
    %0 = arith.cmpi eq, %arg1, %c0_i32 : i32
    %1 = arith.extui %0 : i1 to i32
    %c0_i32_0 = arith.constant 0 : i32
    %2 = arith.cmpi ne, %1, %c0_i32_0 : i32
    scf.if %2 {
      %cst_77 = arith.constant 0.000000e+00 : f32
      %129 = vector.broadcast %cst_77 : f32 to vector<4x8x8xf32>
      %c0_78 = arith.constant 0 : index
      %c0_79 = arith.constant 0 : index
      %c0_80 = arith.constant 0 : index
      %130 = vector.load %arg10[%c0_78, %c0_79, %c0_80] : memref<4x8x8xf32, #tpu.memory_space<vmem>>, vector<4x8x8xf32>
      tpu.vector_store %arg10[%c0_78, %c0_79, %c0_80], %129 {strides = array<i32>} : memref<4x8x8xf32, #tpu.memory_space<vmem>>, vector<4x8x8xf32>,
    } else {
    }
    %c0 = arith.constant 0 : index
    %c0_1 = arith.constant 0 : index
    %c0_2 = arith.constant 0 : index
    %3 = vector.load %arg2[%c0, %c0_1, %c0_2] : memref<1x8x32xf32, #tpu.memory_space<vmem>>, vector<1x8x32xf32>
    %4 = vector.shape_cast %3 : vector<1x8x32xf32> to vector<8x32xf32>
    %c0_3 = arith.constant 0 : index
    %c0_4 = arith.constant 0 : index
    %c0_5 = arith.constant 0 : index
    %5 = vector.load %arg3[%c0_3, %c0_4, %c0_5] : memref<1x8x32xf32, #tpu.memory_space<vmem>>, vector<1x8x32xf32>
    %6 = vector.shape_cast %5 : vector<1x8x32xf32> to vector<8x32xf32>
    %c0_6 = arith.constant 0 : index
    %c0_7 = arith.constant 0 : index
    %c0_8 = arith.constant 0 : index
    %7 = vector.load %arg4[%c0_6, %c0_7, %c0_8] : memref<1x8x32xf32, #tpu.memory_space<vmem>>, vector<1x8x32xf32>
    %8 = vector.shape_cast %7 : vector<1x8x32xf32> to vector<8x32xf32>
    %c0_9 = arith.constant 0 : index
    %c0_10 = arith.constant 0 : index
    %9 = vector.load %arg6[%c0_9, %c0_10] : memref<1x32xf32, #tpu.memory_space<vmem>>, vector<1x32xf32>
    %c0_11 = arith.constant 0 : index
    %c0_12 = arith.constant 0 : index
    %10 = vector.load %arg7[%c0_11, %c0_12] : memref<1x32xf32, #tpu.memory_space<vmem>>, vector<1x32xf32>
    %c0_13 = arith.constant 0 : index
    %c0_14 = arith.constant 0 : index
    %11 = vector.load %arg8[%c0_13, %c0_14] : memref<32x4xf32, #tpu.memory_space<vmem>>, vector<32x4xf32>
    %c8_i32 = arith.constant 8 : i32
    %12 = arith.muli %arg1, %c8_i32 : i32
    %13 = arith.sitofp %12 : i32 to f32
    %14 = tpu.iota {dimensions = array<i32: 0>} : vector<8x1xi32>
    %15 = arith.sitofp %14 : vector<8x1xi32> to vector<8x1xf32>
    %16 = vector.broadcast %13 : f32 to vector<8x1xf32>
    %17 = arith.addf %16, %15 : vector<8x1xf32>
    %18 = vector.broadcast %17 : vector<8x1xf32> to vector<8x32xf32>
    %19 = vector.broadcast %9 : vector<1x32xf32> to vector<8x32xf32>
    %20 = arith.mulf %18, %19 : vector<8x32xf32>
    %21 = math.exp %20 : vector<8x32xf32>
    %cst = arith.constant 7.000000e+00 : f32
    %22 = vector.broadcast %cst : f32 to vector<8x1xf32>
    %23 = arith.subf %22, %17 : vector<8x1xf32>
    %24 = vector.broadcast %23 : vector<8x1xf32> to vector<8x32xf32>
    %25 = vector.broadcast %9 : vector<1x32xf32> to vector<8x32xf32>
    %26 = arith.mulf %24, %25 : vector<8x32xf32>
    %27 = math.exp %26 : vector<8x32xf32>
    %28 = arith.mulf %4, %21 : vector<8x32xf32>
    %29 = arith.mulf %6, %27 : vector<8x32xf32>
    %30 = vector.broadcast %10 : vector<1x32xf32> to vector<8x32xf32>
    %31 = arith.mulf %6, %30 : vector<8x32xf32>
    %32 = arith.mulf %31, %4 : vector<8x32xf32>
    %cst_15 = arith.constant dense<0.000000e+00> : vector<8x4xf32>
    %33 = tpu.matmul %32, %11, %cst_15 {dimension_numbers = #tpu.dot_dimension_numbers<[1], [0], [0], [1], [0, 0, 1, 1], [], []>} : vector<8x32xf32>, vector<32x4xf32>, vector<8x4xf32> -> vector<8x4xf32>
    %cst_16 = arith.constant dense<0.000000e+00> : vector<8x32xf32>
    %34 = tpu.matmul %33, %11, %cst_16 {dimension_numbers = #tpu.dot_dimension_numbers<[1], [1], [0], [0], [0, 0, 1, 0], [], []>} : vector<8x4xf32>, vector<32x4xf32>, vector<8x32xf32> -> vector<8x32xf32>
    %35 = arith.mulf %34, %8 : vector<8x32xf32>
    %36 = tpu.iota {dimensions = array<i32: 0>} : vector<8x8xi32>
    %37 = tpu.iota {dimensions = array<i32: 1>} : vector<8x8xi32>
    %38 = arith.cmpi slt, %37, %36 : vector<8x8xi32>
    %39 = vector.extract_strided_slice %4 {offsets = [0, 0], sizes = [8, 8], strides = [1, 1]} : vector<8x32xf32> to vector<8x8xf32>
    %40 = vector.extract_strided_slice %28 {offsets = [0, 0], sizes = [8, 8], strides = [1, 1]} : vector<8x32xf32> to vector<8x8xf32>
    %41 = vector.extract_strided_slice %29 {offsets = [0, 0], sizes = [8, 8], strides = [1, 1]} : vector<8x32xf32> to vector<8x8xf32>
    %42 = vector.extract_strided_slice %8 {offsets = [0, 0], sizes = [8, 8], strides = [1, 1]} : vector<8x32xf32> to vector<8x8xf32>
    %c0_17 = arith.constant 0 : index
    %c0_18 = arith.constant 0 : index
    %c0_19 = arith.constant 0 : index
    %43 = vector.load %arg5[%c0_17, %c0_18, %c0_19] : memref<4x8x8xf32, #tpu.memory_space<vmem>>, vector<1x8x8xf32>
    %44 = vector.shape_cast %43 : vector<1x8x8xf32> to vector<8x8xf32>
    %c0_20 = arith.constant 0 : index
    %c0_21 = arith.constant 0 : index
    %c0_22 = arith.constant 0 : index
    %45 = vector.load %arg10[%c0_20, %c0_21, %c0_22] : memref<4x8x8xf32, #tpu.memory_space<vmem>>, vector<1x8x8xf32>
    %46 = vector.shape_cast %45 : vector<1x8x8xf32> to vector<8x8xf32>
    %cst_23 = arith.constant dense<0.000000e+00> : vector<8x8xf32>
    %47 = tpu.matmul %40, %44, %cst_23 {dimension_numbers = #tpu.dot_dimension_numbers<[1], [0], [0], [1], [0, 0, 1, 1], [], []>} : vector<8x8xf32>, vector<8x8xf32>, vector<8x8xf32> -> vector<8x8xf32>
    %cst_24 = arith.constant dense<0.000000e+00> : vector<8x8xf32>
    %48 = tpu.matmul %39, %46, %cst_24 {dimension_numbers = #tpu.dot_dimension_numbers<[1], [0], [0], [1], [0, 0, 1, 1], [], []>} : vector<8x8xf32>, vector<8x8xf32>, vector<8x8xf32> -> vector<8x8xf32>
    %49 = arith.addf %47, %48 : vector<8x8xf32>
    %cst_25 = arith.constant dense<0.000000e+00> : vector<8x8xf32>
    %50 = tpu.matmul %39, %41, %cst_25 {dimension_numbers = #tpu.dot_dimension_numbers<[1], [1], [0], [0], [0, 0, 1, 0], [], []>} : vector<8x8xf32>, vector<8x8xf32>, vector<8x8xf32> -> vector<8x8xf32>
    %cst_26 = arith.constant 0.000000e+00 : f32
    %51 = vector.broadcast %cst_26 : f32 to vector<8x8xf32>
    %52 = arith.select %38, %50, %51 : vector<8x8xi1>, vector<8x8xf32>
    %cst_27 = arith.constant dense<0.000000e+00> : vector<8x8xf32>
    %53 = tpu.matmul %52, %42, %cst_27 {dimension_numbers = #tpu.dot_dimension_numbers<[1], [0], [0], [1], [0, 0, 1, 1], [], []>} : vector<8x8xf32>, vector<8x8xf32>, vector<8x8xf32> -> vector<8x8xf32>
    %54 = arith.addf %49, %53 : vector<8x8xf32>
    %cst_28 = arith.constant dense<0.000000e+00> : vector<8x8xf32>
    %55 = tpu.matmul %41, %42, %cst_28 {dimension_numbers = #tpu.dot_dimension_numbers<[0], [0], [1], [1], [0, 1, 1, 1], [], []>} : vector<8x8xf32>, vector<8x8xf32>, vector<8x8xf32> -> vector<8x8xf32>
    %56 = arith.addf %46, %55 : vector<8x8xf32>
    %c0_29 = arith.constant 0 : index
    %c0_30 = arith.constant 0 : index
    %c0_31 = arith.constant 0 : index
    %57 = vector.load %arg10[%c0_29, %c0_30, %c0_31] : memref<4x8x8xf32, #tpu.memory_space<vmem>>, vector<1x8x8xf32>
    %58 = vector.shape_cast %57 : vector<1x8x8xf32> to vector<8x8xf32>
    %59 = vector.shape_cast %56 : vector<8x8xf32> to vector<1x8x8xf32>
    tpu.vector_store %arg10[%c0_29, %c0_30, %c0_31], %59 {strides = array<i32>} : memref<4x8x8xf32, #tpu.memory_space<vmem>>, vector<1x8x8xf32>,
    %60 = vector.extract_strided_slice %4 {offsets = [0, 8], sizes = [8, 8], strides = [1, 1]} : vector<8x32xf32> to vector<8x8xf32>
    %61 = vector.extract_strided_slice %28 {offsets = [0, 8], sizes = [8, 8], strides = [1, 1]} : vector<8x32xf32> to vector<8x8xf32>
    %62 = vector.extract_strided_slice %29 {offsets = [0, 8], sizes = [8, 8], strides = [1, 1]} : vector<8x32xf32> to vector<8x8xf32>
    %63 = vector.extract_strided_slice %8 {offsets = [0, 8], sizes = [8, 8], strides = [1, 1]} : vector<8x32xf32> to vector<8x8xf32>
    %c1 = arith.constant 1 : index
    %c0_32 = arith.constant 0 : index
    %c0_33 = arith.constant 0 : index
    %64 = vector.load %arg5[%c1, %c0_32, %c0_33] : memref<4x8x8xf32, #tpu.memory_space<vmem>>, vector<1x8x8xf32>
    %65 = vector.shape_cast %64 : vector<1x8x8xf32> to vector<8x8xf32>
    %c1_34 = arith.constant 1 : index
    %c0_35 = arith.constant 0 : index
    %c0_36 = arith.constant 0 : index
    %66 = vector.load %arg10[%c1_34, %c0_35, %c0_36] : memref<4x8x8xf32, #tpu.memory_space<vmem>>, vector<1x8x8xf32>
    %67 = vector.shape_cast %66 : vector<1x8x8xf32> to vector<8x8xf32>
    %cst_37 = arith.constant dense<0.000000e+00> : vector<8x8xf32>
    %68 = tpu.matmul %61, %65, %cst_37 {dimension_numbers = #tpu.dot_dimension_numbers<[1], [0], [0], [1], [0, 0, 1, 1], [], []>} : vector<8x8xf32>, vector<8x8xf32>, vector<8x8xf32> -> vector<8x8xf32>
    %cst_38 = arith.constant dense<0.000000e+00> : vector<8x8xf32>
    %69 = tpu.matmul %60, %67, %cst_38 {dimension_numbers = #tpu.dot_dimension_numbers<[1], [0], [0], [1], [0, 0, 1, 1], [], []>} : vector<8x8xf32>, vector<8x8xf32>, vector<8x8xf32> -> vector<8x8xf32>
    %70 = arith.addf %68, %69 : vector<8x8xf32>
    %cst_39 = arith.constant dense<0.000000e+00> : vector<8x8xf32>
    %71 = tpu.matmul %60, %62, %cst_39 {dimension_numbers = #tpu.dot_dimension_numbers<[1], [1], [0], [0], [0, 0, 1, 0], [], []>} : vector<8x8xf32>, vector<8x8xf32>, vector<8x8xf32> -> vector<8x8xf32>
    %cst_40 = arith.constant 0.000000e+00 : f32
    %72 = vector.broadcast %cst_40 : f32 to vector<8x8xf32>
    %73 = arith.select %38, %71, %72 : vector<8x8xi1>, vector<8x8xf32>
    %cst_41 = arith.constant dense<0.000000e+00> : vector<8x8xf32>
    %74 = tpu.matmul %73, %63, %cst_41 {dimension_numbers = #tpu.dot_dimension_numbers<[1], [0], [0], [1], [0, 0, 1, 1], [], []>} : vector<8x8xf32>, vector<8x8xf32>, vector<8x8xf32> -> vector<8x8xf32>
    %75 = arith.addf %70, %74 : vector<8x8xf32>
    %cst_42 = arith.constant dense<0.000000e+00> : vector<8x8xf32>
    %76 = tpu.matmul %62, %63, %cst_42 {dimension_numbers = #tpu.dot_dimension_numbers<[0], [0], [1], [1], [0, 1, 1, 1], [], []>} : vector<8x8xf32>, vector<8x8xf32>, vector<8x8xf32> -> vector<8x8xf32>
    %77 = arith.addf %67, %76 : vector<8x8xf32>
    %c1_43 = arith.constant 1 : index
    %c0_44 = arith.constant 0 : index
    %c0_45 = arith.constant 0 : index
    %78 = vector.load %arg10[%c1_43, %c0_44, %c0_45] : memref<4x8x8xf32, #tpu.memory_space<vmem>>, vector<1x8x8xf32>
    %79 = vector.shape_cast %78 : vector<1x8x8xf32> to vector<8x8xf32>
    %80 = vector.shape_cast %77 : vector<8x8xf32> to vector<1x8x8xf32>
    tpu.vector_store %arg10[%c1_43, %c0_44, %c0_45], %80 {strides = array<i32>} : memref<4x8x8xf32, #tpu.memory_space<vmem>>, vector<1x8x8xf32>,
    %81 = vector.extract_strided_slice %4 {offsets = [0, 16], sizes = [8, 8], strides = [1, 1]} : vector<8x32xf32> to vector<8x8xf32>
    %82 = vector.extract_strided_slice %28 {offsets = [0, 16], sizes = [8, 8], strides = [1, 1]} : vector<8x32xf32> to vector<8x8xf32>
    %83 = vector.extract_strided_slice %29 {offsets = [0, 16], sizes = [8, 8], strides = [1, 1]} : vector<8x32xf32> to vector<8x8xf32>
    %84 = vector.extract_strided_slice %8 {offsets = [0, 16], sizes = [8, 8], strides = [1, 1]} : vector<8x32xf32> to vector<8x8xf32>
    %c2 = arith.constant 2 : index
    %c0_46 = arith.constant 0 : index
    %c0_47 = arith.constant 0 : index
    %85 = vector.load %arg5[%c2, %c0_46, %c0_47] : memref<4x8x8xf32, #tpu.memory_space<vmem>>, vector<1x8x8xf32>
    %86 = vector.shape_cast %85 : vector<1x8x8xf32> to vector<8x8xf32>
    %c2_48 = arith.constant 2 : index
    %c0_49 = arith.constant 0 : index
    %c0_50 = arith.constant 0 : index
    %87 = vector.load %arg10[%c2_48, %c0_49, %c0_50] : memref<4x8x8xf32, #tpu.memory_space<vmem>>, vector<1x8x8xf32>
    %88 = vector.shape_cast %87 : vector<1x8x8xf32> to vector<8x8xf32>
    %cst_51 = arith.constant dense<0.000000e+00> : vector<8x8xf32>
    %89 = tpu.matmul %82, %86, %cst_51 {dimension_numbers = #tpu.dot_dimension_numbers<[1], [0], [0], [1], [0, 0, 1, 1], [], []>} : vector<8x8xf32>, vector<8x8xf32>, vector<8x8xf32> -> vector<8x8xf32>
    %cst_52 = arith.constant dense<0.000000e+00> : vector<8x8xf32>
    %90 = tpu.matmul %81, %88, %cst_52 {dimension_numbers = #tpu.dot_dimension_numbers<[1], [0], [0], [1], [0, 0, 1, 1], [], []>} : vector<8x8xf32>, vector<8x8xf32>, vector<8x8xf32> -> vector<8x8xf32>
    %91 = arith.addf %89, %90 : vector<8x8xf32>
    %cst_53 = arith.constant dense<0.000000e+00> : vector<8x8xf32>
    %92 = tpu.matmul %81, %83, %cst_53 {dimension_numbers = #tpu.dot_dimension_numbers<[1], [1], [0], [0], [0, 0, 1, 0], [], []>} : vector<8x8xf32>, vector<8x8xf32>, vector<8x8xf32> -> vector<8x8xf32>
    %cst_54 = arith.constant 0.000000e+00 : f32
    %93 = vector.broadcast %cst_54 : f32 to vector<8x8xf32>
    %94 = arith.select %38, %92, %93 : vector<8x8xi1>, vector<8x8xf32>
    %cst_55 = arith.constant dense<0.000000e+00> : vector<8x8xf32>
    %95 = tpu.matmul %94, %84, %cst_55 {dimension_numbers = #tpu.dot_dimension_numbers<[1], [0], [0], [1], [0, 0, 1, 1], [], []>} : vector<8x8xf32>, vector<8x8xf32>, vector<8x8xf32> -> vector<8x8xf32>
    %96 = arith.addf %91, %95 : vector<8x8xf32>
    %cst_56 = arith.constant dense<0.000000e+00> : vector<8x8xf32>
    %97 = tpu.matmul %83, %84, %cst_56 {dimension_numbers = #tpu.dot_dimension_numbers<[0], [0], [1], [1], [0, 1, 1, 1], [], []>} : vector<8x8xf32>, vector<8x8xf32>, vector<8x8xf32> -> vector<8x8xf32>
    %98 = arith.addf %88, %97 : vector<8x8xf32>
    %c2_57 = arith.constant 2 : index
    %c0_58 = arith.constant 0 : index
    %c0_59 = arith.constant 0 : index
    %99 = vector.load %arg10[%c2_57, %c0_58, %c0_59] : memref<4x8x8xf32, #tpu.memory_space<vmem>>, vector<1x8x8xf32>
    %100 = vector.shape_cast %99 : vector<1x8x8xf32> to vector<8x8xf32>
    %101 = vector.shape_cast %98 : vector<8x8xf32> to vector<1x8x8xf32>
    tpu.vector_store %arg10[%c2_57, %c0_58, %c0_59], %101 {strides = array<i32>} : memref<4x8x8xf32, #tpu.memory_space<vmem>>, vector<1x8x8xf32>,
    %102 = vector.extract_strided_slice %4 {offsets = [0, 24], sizes = [8, 8], strides = [1, 1]} : vector<8x32xf32> to vector<8x8xf32>
    %103 = vector.extract_strided_slice %28 {offsets = [0, 24], sizes = [8, 8], strides = [1, 1]} : vector<8x32xf32> to vector<8x8xf32>
    %104 = vector.extract_strided_slice %29 {offsets = [0, 24], sizes = [8, 8], strides = [1, 1]} : vector<8x32xf32> to vector<8x8xf32>
    %105 = vector.extract_strided_slice %8 {offsets = [0, 24], sizes = [8, 8], strides = [1, 1]} : vector<8x32xf32> to vector<8x8xf32>
    %c3 = arith.constant 3 : index
    %c0_60 = arith.constant 0 : index
    %c0_61 = arith.constant 0 : index
    %106 = vector.load %arg5[%c3, %c0_60, %c0_61] : memref<4x8x8xf32, #tpu.memory_space<vmem>>, vector<1x8x8xf32>
    %107 = vector.shape_cast %106 : vector<1x8x8xf32> to vector<8x8xf32>
    %c3_62 = arith.constant 3 : index
    %c0_63 = arith.constant 0 : index
    %c0_64 = arith.constant 0 : index
    %108 = vector.load %arg10[%c3_62, %c0_63, %c0_64] : memref<4x8x8xf32, #tpu.memory_space<vmem>>, vector<1x8x8xf32>
    %109 = vector.shape_cast %108 : vector<1x8x8xf32> to vector<8x8xf32>
    %cst_65 = arith.constant dense<0.000000e+00> : vector<8x8xf32>
    %110 = tpu.matmul %103, %107, %cst_65 {dimension_numbers = #tpu.dot_dimension_numbers<[1], [0], [0], [1], [0, 0, 1, 1], [], []>} : vector<8x8xf32>, vector<8x8xf32>, vector<8x8xf32> -> vector<8x8xf32>
    %cst_66 = arith.constant dense<0.000000e+00> : vector<8x8xf32>
    %111 = tpu.matmul %102, %109, %cst_66 {dimension_numbers = #tpu.dot_dimension_numbers<[1], [0], [0], [1], [0, 0, 1, 1], [], []>} : vector<8x8xf32>, vector<8x8xf32>, vector<8x8xf32> -> vector<8x8xf32>
    %112 = arith.addf %110, %111 : vector<8x8xf32>
    %cst_67 = arith.constant dense<0.000000e+00> : vector<8x8xf32>
    %113 = tpu.matmul %102, %104, %cst_67 {dimension_numbers = #tpu.dot_dimension_numbers<[1], [1], [0], [0], [0, 0, 1, 0], [], []>} : vector<8x8xf32>, vector<8x8xf32>, vector<8x8xf32> -> vector<8x8xf32>
    %cst_68 = arith.constant 0.000000e+00 : f32
    %114 = vector.broadcast %cst_68 : f32 to vector<8x8xf32>
    %115 = arith.select %38, %113, %114 : vector<8x8xi1>, vector<8x8xf32>
    %cst_69 = arith.constant dense<0.000000e+00> : vector<8x8xf32>
    %116 = tpu.matmul %115, %105, %cst_69 {dimension_numbers = #tpu.dot_dimension_numbers<[1], [0], [0], [1], [0, 0, 1, 1], [], []>} : vector<8x8xf32>, vector<8x8xf32>, vector<8x8xf32> -> vector<8x8xf32>
    %117 = arith.addf %112, %116 : vector<8x8xf32>
    %cst_70 = arith.constant dense<0.000000e+00> : vector<8x8xf32>
    %118 = tpu.matmul %104, %105, %cst_70 {dimension_numbers = #tpu.dot_dimension_numbers<[0], [0], [1], [1], [0, 1, 1, 1], [], []>} : vector<8x8xf32>, vector<8x8xf32>, vector<8x8xf32> -> vector<8x8xf32>
    %119 = arith.addf %109, %118 : vector<8x8xf32>
    %c3_71 = arith.constant 3 : index
    %c0_72 = arith.constant 0 : index
    %c0_73 = arith.constant 0 : index
    %120 = vector.load %arg10[%c3_71, %c0_72, %c0_73] : memref<4x8x8xf32, #tpu.memory_space<vmem>>, vector<1x8x8xf32>
    %121 = vector.shape_cast %120 : vector<1x8x8xf32> to vector<8x8xf32>
    %122 = vector.shape_cast %119 : vector<8x8xf32> to vector<1x8x8xf32>
    tpu.vector_store %arg10[%c3_71, %c0_72, %c0_73], %122 {strides = array<i32>} : memref<4x8x8xf32, #tpu.memory_space<vmem>>, vector<1x8x8xf32>,
    %123 = tpu.concatenate %54, %75, %96, %117 in 1 : vector<8x8xf32>, vector<8x8xf32>, vector<8x8xf32>, vector<8x8xf32> -> vector<8x32xf32>
    %124 = arith.addf %123, %35 : vector<8x32xf32>
    %125 = arith.truncf %124 : vector<8x32xf32> to vector<8x32xbf16>
    %c0_74 = arith.constant 0 : index
    %c0_75 = arith.constant 0 : index
    %c0_76 = arith.constant 0 : index
    %126 = vector.load %arg9[%c0_74, %c0_75, %c0_76] : memref<1x8x32xbf16, #tpu.memory_space<vmem>>, vector<1x8x32xbf16>
    %127 = vector.shape_cast %126 : vector<1x8x32xbf16> to vector<8x32xbf16>
    %128 = vector.shape_cast %125 : vector<8x32xbf16> to vector<1x8x32xbf16>
    tpu.vector_store %arg9[%c0_74, %c0_75, %c0_76], %128 {strides = array<i32>} : memref<1x8x32xbf16, #tpu.memory_space<vmem>>, vector<1x8x32xbf16>,
    return
  }
  func.func @transform_0(%arg0: i32, %arg1: i32) -> (i32, i32, i32) {
    %c0_i32 = arith.constant 0 : i32
    %c0_i32_0 = arith.constant 0 : i32
    return %arg0, %arg1, %c0_i32 : i32, i32, i32
  }
  func.func @transform_1(%arg0: i32, %arg1: i32) -> (i32, i32, i32) {
    %c0_i32 = arith.constant 0 : i32
    %c0_i32_0 = arith.constant 0 : i32
    return %arg0, %arg1, %c0_i32 : i32, i32, i32
  }
  func.func @transform_2(%arg0: i32, %arg1: i32) -> (i32, i32, i32) {
    %c0_i32 = arith.constant 0 : i32
    %c0_i32_0 = arith.constant 0 : i32
    return %arg0, %arg1, %c0_i32 : i32, i32, i32
  }
  func.func @transform_3(%arg0: i32, %arg1: i32) -> (i32, i32, i32) {
    %c0_i32 = arith.constant 0 : i32
    %c0_i32_0 = arith.constant 0 : i32
    %c0_i32_1 = arith.constant 0 : i32
    %c0_i32_2 = arith.constant 0 : i32
    return %c0_i32, %c0_i32_0, %c0_i32_1 : i32, i32, i32
  }
  func.func @transform_4(%arg0: i32, %arg1: i32) -> (i32, i32) {
    %c0_i32 = arith.constant 0 : i32
    %c0_i32_0 = arith.constant 0 : i32
    %c0_i32_1 = arith.constant 0 : i32
    return %c0_i32, %c0_i32_0 : i32, i32
  }
  func.func @transform_5(%arg0: i32, %arg1: i32) -> (i32, i32) {
    %c0_i32 = arith.constant 0 : i32
    %c0_i32_0 = arith.constant 0 : i32
    %c0_i32_1 = arith.constant 0 : i32
    return %c0_i32, %c0_i32_0 : i32, i32
  }
  func.func @transform_6(%arg0: i32, %arg1: i32) -> (i32, i32) {
    %c0_i32 = arith.constant 0 : i32
    %c0_i32_0 = arith.constant 0 : i32
    %c0_i32_1 = arith.constant 0 : i32
    return %c0_i32, %c0_i32_0 : i32, i32
  }
  func.func @transform_7(%arg0: i32, %arg1: i32) -> (i32, i32, i32) {
    %c0_i32 = arith.constant 0 : i32
    %c0_i32_0 = arith.constant 0 : i32
    return %arg0, %arg1, %c0_i32 : i32, i32, i32
  }
}

module attributes {stable_mosaic.version = 11 : i64} {
  func.func @_cmix_kernel(%arg0: i32, %arg1: i32, %arg2: memref<16x32xf32, #tpu.memory_space<vmem>>, %arg3: memref<16x32xf32, #tpu.memory_space<vmem>>, %arg4: memref<1x32xf32, #tpu.memory_space<vmem>>, %arg5: memref<1x32xf32, #tpu.memory_space<vmem>>, %arg6: memref<64x32xbf16, #tpu.memory_space<vmem>>, %arg7: memref<32x64xbf16, #tpu.memory_space<vmem>>, %arg8: memref<32x32xbf16, #tpu.memory_space<vmem>>, %arg9: memref<16x32xf32, #tpu.memory_space<vmem>>, %arg10: memref<16x32xf32, #tpu.memory_space<vmem>>) attributes {dimension_semantics = [#tpu.dimension_semantics<parallel>, #tpu.dimension_semantics<arbitrary>], iteration_bounds = array<i64: 1, 1>, scalar_prefetch = 0 : i64, scratch_operands = 1 : i64, tpu.core_type = #tpu.core_type<tc>, window_params = [{transform_indices = @transform_0, window_bounds = array<i64: 16, 32>}, {transform_indices = @transform_1, window_bounds = array<i64: 16, 32>}, {pipeline_mode = #tpu.pipeline_mode<synchronous>, transform_indices = @transform_2, window_bounds = array<i64: 1, 32>}, {pipeline_mode = #tpu.pipeline_mode<synchronous>, transform_indices = @transform_3, window_bounds = array<i64: 1, 32>}, {transform_indices = @transform_4, window_bounds = array<i64: 64, 32>}, {transform_indices = @transform_5, window_bounds = array<i64: 32, 64>}, {pipeline_mode = #tpu.pipeline_mode<synchronous>, transform_indices = @transform_6, window_bounds = array<i64: 32, 32>}, {transform_indices = @transform_7, window_bounds = array<i64: 16, 32>}]} {
    %c0_i32 = arith.constant 0 : i32
    %0 = arith.cmpi eq, %arg1, %c0_i32 : i32
    %1 = arith.extui %0 : i1 to i32
    %c0_i32_0 = arith.constant 0 : i32
    %2 = arith.cmpi ne, %1, %c0_i32_0 : i32
    scf.if %2 {
      %cst_19 = arith.constant 0.000000e+00 : f32
      %28 = vector.broadcast %cst_19 : f32 to vector<16x32xf32>
      %c0_20 = arith.constant 0 : index
      %c0_21 = arith.constant 0 : index
      %29 = vector.load %arg10[%c0_20, %c0_21] : memref<16x32xf32, #tpu.memory_space<vmem>>, vector<16x32xf32>
      tpu.vector_store %arg10[%c0_20, %c0_21], %28 {strides = array<i32>} : memref<16x32xf32, #tpu.memory_space<vmem>>, vector<16x32xf32>,
    } else {
    }
    %c0 = arith.constant 0 : index
    %c0_1 = arith.constant 0 : index
    %3 = vector.load %arg2[%c0, %c0_1] : memref<16x32xf32, #tpu.memory_space<vmem>>, vector<16x32xf32>
    %c0_2 = arith.constant 0 : index
    %c0_3 = arith.constant 0 : index
    %4 = vector.load %arg3[%c0_2, %c0_3] : memref<16x32xf32, #tpu.memory_space<vmem>>, vector<16x32xf32>
    %c0_4 = arith.constant 0 : index
    %c0_5 = arith.constant 0 : index
    %5 = vector.load %arg4[%c0_4, %c0_5] : memref<1x32xf32, #tpu.memory_space<vmem>>, vector<1x32xf32>
    %6 = vector.broadcast %5 : vector<1x32xf32> to vector<16x32xf32>
    %7 = arith.mulf %3, %6 : vector<16x32xf32>
    %cst = arith.constant 1.000000e+00 : f32
    %8 = vector.broadcast %cst : f32 to vector<1x32xf32>
    %9 = arith.subf %8, %5 : vector<1x32xf32>
    %10 = vector.broadcast %9 : vector<1x32xf32> to vector<16x32xf32>
    %11 = arith.mulf %4, %10 : vector<16x32xf32>
    %12 = arith.addf %7, %11 : vector<16x32xf32>
    %13 = arith.truncf %12 : vector<16x32xf32> to vector<16x32xbf16>
    %c0_6 = arith.constant 0 : index
    %c0_7 = arith.constant 0 : index
    %14 = vector.load %arg6[%c0_6, %c0_7] : memref<64x32xbf16, #tpu.memory_space<vmem>>, vector<64x32xbf16>
    %cst_8 = arith.constant dense<0.000000e+00> : vector<16x64xf32>
    %15 = tpu.matmul %13, %14, %cst_8 {dimension_numbers = #tpu.dot_dimension_numbers<[1], [1], [0], [0], [0, 0, 1, 0], [], []>} : vector<16x32xbf16>, vector<64x32xbf16>, vector<16x64xf32> -> vector<16x64xf32>
    %cst_9 = arith.constant 0.000000e+00 : f32
    %16 = vector.broadcast %cst_9 : f32 to vector<16x64xf32>
    %17 = arith.maximumf %15, %16 : vector<16x64xf32>
    %18 = arith.mulf %17, %17 : vector<16x64xf32>
    %c0_10 = arith.constant 0 : index
    %c0_11 = arith.constant 0 : index
    %19 = vector.load %arg10[%c0_10, %c0_11] : memref<16x32xf32, #tpu.memory_space<vmem>>, vector<16x32xf32>
    %20 = arith.truncf %18 : vector<16x64xf32> to vector<16x64xbf16>
    %c0_12 = arith.constant 0 : index
    %c0_13 = arith.constant 0 : index
    %21 = vector.load %arg7[%c0_12, %c0_13] : memref<32x64xbf16, #tpu.memory_space<vmem>>, vector<32x64xbf16>
    %cst_14 = arith.constant dense<0.000000e+00> : vector<16x32xf32>
    %22 = tpu.matmul %20, %21, %cst_14 {dimension_numbers = #tpu.dot_dimension_numbers<[1], [1], [0], [0], [0, 0, 1, 0], [], []>} : vector<16x64xbf16>, vector<32x64xbf16>, vector<16x32xf32> -> vector<16x32xf32>
    %23 = arith.addf %19, %22 : vector<16x32xf32>
    %c0_15 = arith.constant 0 : index
    %c0_16 = arith.constant 0 : index
    %24 = vector.load %arg10[%c0_15, %c0_16] : memref<16x32xf32, #tpu.memory_space<vmem>>, vector<16x32xf32>
    tpu.vector_store %arg10[%c0_15, %c0_16], %23 {strides = array<i32>} : memref<16x32xf32, #tpu.memory_space<vmem>>, vector<16x32xf32>,
    %c0_i32_17 = arith.constant 0 : i32
    %25 = arith.cmpi eq, %arg1, %c0_i32_17 : i32
    %26 = arith.extui %25 : i1 to i32
    %c0_i32_18 = arith.constant 0 : i32
    %27 = arith.cmpi ne, %26, %c0_i32_18 : i32
    scf.if %27 {
      %c0_19 = arith.constant 0 : index
      %c0_20 = arith.constant 0 : index
      %28 = vector.load %arg5[%c0_19, %c0_20] : memref<1x32xf32, #tpu.memory_space<vmem>>, vector<1x32xf32>
      %29 = vector.broadcast %28 : vector<1x32xf32> to vector<16x32xf32>
      %30 = arith.mulf %3, %29 : vector<16x32xf32>
      %cst_21 = arith.constant 1.000000e+00 : f32
      %31 = vector.broadcast %cst_21 : f32 to vector<1x32xf32>
      %32 = arith.subf %31, %28 : vector<1x32xf32>
      %33 = vector.broadcast %32 : vector<1x32xf32> to vector<16x32xf32>
      %34 = arith.mulf %4, %33 : vector<16x32xf32>
      %35 = arith.addf %30, %34 : vector<16x32xf32>
      %36 = arith.truncf %35 : vector<16x32xf32> to vector<16x32xbf16>
      %c0_22 = arith.constant 0 : index
      %c0_23 = arith.constant 0 : index
      %37 = vector.load %arg8[%c0_22, %c0_23] : memref<32x32xbf16, #tpu.memory_space<vmem>>, vector<32x32xbf16>
      %cst_24 = arith.constant dense<0.000000e+00> : vector<16x32xf32>
      %38 = tpu.matmul %36, %37, %cst_24 {dimension_numbers = #tpu.dot_dimension_numbers<[1], [1], [0], [0], [0, 0, 1, 0], [], []>} : vector<16x32xbf16>, vector<32x32xbf16>, vector<16x32xf32> -> vector<16x32xf32>
      %cst_25 = arith.constant 0.000000e+00 : f32
      %39 = vector.broadcast %cst_25 : f32 to vector<16x32xf32>
      %40 = arith.subf %39, %38 : vector<16x32xf32>
      %41 = math.exp %40 : vector<16x32xf32>
      %cst_26 = arith.constant 1.000000e+00 : f32
      %42 = vector.broadcast %cst_26 : f32 to vector<16x32xf32>
      %43 = arith.addf %42, %41 : vector<16x32xf32>
      %44 = tpu.reciprocal %43 {approx = true} : vector<16x32xf32> -> vector<16x32xf32>
      %c0_27 = arith.constant 0 : index
      %c0_28 = arith.constant 0 : index
      %45 = vector.load %arg10[%c0_27, %c0_28] : memref<16x32xf32, #tpu.memory_space<vmem>>, vector<16x32xf32>
      %46 = arith.mulf %44, %45 : vector<16x32xf32>
      %c0_29 = arith.constant 0 : index
      %c0_30 = arith.constant 0 : index
      %47 = vector.load %arg9[%c0_29, %c0_30] : memref<16x32xf32, #tpu.memory_space<vmem>>, vector<16x32xf32>
      tpu.vector_store %arg9[%c0_29, %c0_30], %46 {strides = array<i32>} : memref<16x32xf32, #tpu.memory_space<vmem>>, vector<16x32xf32>,
    } else {
    }
    return
  }
  func.func @transform_0(%arg0: i32, %arg1: i32) -> (i32, i32) {
    %c0_i32 = arith.constant 0 : i32
    %c0_i32_0 = arith.constant 0 : i32
    return %arg0, %c0_i32 : i32, i32
  }
  func.func @transform_1(%arg0: i32, %arg1: i32) -> (i32, i32) {
    %c0_i32 = arith.constant 0 : i32
    %c0_i32_0 = arith.constant 0 : i32
    return %arg0, %c0_i32 : i32, i32
  }
  func.func @transform_2(%arg0: i32, %arg1: i32) -> (i32, i32) {
    %c0_i32 = arith.constant 0 : i32
    %c0_i32_0 = arith.constant 0 : i32
    %c0_i32_1 = arith.constant 0 : i32
    return %c0_i32, %c0_i32_0 : i32, i32
  }
  func.func @transform_3(%arg0: i32, %arg1: i32) -> (i32, i32) {
    %c0_i32 = arith.constant 0 : i32
    %c0_i32_0 = arith.constant 0 : i32
    %c0_i32_1 = arith.constant 0 : i32
    return %c0_i32, %c0_i32_0 : i32, i32
  }
  func.func @transform_4(%arg0: i32, %arg1: i32) -> (i32, i32) {
    %c0_i32 = arith.constant 0 : i32
    %c0_i32_0 = arith.constant 0 : i32
    return %arg1, %c0_i32 : i32, i32
  }
  func.func @transform_5(%arg0: i32, %arg1: i32) -> (i32, i32) {
    %c0_i32 = arith.constant 0 : i32
    %c0_i32_0 = arith.constant 0 : i32
    return %c0_i32, %arg1 : i32, i32
  }
  func.func @transform_6(%arg0: i32, %arg1: i32) -> (i32, i32) {
    %c0_i32 = arith.constant 0 : i32
    %c0_i32_0 = arith.constant 0 : i32
    %c0_i32_1 = arith.constant 0 : i32
    return %c0_i32, %c0_i32_0 : i32, i32
  }
  func.func @transform_7(%arg0: i32, %arg1: i32) -> (i32, i32) {
    %c0_i32 = arith.constant 0 : i32
    %c0_i32_0 = arith.constant 0 : i32
    return %arg0, %c0_i32 : i32, i32
  }
}

module attributes {stable_mosaic.version = 11 : i64} {
  func.func @_matmul_kernel(%arg0: i32, %arg1: i32, %arg2: i32, %arg3: memref<16x32xf32, #tpu.memory_space<vmem>>, %arg4: memref<48x32xbf16, #tpu.memory_space<vmem>>, %arg5: memref<16x48xf32, #tpu.memory_space<vmem>>, %arg6: memref<16x48xf32, #tpu.memory_space<vmem>>) attributes {dimension_semantics = [#tpu.dimension_semantics<parallel>, #tpu.dimension_semantics<parallel>, #tpu.dimension_semantics<arbitrary>], iteration_bounds = array<i64: 1, 1, 1>, scalar_prefetch = 0 : i64, scratch_operands = 1 : i64, tpu.core_type = #tpu.core_type<tc>, window_params = [{transform_indices = @transform_0, window_bounds = array<i64: 16, 32>}, {transform_indices = @transform_1, window_bounds = array<i64: 48, 32>}, {transform_indices = @transform_2, window_bounds = array<i64: 16, 48>}]} {
    %c0_i32 = arith.constant 0 : i32
    %0 = arith.cmpi eq, %arg2, %c0_i32 : i32
    %1 = arith.extui %0 : i1 to i32
    %c0_i32_0 = arith.constant 0 : i32
    %2 = arith.cmpi ne, %1, %c0_i32_0 : i32
    scf.if %2 {
      %cst_10 = arith.constant 0.000000e+00 : f32
      %13 = vector.broadcast %cst_10 : f32 to vector<16x48xf32>
      %c0_11 = arith.constant 0 : index
      %c0_12 = arith.constant 0 : index
      %14 = vector.load %arg6[%c0_11, %c0_12] : memref<16x48xf32, #tpu.memory_space<vmem>>, vector<16x48xf32>
      tpu.vector_store %arg6[%c0_11, %c0_12], %13 {strides = array<i32>} : memref<16x48xf32, #tpu.memory_space<vmem>>, vector<16x48xf32>,
    } else {
    }
    %c0 = arith.constant 0 : index
    %c0_1 = arith.constant 0 : index
    %3 = vector.load %arg6[%c0, %c0_1] : memref<16x48xf32, #tpu.memory_space<vmem>>, vector<16x48xf32>
    %c0_2 = arith.constant 0 : index
    %c0_3 = arith.constant 0 : index
    %4 = vector.load %arg3[%c0_2, %c0_3] : memref<16x32xf32, #tpu.memory_space<vmem>>, vector<16x32xf32>
    %5 = arith.truncf %4 : vector<16x32xf32> to vector<16x32xbf16>
    %c0_4 = arith.constant 0 : index
    %c0_5 = arith.constant 0 : index
    %6 = vector.load %arg4[%c0_4, %c0_5] : memref<48x32xbf16, #tpu.memory_space<vmem>>, vector<48x32xbf16>
    %cst = arith.constant dense<0.000000e+00> : vector<16x48xf32>
    %7 = tpu.matmul %5, %6, %cst {dimension_numbers = #tpu.dot_dimension_numbers<[1], [1], [0], [0], [0, 0, 1, 0], [], []>} : vector<16x32xbf16>, vector<48x32xbf16>, vector<16x48xf32> -> vector<16x48xf32>
    %8 = arith.addf %3, %7 : vector<16x48xf32>
    %c0_6 = arith.constant 0 : index
    %c0_7 = arith.constant 0 : index
    %9 = vector.load %arg6[%c0_6, %c0_7] : memref<16x48xf32, #tpu.memory_space<vmem>>, vector<16x48xf32>
    tpu.vector_store %arg6[%c0_6, %c0_7], %8 {strides = array<i32>} : memref<16x48xf32, #tpu.memory_space<vmem>>, vector<16x48xf32>,
    %c0_i32_8 = arith.constant 0 : i32
    %10 = arith.cmpi eq, %arg2, %c0_i32_8 : i32
    %11 = arith.extui %10 : i1 to i32
    %c0_i32_9 = arith.constant 0 : i32
    %12 = arith.cmpi ne, %11, %c0_i32_9 : i32
    scf.if %12 {
      %c0_10 = arith.constant 0 : index
      %c0_11 = arith.constant 0 : index
      %13 = vector.load %arg6[%c0_10, %c0_11] : memref<16x48xf32, #tpu.memory_space<vmem>>, vector<16x48xf32>
      %c0_12 = arith.constant 0 : index
      %c0_13 = arith.constant 0 : index
      %14 = vector.load %arg5[%c0_12, %c0_13] : memref<16x48xf32, #tpu.memory_space<vmem>>, vector<16x48xf32>
      tpu.vector_store %arg5[%c0_12, %c0_13], %13 {strides = array<i32>} : memref<16x48xf32, #tpu.memory_space<vmem>>, vector<16x48xf32>,
    } else {
    }
    return
  }
  func.func @transform_0(%arg0: i32, %arg1: i32, %arg2: i32) -> (i32, i32) {
    %c0_i32 = arith.constant 0 : i32
    return %arg0, %arg2 : i32, i32
  }
  func.func @transform_1(%arg0: i32, %arg1: i32, %arg2: i32) -> (i32, i32) {
    %c0_i32 = arith.constant 0 : i32
    return %arg1, %arg2 : i32, i32
  }
  func.func @transform_2(%arg0: i32, %arg1: i32, %arg2: i32) -> (i32, i32) {
    %c0_i32 = arith.constant 0 : i32
    return %arg0, %arg1 : i32, i32
  }
}

</mosaic_0001>

<llo_original>
// kernel: v5tune_forward.11
$region0: #{v5tune_forward.11}
  #allocation0 [shape = 'u32[]', space=smem, size = 0x4, offset = 0x4, fixed_abs, tag = 'smem constant byte address 0x4 - core index']
  #allocation1 [shape = 'u32[144,128]{1,0:T(1,128)}', space=vmem, size = 0x12000, scoped, tag = 'internal scratch']
  #allocation2 [shape = 'f32[16,32]{1,0:T(8,128)}', space=vmem, size = 0x2000, scoped, tag = 'scratch operand']
  %s0 = inlined_call_operand.vmem [shape: f32[16,32], index: 0, kind: input, shape index: {}]
  %s1 = inlined_call_operand.vmem [shape: f32[16,32], index: 1, kind: input, shape index: {}]
  %s2 = inlined_call_operand.vmem [shape: f32[4,1,32], index: 2, kind: input, shape index: {}]
  %s3 = inlined_call_operand.vmem [shape: bf16[4,32,32], index: 3, kind: input, shape index: {}]
  %s4 = inlined_call_operand.vmem [shape: f32[4,16,32], index: 4, kind: output, shape index: {}]
  %s5 = sld [smem:[#allocation0]]
  $region57: #{v5tune_forward.11} parent=0
    _
  %s7 = ssub.s32 1, %s5
  %s8 = scalar_select 0, %s7, %s5
  loop: start=0, step=1, limit=6
  $region2: #{v5tune_forward.11} parent=0 // loop_pre_header
    _
  $region3: #{v5tune_forward.11} parent=0 // loop_header
    %s10 = sphi 0, %s14
    %p11 = scmp.ge.s32.totalorder %s10, 6
    %s17 = sphi 0, %s43
    %s18 = sphi 0, %s39
    %s19 = sphi 0, %s35
    %s20 = sphi 0, %s31
    %s21 = sphi 0, %s17
    %s22 = sphi 0, %s18
    %s23 = sphi 0, %s19
    %s24 = sphi 0, %s20
    %s25 = sphi 0, %s21
    %s26 = sphi 0, %s22
    %s27 = sphi 0, %s23
    %s28 = sphi 0, %s24
    %s48 = sphi 0, %s50
    %s51 = sphi 0, %s48
    %s52 = sphi 0, %s51
    %s68 = sphi 0, %s52
    %s76 = sphi 0, %s78
    %s79 = sphi 0, %s76
    %s80 = sphi 0, %s79
    %s96 = sphi 0, %s80
    %s104 = sphi 0, %s106
    %s107 = sphi 0, %s104
    %s108 = sphi 0, %s107
    %s124 = sphi 0, %s108
    %s134 = sphi 0, %s136
    %s137 = sphi 0, %s134
    %s138 = sphi 0, %s137
    %s154 = sphi 0, %s138
    %s164 = sphi 0, %s166
    %s167 = sphi 0, %s164
    %s168 = sphi 0, %s167
    %s184 = sphi 0, %s168
  $region4: #{v5tune_forward.11} parent=0 // loop_header_branch
    %13 = sbr.rel (%p11) target = $region8
  $region5: #{v5tune_forward.11} parent=0 // loop_body
    %s15 = ssub.s32 %s10, 1
    %s16 = ssub.s32 %s10, 2
    %s29 = sadd.s32 1, %s20
    %p30 = scmp.ge.s32.totalorder %s29, 1
    %s31 = scalar_select %p30, 0, %s29
    %s32 = sadd.s32 1, %s19
    %s33 = scalar_select %p30, %s32, %s19
    %p34 = scmp.ge.s32.totalorder %s33, 1
    %s35 = scalar_select %p34, 0, %s33
    %s36 = sadd.s32 1, %s18
    %s37 = scalar_select %p34, %s36, %s18
    %p38 = scmp.ge.s32.totalorder %s37, 1
    %s39 = scalar_select %p38, 0, %s37
    %s40 = sadd.s32 1, %s17
    %s41 = scalar_select %p38, %s40, %s17
    %p42 = scmp.ge.s32.totalorder %s41, 4
    %s43 = scalar_select %p42, 0, %s41
    %s44 = ssub.s32 %s18, %s39
    %s45 = ssub.s32 %s20, %s31
    %s46 = sor.u32 %s44, %s45
    %p47 = scmp.eq.s32.totalorder %s46, 0
    %s49 = sadd.s32 %s48, 1
    %s50 = scalar_select %p47, %s48, %s49
    %p53 = pneg %p47
    %p54 = scmp.eq.s32.totalorder %s10, 3
    %p55 = por %p53, %p54
    %p56 = scmp.ne.s32.totalorder %s48, %s51
    %p57 = scmp.eq.s32.totalorder %s10, 0
    %p58 = por %p56, %p57
    %p59 = scmp.ne.s32.totalorder %s48, %s51
    %p60 = scmp.eq.s32.totalorder %s15, 3
    %p61 = por %p59, %p60
    %p62 = scmp.ne.s32.totalorder %s51, %s52
    %p63 = scmp.eq.s32.totalorder %s15, 0
    %p64 = por %p62, %p63
    %p65 = scmp.ne.s32.totalorder %s51, %s52
    %p66 = scmp.eq.s32.totalorder %s16, 3
    %p67 = por %p65, %p66
    %p69 = scmp.ne.s32.totalorder %s52, %s68
    %p70 = scmp.eq.s32.totalorder %s16, 0
    %p71 = por %p69, %p70
    %s72 = ssub.s32 %s18, %s39
    %s73 = ssub.s32 %s20, %s31
    %s74 = sor.u32 %s72, %s73
    %p75 = scmp.eq.s32.totalorder %s74, 0
    %s77 = sadd.s32 %s76, 1
    %s78 = scalar_select %p75, %s76, %s77
    %p81 = pneg %p75
    %p82 = scmp.eq.s32.totalorder %s10, 3
    %p83 = por %p81, %p82
    %p84 = scmp.ne.s32.totalorder %s76, %s79
    %p85 = scmp.eq.s32.totalorder %s10, 0
    %p86 = por %p84, %p85
    %p87 = scmp.ne.s32.totalorder %s76, %s79
    %p88 = scmp.eq.s32.totalorder %s15, 3
    %p89 = por %p87, %p88
    %p90 = scmp.ne.s32.totalorder %s79, %s80
    %p91 = scmp.eq.s32.totalorder %s15, 0
    %p92 = por %p90, %p91
    %p93 = scmp.ne.s32.totalorder %s79, %s80
    %p94 = scmp.eq.s32.totalorder %s16, 3
    %p95 = por %p93, %p94
    %p97 = scmp.ne.s32.totalorder %s80, %s96
    %p98 = scmp.eq.s32.totalorder %s16, 0
    %p99 = por %p97, %p98
    %s100 = ssub.s32 %s17, %s43
    %s101 = ssub.s32 %s20, %s31
    %s102 = sor.u32 %s100, %s101
    %p103 = scmp.eq.s32.totalorder %s102, 0
    %s105 = sadd.s32 %s104, 1
    %s106 = scalar_select %p103, %s104, %s105
    %p109 = pneg %p103
    %p110 = scmp.eq.s32.totalorder %s10, 3
    %p111 = por %p109, %p110
    %p112 = scmp.ne.s32.totalorder %s104, %s107
    %p113 = scmp.eq.s32.totalorder %s10, 0
    %p114 = por %p112, %p113
    %p115 = scmp.ne.s32.totalorder %s104, %s107
    %p116 = scmp.eq.s32.totalorder %s15, 3
    %p117 = por %p115, %p116
    %p118 = scmp.ne.s32.totalorder %s107, %s108
    %p119 = scmp.eq.s32.totalorder %s15, 0
    %p120 = por %p118, %p119
    %p121 = scmp.ne.s32.totalorder %s107, %s108
    %p122 = scmp.eq.s32.totalorder %s16, 3
    %p123 = por %p121, %p122
    %p125 = scmp.ne.s32.totalorder %s108, %s124
    %p126 = scmp.eq.s32.totalorder %s16, 0
    %p127 = por %p125, %p126
    %s128 = ssub.s32 %s17, %s43
    %s129 = ssub.s32 %s19, %s35
    %s130 = sor.u32 %s128, %s129
    %s131 = ssub.s32 %s20, %s31
    %s132 = sor.u32 %s130, %s131
    %p133 = scmp.eq.s32.totalorder %s132, 0
    %s135 = sadd.s32 %s134, 1
    %s136 = scalar_select %p133, %s134, %s135
    %p139 = pneg %p133
    %p140 = scmp.eq.s32.totalorder %s10, 3
    %p141 = por %p139, %p140
    %p142 = scmp.ne.s32.totalorder %s134, %s137
    %p143 = scmp.eq.s32.totalorder %s10, 0
    %p144 = por %p142, %p143
    %p145 = scmp.ne.s32.totalorder %s134, %s137
    %p146 = scmp.eq.s32.totalorder %s15, 3
    %p147 = por %p145, %p146
    %p148 = scmp.ne.s32.totalorder %s137, %s138
    %p149 = scmp.eq.s32.totalorder %s15, 0
    %p150 = por %p148, %p149
    %p151 = scmp.ne.s32.totalorder %s137, %s138
    %p152 = scmp.eq.s32.totalorder %s16, 3
    %p153 = por %p151, %p152
    %p155 = scmp.ne.s32.totalorder %s138, %s154
    %p156 = scmp.eq.s32.totalorder %s16, 0
    %p157 = por %p155, %p156
    %s158 = ssub.s32 %s17, %s43
    %s159 = ssub.s32 %s18, %s39
    %s160 = sor.u32 %s158, %s159
    %s161 = ssub.s32 %s19, %s35
    %s162 = sor.u32 %s160, %s161
    %p163 = scmp.eq.s32.totalorder %s162, 0
    %s165 = sadd.s32 %s164, 1
    %s166 = scalar_select %p163, %s164, %s165
    %p169 = pneg %p163
    %p170 = scmp.eq.s32.totalorder %s10, 3
    %p171 = por %p169, %p170
    %p172 = scmp.ne.s32.totalorder %s164, %s167
    %p173 = scmp.eq.s32.totalorder %s10, 0
    %p174 = por %p172, %p173
    %p175 = scmp.ne.s32.totalorder %s164, %s167
    %p176 = scmp.eq.s32.totalorder %s15, 3
    %p177 = por %p175, %p176
    %p178 = scmp.ne.s32.totalorder %s167, %s168
    %p179 = scmp.eq.s32.totalorder %s15, 0
    %p180 = por %p178, %p179
    %p181 = scmp.ne.s32.totalorder %s167, %s168
    %p182 = scmp.eq.s32.totalorder %s16, 3
    %p183 = por %p181, %p182
    %p185 = scmp.ne.s32.totalorder %s168, %s184
    %p186 = scmp.eq.s32.totalorder %s16, 0
    %p187 = por %p185, %p186
    %p188 = scmp.le.s32.totalorder 1, %s10
    %p189 = scmp.lt.s32.totalorder %s10, 5
    %p190 = pnand %p188, %p189
    %p191 = pneg %p190
    // Predicated region
    $region9: #{v5tune_forward.11} parent=5 // pred_check
      _
    $region10: #{v5tune_forward.11} parent=5 // pred_check_branch
      %193 = sbr.rel (%p190) target = $region12
    $region11: #{v5tune_forward.11} parent=5 // pred_region
      %s194 = ssub.s32 %s10, 1
      // Predicated region
      $region13: #{v5tune_forward.11} parent=11 // pred_check
        %p195 = pneg %p64
      $region14: #{v5tune_forward.11} parent=11 // pred_check_branch
        %197 = sbr.rel (%p195) target = $region16
      $region15: #{v5tune_forward.11} parent=11 // pred_region
        %s198 = smul.u32 2, %s22
        %p199 = scmp.lt.s32.totalorder %s198, 1
        %s200 = scalar_select %p199, %s198, 1
        %p201 = scmp.lt.s32.totalorder %s24, 0
        %s202 = scalar_select %p201, %s24, 0
        %s203 = sadd.s32 %s202, %s200
        %s204 = smul.addr %s203, 8
        %s205 = scalar_lea.vmem %s0, %s204
        %s206 = smul.u32 2, %s22
      $region16: #{v5tune_forward.11} parent=11 // pred_fallthru
        _
      // Predicated region
      $region17: #{v5tune_forward.11} parent=11 // pred_check
        %p207 = pneg %p92
      $region18: #{v5tune_forward.11} parent=11 // pred_check_branch
        %209 = sbr.rel (%p207) target = $region20
      $region19: #{v5tune_forward.11} parent=11 // pred_region
        %s210 = smul.u32 2, %s22
        %p211 = scmp.lt.s32.totalorder %s210, 1
        %s212 = scalar_select %p211, %s210, 1
        %p213 = scmp.lt.s32.totalorder %s24, 0
        %s214 = scalar_select %p213, %s24, 0
        %s215 = sadd.s32 %s214, %s212
        %s216 = smul.addr %s215, 8
        %s217 = scalar_lea.vmem %s1, %s216
        %s218 = smul.u32 2, %s22
      $region20: #{v5tune_forward.11} parent=11 // pred_fallthru
        _
    $region12: #{v5tune_forward.11} parent=5 // pred_fallthru
      _
    %p219 = scmp.lt.s32.totalorder %s10, 4
    // Predicated region
    $region21: #{v5tune_forward.11} parent=5 // pred_check
      %p220 = pneg %p219
    $region22: #{v5tune_forward.11} parent=5 // pred_check_branch
      %222 = sbr.rel (%p220) target = $region24
    $region23: #{v5tune_forward.11} parent=5 // pred_region
      // Predicated region
      $region25: #{v5tune_forward.11} parent=23 // pred_check
        %p223 = pneg %p114
      $region26: #{v5tune_forward.11} parent=23 // pred_check_branch
        %225 = sbr.rel (%p223) target = $region28
      $region27: #{v5tune_forward.11} parent=23 // pred_region
        %p226 = scmp.lt.s32.totalorder %s17, 3
        %s227 = scalar_select %p226, %s17, 3
        %p228 = scmp.lt.s32.totalorder %s20, 0
        %s229 = scalar_select %p228, %s20, 0
        %s230 = sadd.s32 %s229, %s227
        %s231 = scalar_lea.vmem %s2, %s230
      $region28: #{v5tune_forward.11} parent=23 // pred_fallthru
        _
      // Predicated region
      $region29: #{v5tune_forward.11} parent=23 // pred_check
        %p232 = pneg %p144
      $region30: #{v5tune_forward.11} parent=23 // pred_check_branch
        %234 = sbr.rel (%p232) target = $region32
      $region31: #{v5tune_forward.11} parent=23 // pred_region
        %s235 = smul.u32 4, %s19
        %p236 = scmp.lt.s32.totalorder %s17, 3
        %s237 = scalar_select %p236, %s17, 3
        %p238 = scmp.lt.s32.totalorder %s235, 3
        %s239 = scalar_select %p238, %s235, 3
        %p240 = scmp.lt.s32.totalorder %s20, 0
        %s241 = scalar_select %p240, %s20, 0
        %s242 = sadd.s32 %s241, %s239
        %s243 = smul.addr %s237, 4
        %s244 = sadd.s32 %s242, %s243
        %s245 = smul.addr %s244, 4
        %s246 = scalar_lea.vmem %s3, %s245
        %s247 = smul.u32 4, %s19
      $region32: #{v5tune_forward.11} parent=23 // pred_fallthru
        _
    $region24: #{v5tune_forward.11} parent=5 // pred_fallthru
      _
    %p248 = scmp.le.s32.totalorder 1, %s10
    %p249 = scmp.lt.s32.totalorder %s10, 5
    %p250 = pnand %p248, %p249
    %p251 = pneg %p250
    // Predicated region
    $region33: #{v5tune_forward.11} parent=5 // pred_check
      _
    $region34: #{v5tune_forward.11} parent=5 // pred_check_branch
      %253 = sbr.rel (%p250) target = $region36
    $region35: #{v5tune_forward.11} parent=5 // pred_region
      %s254 = ssub.s32 %s10, 1
      %s255 = smul.u32 2, %s22
      %p256 = scmp.lt.s32.totalorder %s255, 1
      %s257 = scalar_select %p256, %s255, 1
      %p258 = scmp.lt.s32.totalorder %s24, 0
      %s259 = scalar_select %p258, %s24, 0
      %s260 = sadd.s32 %s259, %s257
      %s261 = smul.addr %s260, 8
      %s262 = scalar_lea.vmem %s0, %s261
      %p263 = pneg %p64
      %p264 = pneg %p61
      %s265 = smul.u32 2, %s22
      %p266 = scmp.lt.s32.totalorder %s265, 1
      %s267 = scalar_select %p266, %s265, 1
      %p268 = scmp.lt.s32.totalorder %s24, 0
      %s269 = scalar_select %p268, %s24, 0
      %s270 = sadd.s32 %s269, %s267
      %s271 = smul.addr %s270, 8
      %s272 = scalar_lea.vmem %s1, %s271
      %p273 = pneg %p92
      %p274 = pneg %p89
      %p275 = scmp.lt.s32.totalorder %s21, 3
      %s276 = scalar_select %p275, %s21, 3
      %p277 = scmp.lt.s32.totalorder %s24, 0
      %s278 = scalar_select %p277, %s24, 0
      %s279 = sadd.s32 %s278, %s276
      %s280 = scalar_lea.vmem %s2, %s279
      %p281 = pneg %p120
      %p282 = pneg %p117
      %s283 = smul.u32 4, %s23
      %p284 = scmp.lt.s32.totalorder %s21, 3
      %s285 = scalar_select %p284, %s21, 3
      %p286 = scmp.lt.s32.totalorder %s283, 3
      %s287 = scalar_select %p286, %s283, 3
      %p288 = scmp.lt.s32.totalorder %s24, 0
      %s289 = scalar_select %p288, %s24, 0
      %s290 = sadd.s32 %s289, %s287
      %s291 = smul.addr %s285, 4
      %s292 = sadd.s32 %s290, %s291
      %s293 = smul.addr %s292, 4
      %s294 = scalar_lea.vmem %s3, %s293
      %p295 = pneg %p150
      %p296 = pneg %p147
      %p297 = pneg %p180
      %p298 = pneg %p177
      %s299 = smul.u32 2, %s22
      %p300 = scmp.lt.s32.totalorder %s21, 3
      %s301 = scalar_select %p300, %s21, 3
      %p302 = scmp.lt.s32.totalorder %s299, 1
      %s303 = scalar_select %p302, %s299, 1
      %p304 = scmp.lt.s32.totalorder %s23, 0
      %s305 = scalar_select %p304, %s23, 0
      %s306 = sadd.s32 %s305, %s303
      %s307 = smul.addr %s301, 2
      %s308 = sadd.s32 %s306, %s307
      %s309 = smul.addr %s308, 8
      %s310 = scalar_lea.vmem %s4, %s309
      %s311 = smul.u32 2, %s22
      %p312 = scmp.lt.s32.totalorder %s311, 1
      %s313 = scalar_select %p312, %s311, 1
      %p314 = scmp.lt.s32.totalorder %s24, 0
      %s315 = scalar_select %p314, %s24, 0
      %s316 = sadd.s32 %s315, %s313
      %s317 = smul.addr %s316, 8
      %s318 = scalar_lea.vmem %s0, %s317
      %s319 = smul.u32 2, %s22
      %s320 = smul.u32 2, %s22
      %p321 = scmp.lt.s32.totalorder %s320, 1
      %s322 = scalar_select %p321, %s320, 1
      %p323 = scmp.lt.s32.totalorder %s24, 0
      %s324 = scalar_select %p323, %s24, 0
      %s325 = sadd.s32 %s324, %s322
      %s326 = smul.addr %s325, 8
      %s327 = scalar_lea.vmem %s1, %s326
      %s328 = smul.u32 2, %s22
      %p329 = scmp.lt.s32.totalorder %s21, 3
      %s330 = scalar_select %p329, %s21, 3
      %p331 = scmp.lt.s32.totalorder %s24, 0
      %s332 = scalar_select %p331, %s24, 0
      %s333 = sadd.s32 %s332, %s330
      %s334 = scalar_lea.vmem %s2, %s333
      %s335 = smul.u32 4, %s23
      %p336 = scmp.lt.s32.totalorder %s21, 3
      %s337 = scalar_select %p336, %s21, 3
      %p338 = scmp.lt.s32.totalorder %s335, 3
      %s339 = scalar_select %p338, %s335, 3
      %p340 = scmp.lt.s32.totalorder %s24, 0
      %s341 = scalar_select %p340, %s24, 0
      %s342 = sadd.s32 %s341, %s339
      %s343 = smul.addr %s337, 4
      %s344 = sadd.s32 %s342, %s343
      %s345 = smul.addr %s344, 4
      %s346 = scalar_lea.vmem %s3, %s345
      %s347 = smul.u32 4, %s23
      %s348 = smul.u32 2, %s22
      %p349 = scmp.lt.s32.totalorder %s21, 3
      %s350 = scalar_select %p349, %s21, 3
      %p351 = scmp.lt.s32.totalorder %s348, 1
      %s352 = scalar_select %p351, %s348, 1
      %p353 = scmp.lt.s32.totalorder %s23, 0
      %s354 = scalar_select %p353, %s23, 0
      %s355 = sadd.s32 %s354, %s352
      %s356 = smul.addr %s350, 2
      %s357 = sadd.s32 %s355, %s356
      %s358 = smul.addr %s357, 8
      %s359 = scalar_lea.vmem %s4, %s358
      %s360 = smul.u32 2, %s22
      %p362 = scmp.eq.s32.totalorder %s24, 0
      // Predicated region
      $region37: #{v5tune_forward.11} parent=35 // pred_check
        %p363 = pneg %p362
      $region38: #{v5tune_forward.11} parent=35 // pred_check_branch
        %365 = sbr.rel (%p363) target = $region40
      $region39: #{v5tune_forward.11} parent=35 // pred_region
        %vm366 = vcmask 261120
        %367 = vst.msk [vmem:[#allocation2] sm:$0xff] %vm366, 0.0
        %368 = vst.msk [vmem:[#allocation2 + $0x8] sm:$0xff] %vm366, 0.0
      $region40: #{v5tune_forward.11} parent=35 // pred_fallthru
        _
      %v369 = vld [vmem:[%s334] sm:$0x1]
      %v370 = vld [vmem:[%s318] sm:$0xff]
      %v371 = vld [vmem:[%s318 + $0x8] sm:$0xff]
      %v373 = vlaneseq
      %v374 = vshrl.u32 %v373, 7
      %v375 = vsub.s32 0, %v374
      %v376 = vrot.slane %v369, %v375
      %v378 = vmul.f32 %v370, %v376
      %v379 = vmul.f32 %v371, %v376
      %v380 = vld [vmem:[%s327] sm:$0xff]
      %v381 = vld [vmem:[%s327 + $0x8] sm:$0xff]
      %v382 = vsub.f32 1.0, %v369
      %v384 = vlaneseq
      %v385 = vshrl.u32 %v384, 7
      %v386 = vsub.s32 0, %v385
      %v387 = vrot.slane %v382, %v386
      %v389 = vmul.f32 %v380, %v387
      %v390 = vmul.f32 %v381, %v387
      %v391 = vadd.f32 %v378, %v389
      %v392 = vadd.f32 %v379, %v390
      %v393 = vld [vmem:[#allocation2] sm:$0xff]
      %v394 = vld [vmem:[#allocation2 + $0x8] sm:$0xff]
      %v395 = vpack.c.bf16 %v392, %v391
      %v396 = vld [vmem:[%s346] sm:$0xf]
      %v397 = vld [vmem:[%s346 + $0x4] sm:$0xf]
      %v398 = vld [vmem:[%s346 + $0x8] sm:$0xf]
      %v399 = vld [vmem:[%s346 + $0xc] sm:$0xf]
      %v404 = vunpack.c.l.b16 %v396
      %v405 = vunpack.c.l.b16 %v397
      %v406 = vunpack.c.l.b16 %v398
      %v407 = vunpack.c.l.b16 %v399
      %v408 = vpack.c.b16 %v405, %v404
      %v409 = vpack.c.b16 %v407, %v406
      %vm410 = vcmask 261120
      %v412 = vsel %vm410, %v395, 0
      %v415 = vsel %vm410, %v408, 0
      %v418 = vsel %vm410, %v409, 0
      %420 = vmatprep.subr.bf16.mxu0 0
      %421 = vmatpush1.bf16.xpose.msra.mxu0 %v415
      %422 = vmatprep.subr.bf16.mxu0 0
      %423 = vmatpush1.bf16.xpose.msra.mxu0 %v418
      %424 = vmatprep.subr.bf16.mxu0 0
      %425 = vmatpush1.bf16.xpose.msra.mxu0 0
      %426 = vmatprep.subr.bf16.mxu0 0
      %427 = vmatpush1.bf16.xpose.msra.mxu0 0
      %428 = vmatprep.subr.bf16.mxu0 0
      %429 = vmatpush1.bf16.xpose.msra.mxu0 0
      %430 = vmatprep.subr.bf16.mxu0 0
      %431 = vmatpush1.bf16.xpose.msra.mxu0 0
      %432 = vmatprep.subr.bf16.mxu0 0
      %433 = vmatpush1.bf16.xpose.msra.mxu0 0
      %434 = vmatprep.subr.bf16.mxu0 0
      %435 = vmatpush1.bf16.xpose.msra.mxu0 0
      %436 = vmatprep.subr.bf16.mxu0 0
      %437 = vmatpush1.bf16.xpose.msra.mxu0 0
      %438 = vmatprep.subr.bf16.mxu0 0
      %439 = vmatpush1.bf16.xpose.msra.mxu0 0
      %440 = vmatprep.subr.bf16.mxu0 0
      %441 = vmatpush1.bf16.xpose.msra.mxu0 0
      %442 = vmatprep.subr.bf16.mxu0 0
      %443 = vmatpush1.bf16.xpose.msra.mxu0 0
      %444 = vmatprep.subr.bf16.mxu0 0
      %445 = vmatpush1.bf16.xpose.msra.mxu0 0
      %446 = vmatprep.subr.bf16.mxu0 0
      %447 = vmatpush1.bf16.xpose.msra.mxu0 0
      %448 = vmatprep.subr.bf16.mxu0 0
      %449 = vmatpush1.bf16.xpose.msra.mxu0 0
      %450 = vmatprep.subr.bf16.mxu0 0
      %451 = vmatpush1.bf16.xpose.msra.mxu0 0
      %452 = vmatprep.mubr.bf16.mxu0 0
      %453 = vmatmul.mubr.bf16.gmra.mrb[0].mxu0 %v412
      %v454 = vpop.f32.mrb[0].mxu0
      %v455 = vadd.f32 0.0, %v454
      %v456 = vpop.f32.mrb[0].mxu0
      %v457 = vpop.f32.mrb[0].mxu0
      %v458 = vadd.f32 0.0, %v457
      %v459 = vpop.f32.mrb[0].mxu0
      %460 = vdwg.mxu0
      %v461 = vadd.f32 %v393, %v455
      %v462 = vadd.f32 %v394, %v458
      %463 = vst.msk [vmem:[#allocation2] sm:$0xff] %vm410, %v461
      %464 = vst.msk [vmem:[#allocation2 + $0x8] sm:$0xff] %vm410, %v462
      // Predicated region
      $region41: #{v5tune_forward.11} parent=35 // pred_check
        %p465 = pneg %p362
      $region42: #{v5tune_forward.11} parent=35 // pred_check_branch
        %467 = sbr.rel (%p465) target = $region44
      $region43: #{v5tune_forward.11} parent=35 // pred_region
        %v468 = vld [vmem:[#allocation2] sm:$0xff]
        %v469 = vld [vmem:[#allocation2 + $0x8] sm:$0xff]
        %470 = vst.msk [vmem:[%s359] sm:$0xff] %vm410, %v468
        %471 = vst.msk [vmem:[%s359 + $0x8] sm:$0xff] %vm410, %v469
      $region44: #{v5tune_forward.11} parent=35 // pred_fallthru
        _
      %s472 = smul.u32 2, %s22
      %p473 = scmp.lt.s32.totalorder %s21, 3
      %s474 = scalar_select %p473, %s21, 3
      %p475 = scmp.lt.s32.totalorder %s472, 1
      %s476 = scalar_select %p475, %s472, 1
      %p477 = scmp.lt.s32.totalorder %s23, 0
      %s478 = scalar_select %p477, %s23, 0
      %s479 = sadd.s32 %s478, %s476
      %s480 = smul.addr %s474, 2
      %s481 = sadd.s32 %s479, %s480
      %s482 = smul.addr %s481, 8
      %s483 = scalar_lea.vmem %s4, %s482
      // Predicated region
      $region45: #{v5tune_forward.11} parent=35 // pred_check
        %p484 = pneg %p177
      $region46: #{v5tune_forward.11} parent=35 // pred_check_branch
        %486 = sbr.rel (%p484) target = $region48
      $region47: #{v5tune_forward.11} parent=35 // pred_region
        %s487 = smul.u32 2, %s22
      $region48: #{v5tune_forward.11} parent=35 // pred_fallthru
        _
    $region36: #{v5tune_forward.11} parent=5 // pred_fallthru
      _
    %p488 = scmp.le.s32.totalorder 2, %s10
    // Predicated region
    $region49: #{v5tune_forward.11} parent=5 // pred_check
      %p489 = pneg %p488
    $region50: #{v5tune_forward.11} parent=5 // pred_check_branch
      %491 = sbr.rel (%p489) target = $region52
    $region51: #{v5tune_forward.11} parent=5 // pred_region
      %s492 = ssub.s32 %s10, 2
      // Predicated region
      $region53: #{v5tune_forward.11} parent=51 // pred_check
        %p493 = pneg %p183
      $region54: #{v5tune_forward.11} parent=51 // pred_check_branch
        %495 = sbr.rel (%p493) target = $region56
      $region55: #{v5tune_forward.11} parent=51 // pred_region
        %s496 = smul.u32 2, %s26
        %p497 = scmp.lt.s32.totalorder %s25, 3
        %s498 = scalar_select %p497, %s25, 3
        %p499 = scmp.lt.s32.totalorder %s496, 1
        %s500 = scalar_select %p499, %s496, 1
        %p501 = scmp.lt.s32.totalorder %s27, 0
        %s502 = scalar_select %p501, %s27, 0
        %s503 = sadd.s32 %s502, %s500
        %s504 = smul.addr %s498, 2
        %s505 = sadd.s32 %s503, %s504
        %s506 = smul.addr %s505, 8
        %s507 = scalar_lea.vmem %s4, %s506
      $region56: #{v5tune_forward.11} parent=51 // pred_fallthru
        _
    $region52: #{v5tune_forward.11} parent=5 // pred_fallthru
      _
  $region6: #{v5tune_forward.11} parent=0 // loop_footer
    %s14 = sadd.s32 1, %s10
  $region7: #{v5tune_forward.11} parent=0 // loop_footer_branch
    %9 = sbr.rel target = $region3
  $region8: #{v5tune_forward.11} parent=0 // loop_exit
    _

// kernel: v5tune_forward.14
$region0: #{v5tune_forward.14}
  #allocation0 [shape = 'u32[]', space=smem, size = 0x4, offset = 0x4, fixed_abs, tag = 'smem constant byte address 0x4 - core index']
  #allocation1 [shape = 'u32[144,128]{1,0:T(1,128)}', space=vmem, size = 0x12000, scoped, tag = 'internal scratch']
  #allocation2 [shape = 'f32[16,32]{1,0:T(8,128)}', space=vmem, size = 0x2000, scoped, tag = 'scratch operand']
  %s0 = inlined_call_operand.vmem [shape: bf16[16,32], index: 0, kind: input, shape index: {}]
  %s1 = inlined_call_operand.vmem [shape: bf16[32,32], index: 1, kind: input, shape index: {}]
  %s2 = inlined_call_operand.vmem [shape: f32[16,32], index: 2, kind: output, shape index: {}]
  %s3 = sld [smem:[#allocation0]]
  $region26: #{v5tune_forward.14} parent=0
    _
  %s5 = ssub.s32 1, %s3
  %s6 = scalar_select 0, %s5, %s3
  // Predicated region
  $region2: #{v5tune_forward.14} parent=0 // pred_check
    _
  $region3: #{v5tune_forward.14} parent=0 // pred_check_branch
    %8 = sbr.rel (0) target = $region5
  $region4: #{v5tune_forward.14} parent=0 // pred_region
    _
  $region5: #{v5tune_forward.14} parent=0 // pred_fallthru
    _
  // Predicated region
  $region6: #{v5tune_forward.14} parent=0 // pred_check
    _
  $region7: #{v5tune_forward.14} parent=0 // pred_check_branch
    %10 = sbr.rel (0) target = $region9
  $region8: #{v5tune_forward.14} parent=0 // pred_region
    _
  $region9: #{v5tune_forward.14} parent=0 // pred_fallthru
    _
  %p12 = scmp.eq.s32.totalorder 0, 0
  // Predicated region
  $region10: #{v5tune_forward.14} parent=0 // pred_check
    %p13 = pneg %p12
  $region11: #{v5tune_forward.14} parent=0 // pred_check_branch
    %15 = sbr.rel (%p13) target = $region13
  $region12: #{v5tune_forward.14} parent=0 // pred_region
    %vm16 = vcmask 261120
    %17 = vst.msk [vmem:[#allocation2] sm:$0xff] %vm16, 0.0
    %18 = vst.msk [vmem:[#allocation2 + $0x8] sm:$0xff] %vm16, 0.0
  $region13: #{v5tune_forward.14} parent=0 // pred_fallthru
    _
  %v19 = vld [vmem:[#allocation2] sm:$0xff]
  %v20 = vld [vmem:[#allocation2 + $0x8] sm:$0xff]
  %v21 = vld [vmem:[%s0] sm:$0xf]
  %v22 = vld [vmem:[%s0 + $0x4] sm:$0xf]
  %v23 = vld [vmem:[%s1] sm:$0xf]
  %v24 = vld [vmem:[%s1 + $0x4] sm:$0xf]
  %v25 = vld [vmem:[%s1 + $0x8] sm:$0xf]
  %v26 = vld [vmem:[%s1 + $0xc] sm:$0xf]
  %v29 = vunpack.c.l.b16 %v21
  %v30 = vunpack.c.l.b16 %v22
  %v31 = vpack.c.b16 %v30, %v29
  %v36 = vunpack.c.l.b16 %v23
  %v37 = vunpack.c.l.b16 %v24
  %v38 = vunpack.c.l.b16 %v25
  %v39 = vunpack.c.l.b16 %v26
  %v40 = vpack.c.b16 %v37, %v36
  %v41 = vpack.c.b16 %v39, %v38
  %vm42 = vcmask 261120
  %v44 = vsel %vm42, %v31, 0
  %v47 = vsel %vm42, %v40, 0
  %v50 = vsel %vm42, %v41, 0
  %52 = vmatprep.subr.bf16.mxu0 0
  %53 = vmatpush1.bf16.xpose.msra.mxu0 %v47
  %54 = vmatprep.subr.bf16.mxu0 0
  %55 = vmatpush1.bf16.xpose.msra.mxu0 %v50
  %56 = vmatprep.subr.bf16.mxu0 0
  %57 = vmatpush1.bf16.xpose.msra.mxu0 0
  %58 = vmatprep.subr.bf16.mxu0 0
  %59 = vmatpush1.bf16.xpose.msra.mxu0 0
  %60 = vmatprep.subr.bf16.mxu0 0
  %61 = vmatpush1.bf16.xpose.msra.mxu0 0
  %62 = vmatprep.subr.bf16.mxu0 0
  %63 = vmatpush1.bf16.xpose.msra.mxu0 0
  %64 = vmatprep.subr.bf16.mxu0 0
  %65 = vmatpush1.bf16.xpose.msra.mxu0 0
  %66 = vmatprep.subr.bf16.mxu0 0
  %67 = vmatpush1.bf16.xpose.msra.mxu0 0
  %68 = vmatprep.subr.bf16.mxu0 0
  %69 = vmatpush1.bf16.xpose.msra.mxu0 0
  %70 = vmatprep.subr.bf16.mxu0 0
  %71 = vmatpush1.bf16.xpose.msra.mxu0 0
  %72 = vmatprep.subr.bf16.mxu0 0
  %73 = vmatpush1.bf16.xpose.msra.mxu0 0
  %74 = vmatprep.subr.bf16.mxu0 0
  %75 = vmatpush1.bf16.xpose.msra.mxu0 0
  %76 = vmatprep.subr.bf16.mxu0 0
  %77 = vmatpush1.bf16.xpose.msra.mxu0 0
  %78 = vmatprep.subr.bf16.mxu0 0
  %79 = vmatpush1.bf16.xpose.msra.mxu0 0
  %80 = vmatprep.subr.bf16.mxu0 0
  %81 = vmatpush1.bf16.xpose.msra.mxu0 0
  %82 = vmatprep.subr.bf16.mxu0 0
  %83 = vmatpush1.bf16.xpose.msra.mxu0 0
  %84 = vmatprep.mubr.bf16.mxu0 0
  %85 = vmatmul.mubr.bf16.gmra.mrb[0].mxu0 %v44
  %v86 = vpop.f32.mrb[0].mxu0
  %v87 = vadd.f32 0.0, %v86
  %v88 = vpop.f32.mrb[0].mxu0
  %v89 = vpop.f32.mrb[0].mxu0
  %v90 = vadd.f32 0.0, %v89
  %v91 = vpop.f32.mrb[0].mxu0
  %92 = vdwg.mxu0
  %v93 = vadd.f32 %v19, %v87
  %v94 = vadd.f32 %v20, %v90
  %95 = vst.msk [vmem:[#allocation2] sm:$0xff] %vm42, %v93
  %96 = vst.msk [vmem:[#allocation2 + $0x8] sm:$0xff] %vm42, %v94
  // Predicated region
  $region14: #{v5tune_forward.14} parent=0 // pred_check
    %p97 = pneg %p12
  $region15: #{v5tune_forward.14} parent=0 // pred_check_branch
    %99 = sbr.rel (%p97) target = $region17
  $region16: #{v5tune_forward.14} parent=0 // pred_region
    %v100 = vld [vmem:[#allocation2] sm:$0xff]
    %v101 = vld [vmem:[#allocation2 + $0x8] sm:$0xff]
    %102 = vst.msk [vmem:[%s2] sm:$0xff] %vm42, %v100
    %103 = vst.msk [vmem:[%s2 + $0x8] sm:$0xff] %vm42, %v101
  $region17: #{v5tune_forward.14} parent=0 // pred_fallthru
    _
  // Predicated region
  $region18: #{v5tune_forward.14} parent=0 // pred_check
    _
  $region19: #{v5tune_forward.14} parent=0 // pred_check_branch
    %105 = sbr.rel (0) target = $region21
  $region20: #{v5tune_forward.14} parent=0 // pred_region
    _
  $region21: #{v5tune_forward.14} parent=0 // pred_fallthru
    _
  // Predicated region
  $region22: #{v5tune_forward.14} parent=0 // pred_check
    _
  $region23: #{v5tune_forward.14} parent=0 // pred_check_branch
    %107 = sbr.rel (0) target = $region25
  $region24: #{v5tune_forward.14} parent=0 // pred_region
    _
  $region25: #{v5tune_forward.14} parent=0 // pred_fallthru
    _

// kernel: v5tune_forward.13
$region0: #{v5tune_forward.13}
  #allocation0 [shape = 'u32[]', space=smem, size = 0x4, offset = 0x4, fixed_abs, tag = 'smem constant byte address 0x4 - core index']
  #allocation1 [shape = 'u32[144,128]{1,0:T(1,128)}', space=vmem, size = 0x12000, scoped, tag = 'internal scratch']
  %s0 = inlined_call_operand.vmem [shape: bf16[16,32], index: 0, kind: input, shape index: {}]
  %s1 = inlined_call_operand.vmem [shape: f32[16,32], index: 1, kind: input, shape index: {}]
  %s2 = inlined_call_operand.vmem [shape: f32[32,4], index: 2, kind: input, shape index: {}]
  %s3 = inlined_call_operand.vmem [shape: f32[1,32], index: 3, kind: input, shape index: {}]
  %s4 = inlined_call_operand.vmem [shape: f32[1,32], index: 4, kind: input, shape index: {}]
  %s5 = inlined_call_operand.vmem [shape: bf16[16,32], index: 5, kind: output, shape index: {}]
  %s6 = sld [smem:[#allocation0]]
  $region30: #{v5tune_forward.13} parent=0
    _
  %s8 = ssub.s32 1, %s6
  %s9 = scalar_select 0, %s8, %s6
  // Predicated region
  $region2: #{v5tune_forward.13} parent=0 // pred_check
    _
  $region3: #{v5tune_forward.13} parent=0 // pred_check_branch
    %11 = sbr.rel (0) target = $region5
  $region4: #{v5tune_forward.13} parent=0 // pred_region
    _
  $region5: #{v5tune_forward.13} parent=0 // pred_fallthru
    _
  // Predicated region
  $region6: #{v5tune_forward.13} parent=0 // pred_check
    _
  $region7: #{v5tune_forward.13} parent=0 // pred_check_branch
    %13 = sbr.rel (0) target = $region9
  $region8: #{v5tune_forward.13} parent=0 // pred_region
    _
  $region9: #{v5tune_forward.13} parent=0 // pred_fallthru
    _
  // Predicated region
  $region10: #{v5tune_forward.13} parent=0 // pred_check
    _
  $region11: #{v5tune_forward.13} parent=0 // pred_check_branch
    %15 = sbr.rel (0) target = $region13
  $region12: #{v5tune_forward.13} parent=0 // pred_region
    _
  $region13: #{v5tune_forward.13} parent=0 // pred_fallthru
    _
  // Predicated region
  $region14: #{v5tune_forward.13} parent=0 // pred_check
    _
  $region15: #{v5tune_forward.13} parent=0 // pred_check_branch
    %17 = sbr.rel (0) target = $region17
  $region16: #{v5tune_forward.13} parent=0 // pred_region
    _
  $region17: #{v5tune_forward.13} parent=0 // pred_fallthru
    _
  // Predicated region
  $region18: #{v5tune_forward.13} parent=0 // pred_check
    _
  $region19: #{v5tune_forward.13} parent=0 // pred_check_branch
    %19 = sbr.rel (0) target = $region21
  $region20: #{v5tune_forward.13} parent=0 // pred_region
    _
  $region21: #{v5tune_forward.13} parent=0 // pred_fallthru
    _
  %v20 = vld [vmem:[%s0] sm:$0xf]
  %v21 = vld [vmem:[%s0 + $0x4] sm:$0xf]
  %v22 = vunpack.c.l.bf16 %v20
  %v23 = vunpack.c.l.bf16 %v21
  %v24 = vld [vmem:[%s2] sm:$0xff]
  %v25 = vld [vmem:[%s2 + $0x8] sm:$0xff]
  %v26 = vld [vmem:[%s2 + $0x10] sm:$0xff]
  %v27 = vld [vmem:[%s2 + $0x18] sm:$0xff]
  %vm28 = vcmask 261120
  %v30 = vsel %vm28, %v22, 0
  %v33 = vsel %vm28, %v23, 0
  %35 = vmatprep.subr.mxu0 0.0
  %36 = vmatpush1.msra.mxu0 %v24
  %37 = vmatprep.subr.mxu0 0.0
  %38 = vmatpush1.msra.mxu0 %v25
  %39 = vmatprep.subr.mxu0 0.0
  %40 = vmatpush1.msra.mxu0 %v26
  %41 = vmatprep.subr.mxu0 0.0
  %42 = vmatpush1.msra.mxu0 %v27
  %43 = vmatprep.subr.mxu0 0.0
  %44 = vmatpush1.msra.mxu0 0.0
  %45 = vmatprep.subr.mxu0 0.0
  %46 = vmatpush1.msra.mxu0 0.0
  %47 = vmatprep.subr.mxu0 0.0
  %48 = vmatpush1.msra.mxu0 0.0
  %49 = vmatprep.subr.mxu0 0.0
  %50 = vmatpush1.msra.mxu0 0.0
  %51 = vmatprep.subr.mxu0 0.0
  %52 = vmatpush1.msra.mxu0 0.0
  %53 = vmatprep.subr.mxu0 0.0
  %54 = vmatpush1.msra.mxu0 0.0
  %55 = vmatprep.subr.mxu0 0.0
  %56 = vmatpush1.msra.mxu0 0.0
  %57 = vmatprep.subr.mxu0 0.0
  %58 = vmatpush1.msra.mxu0 0.0
  %59 = vmatprep.subr.mxu0 0.0
  %60 = vmatpush1.msra.mxu0 0.0
  %61 = vmatprep.subr.mxu0 0.0
  %62 = vmatpush1.msra.mxu0 0.0
  %63 = vmatprep.subr.mxu0 0.0
  %64 = vmatpush1.msra.mxu0 0.0
  %65 = vmatprep.subr.mxu0 0.0
  %66 = vmatpush1.msra.mxu0 0.0
  %67 = vmatprep.subr.mxu0 0.0
  %68 = vmatpush1.msra.mxu0 0.0
  %69 = vmatprep.subr.mxu0 0.0
  %70 = vmatpush1.msra.mxu0 0.0
  %71 = vmatprep.subr.mxu0 0.0
  %72 = vmatpush1.msra.mxu0 0.0
  %73 = vmatprep.subr.mxu0 0.0
  %74 = vmatpush1.msra.mxu0 0.0
  %75 = vmatprep.subr.mxu0 0.0
  %76 = vmatpush1.msra.mxu0 0.0
  %77 = vmatprep.subr.mxu0 0.0
  %78 = vmatpush1.msra.mxu0 0.0
  %79 = vmatprep.subr.mxu0 0.0
  %80 = vmatpush1.msra.mxu0 0.0
  %81 = vmatprep.subr.mxu0 0.0
  %82 = vmatpush1.msra.mxu0 0.0
  %83 = vmatprep.subr.mxu0 0.0
  %84 = vmatpush1.msra.mxu0 0.0
  %85 = vmatprep.subr.mxu0 0.0
  %86 = vmatpush1.msra.mxu0 0.0
  %87 = vmatprep.subr.mxu0 0.0
  %88 = vmatpush1.msra.mxu0 0.0
  %89 = vmatprep.subr.mxu0 0.0
  %90 = vmatpush1.msra.mxu0 0.0
  %91 = vmatprep.subr.mxu0 0.0
  %92 = vmatpush1.msra.mxu0 0.0
  %93 = vmatprep.subr.mxu0 0.0
  %94 = vmatpush1.msra.mxu0 0.0
  %95 = vmatprep.subr.mxu0 0.0
  %96 = vmatpush1.msra.mxu0 0.0
  %97 = vmatprep.subr.mxu0 0.0
  %98 = vmatpush1.msra.mxu0 0.0
  %99 = vmatprep.mubr.f32.mxu0 0.0
  %100 = vmatmul.mubr.f32.gmra.mrb[0].mxu0 %v30
  %v101 = vpop.f32.mrb[0].mxu0
  %v102 = vadd.f32 0.0, %v101
  %v103 = vpop.f32.mrb[0].mxu0
  %104 = vmatprep.mubr.f32.mxu0 0.0
  %105 = vmatmul.mubr.f32.gmra.mrb[0].mxu0 %v33
  %v106 = vpop.f32.mrb[0].mxu0
  %v107 = vadd.f32 0.0, %v106
  %v108 = vpop.f32.mrb[0].mxu0
  %109 = vdwg.mxu0
  %v110 = vmul.f32 %v102, 0.125
  %v111 = vmul.f32 %v107, 0.125
  %vm112 = vcmask 31744
  %v114 = vsel %vm112, %v110, 0
  %v117 = vsel %vm112, %v111, 0
  %v120 = vsel %vm112, %v24, 0
  %v123 = vsel %vm112, %v25, 0
  %v126 = vsel %vm112, %v26, 0
  %v129 = vsel %vm112, %v27, 0
  %131 = vmatprep.subr.mxu0 0.0
  %132 = vmatpush1.xpose.msra.mxu0 %v120
  %133 = vmatprep.subr.mxu0 0.0
  %134 = vmatpush1.xpose.msra.mxu0 %v123
  %135 = vmatprep.subr.mxu0 0.0
  %136 = vmatpush1.xpose.msra.mxu0 %v126
  %137 = vmatprep.subr.mxu0 0.0
  %138 = vmatpush1.xpose.msra.mxu0 %v129
  %139 = vmatprep.subr.mxu0 0.0
  %140 = vmatpush1.xpose.msra.mxu0 0.0
  %141 = vmatprep.subr.mxu0 0.0
  %142 = vmatpush1.xpose.msra.mxu0 0.0
  %143 = vmatprep.subr.mxu0 0.0
  %144 = vmatpush1.xpose.msra.mxu0 0.0
  %145 = vmatprep.subr.mxu0 0.0
  %146 = vmatpush1.xpose.msra.mxu0 0.0
  %147 = vmatprep.subr.mxu0 0.0
  %148 = vmatpush1.xpose.msra.mxu0 0.0
  %149 = vmatprep.subr.mxu0 0.0
  %150 = vmatpush1.xpose.msra.mxu0 0.0
  %151 = vmatprep.subr.mxu0 0.0
  %152 = vmatpush1.xpose.msra.mxu0 0.0
  %153 = vmatprep.subr.mxu0 0.0
  %154 = vmatpush1.xpose.msra.mxu0 0.0
  %155 = vmatprep.subr.mxu0 0.0
  %156 = vmatpush1.xpose.msra.mxu0 0.0
  %157 = vmatprep.subr.mxu0 0.0
  %158 = vmatpush1.xpose.msra.mxu0 0.0
  %159 = vmatprep.subr.mxu0 0.0
  %160 = vmatpush1.xpose.msra.mxu0 0.0
  %161 = vmatprep.subr.mxu0 0.0
  %162 = vmatpush1.xpose.msra.mxu0 0.0
  %163 = vmatprep.subr.mxu0 0.0
  %164 = vmatpush1.xpose.msra.mxu0 0.0
  %165 = vmatprep.subr.mxu0 0.0
  %166 = vmatpush1.xpose.msra.mxu0 0.0
  %167 = vmatprep.subr.mxu0 0.0
  %168 = vmatpush1.xpose.msra.mxu0 0.0
  %169 = vmatprep.subr.mxu0 0.0
  %170 = vmatpush1.xpose.msra.mxu0 0.0
  %171 = vmatprep.subr.mxu0 0.0
  %172 = vmatpush1.xpose.msra.mxu0 0.0
  %173 = vmatprep.subr.mxu0 0.0
  %174 = vmatpush1.xpose.msra.mxu0 0.0
  %175 = vmatprep.subr.mxu0 0.0
  %176 = vmatpush1.xpose.msra.mxu0 0.0
  %177 = vmatprep.subr.mxu0 0.0
  %178 = vmatpush1.xpose.msra.mxu0 0.0
  %179 = vmatprep.subr.mxu0 0.0
  %180 = vmatpush1.xpose.msra.mxu0 0.0
  %181 = vmatprep.subr.mxu0 0.0
  %182 = vmatpush1.xpose.msra.mxu0 0.0
  %183 = vmatprep.subr.mxu0 0.0
  %184 = vmatpush1.xpose.msra.mxu0 0.0
  %185 = vmatprep.subr.mxu0 0.0
  %186 = vmatpush1.xpose.msra.mxu0 0.0
  %187 = vmatprep.subr.mxu0 0.0
  %188 = vmatpush1.xpose.msra.mxu0 0.0
  %189 = vmatprep.subr.mxu0 0.0
  %190 = vmatpush1.xpose.msra.mxu0 0.0
  %191 = vmatprep.subr.mxu0 0.0
  %192 = vmatpush1.xpose.msra.mxu0 0.0
  %193 = vmatprep.subr.mxu0 0.0
  %194 = vmatpush1.xpose.msra.mxu0 0.0
  %195 = vmatprep.mubr.f32.mxu0 0.0
  %196 = vmatmul.mubr.f32.gmra.mrb[0].mxu0 %v114
  %v197 = vpop.f32.mrb[0].mxu0
  %v198 = vadd.f32 0.0, %v197
  %v199 = vpop.f32.mrb[0].mxu0
  %200 = vmatprep.mubr.f32.mxu0 0.0
  %201 = vmatmul.mubr.f32.gmra.mrb[0].mxu0 %v117
  %v202 = vpop.f32.mrb[0].mxu0
  %v203 = vadd.f32 0.0, %v202
  %v204 = vpop.f32.mrb[0].mxu0
  %205 = vdwg.mxu0
  %v206 = vsub.f32 %v22, %v198
  %v207 = vsub.f32 %v23, %v203
  %v208 = vmul.f32 %v206, %v206
  %v209 = vmul.f32 %v207, %v207
  %v211 = vsel %vm28, %v208, 0
  %v214 = vsel %vm28, %v209, 0
  %216 = vmatprep.subr.mxu0 0.0
  %217 = vmatpush1.msra.mxu0 %v24
  %218 = vmatprep.subr.mxu0 0.0
  %219 = vmatpush1.msra.mxu0 %v25
  %220 = vmatprep.subr.mxu0 0.0
  %221 = vmatpush1.msra.mxu0 %v26
  %222 = vmatprep.subr.mxu0 0.0
  %223 = vmatpush1.msra.mxu0 %v27
  %224 = vmatprep.subr.mxu0 0.0
  %225 = vmatpush1.msra.mxu0 0.0
  %226 = vmatprep.subr.mxu0 0.0
  %227 = vmatpush1.msra.mxu0 0.0
  %228 = vmatprep.subr.mxu0 0.0
  %229 = vmatpush1.msra.mxu0 0.0
  %230 = vmatprep.subr.mxu0 0.0
  %231 = vmatpush1.msra.mxu0 0.0
  %232 = vmatprep.subr.mxu0 0.0
  %233 = vmatpush1.msra.mxu0 0.0
  %234 = vmatprep.subr.mxu0 0.0
  %235 = vmatpush1.msra.mxu0 0.0
  %236 = vmatprep.subr.mxu0 0.0
  %237 = vmatpush1.msra.mxu0 0.0
  %238 = vmatprep.subr.mxu0 0.0
  %239 = vmatpush1.msra.mxu0 0.0
  %240 = vmatprep.subr.mxu0 0.0
  %241 = vmatpush1.msra.mxu0 0.0
  %242 = vmatprep.subr.mxu0 0.0
  %243 = vmatpush1.msra.mxu0 0.0
  %244 = vmatprep.subr.mxu0 0.0
  %245 = vmatpush1.msra.mxu0 0.0
  %246 = vmatprep.subr.mxu0 0.0
  %247 = vmatpush1.msra.mxu0 0.0
  %248 = vmatprep.subr.mxu0 0.0
  %249 = vmatpush1.msra.mxu0 0.0
  %250 = vmatprep.subr.mxu0 0.0
  %251 = vmatpush1.msra.mxu0 0.0
  %252 = vmatprep.subr.mxu0 0.0
  %253 = vmatpush1.msra.mxu0 0.0
  %254 = vmatprep.subr.mxu0 0.0
  %255 = vmatpush1.msra.mxu0 0.0
  %256 = vmatprep.subr.mxu0 0.0
  %257 = vmatpush1.msra.mxu0 0.0
  %258 = vmatprep.subr.mxu0 0.0
  %259 = vmatpush1.msra.mxu0 0.0
  %260 = vmatprep.subr.mxu0 0.0
  %261 = vmatpush1.msra.mxu0 0.0
  %262 = vmatprep.subr.mxu0 0.0
  %263 = vmatpush1.msra.mxu0 0.0
  %264 = vmatprep.subr.mxu0 0.0
  %265 = vmatpush1.msra.mxu0 0.0
  %266 = vmatprep.subr.mxu0 0.0
  %267 = vmatpush1.msra.mxu0 0.0
  %268 = vmatprep.subr.mxu0 0.0
  %269 = vmatpush1.msra.mxu0 0.0
  %270 = vmatprep.subr.mxu0 0.0
  %271 = vmatpush1.msra.mxu0 0.0
  %272 = vmatprep.subr.mxu0 0.0
  %273 = vmatpush1.msra.mxu0 0.0
  %274 = vmatprep.subr.mxu0 0.0
  %275 = vmatpush1.msra.mxu0 0.0
  %276 = vmatprep.subr.mxu0 0.0
  %277 = vmatpush1.msra.mxu0 0.0
  %278 = vmatprep.subr.mxu0 0.0
  %279 = vmatpush1.msra.mxu0 0.0
  %280 = vmatprep.mubr.f32.mxu0 0.0
  %281 = vmatmul.mubr.f32.gmra.mrb[0].mxu0 %v211
  %v282 = vpop.f32.mrb[0].mxu0
  %v283 = vadd.f32 0.0, %v282
  %v284 = vpop.f32.mrb[0].mxu0
  %285 = vmatprep.mubr.f32.mxu0 0.0
  %286 = vmatmul.mubr.f32.gmra.mrb[0].mxu0 %v214
  %v287 = vpop.f32.mrb[0].mxu0
  %v288 = vadd.f32 0.0, %v287
  %v289 = vpop.f32.mrb[0].mxu0
  %290 = vdwg.mxu0
  %v291 = vmul.f32 %v283, 0.125
  %v292 = vmul.f32 %v288, 0.125
  %v294 = vsel %vm112, %v291, 0
  %v297 = vsel %vm112, %v292, 0
  %299 = vmatprep.subr.mxu0 0.0
  %300 = vmatpush1.xpose.msra.mxu0 %v120
  %301 = vmatprep.subr.mxu0 0.0
  %302 = vmatpush1.xpose.msra.mxu0 %v123
  %303 = vmatprep.subr.mxu0 0.0
  %304 = vmatpush1.xpose.msra.mxu0 %v126
  %305 = vmatprep.subr.mxu0 0.0
  %306 = vmatpush1.xpose.msra.mxu0 %v129
  %307 = vmatprep.subr.mxu0 0.0
  %308 = vmatpush1.xpose.msra.mxu0 0.0
  %309 = vmatprep.subr.mxu0 0.0
  %310 = vmatpush1.xpose.msra.mxu0 0.0
  %311 = vmatprep.subr.mxu0 0.0
  %312 = vmatpush1.xpose.msra.mxu0 0.0
  %313 = vmatprep.subr.mxu0 0.0
  %314 = vmatpush1.xpose.msra.mxu0 0.0
  %315 = vmatprep.subr.mxu0 0.0
  %316 = vmatpush1.xpose.msra.mxu0 0.0
  %317 = vmatprep.subr.mxu0 0.0
  %318 = vmatpush1.xpose.msra.mxu0 0.0
  %319 = vmatprep.subr.mxu0 0.0
  %320 = vmatpush1.xpose.msra.mxu0 0.0
  %321 = vmatprep.subr.mxu0 0.0
  %322 = vmatpush1.xpose.msra.mxu0 0.0
  %323 = vmatprep.subr.mxu0 0.0
  %324 = vmatpush1.xpose.msra.mxu0 0.0
  %325 = vmatprep.subr.mxu0 0.0
  %326 = vmatpush1.xpose.msra.mxu0 0.0
  %327 = vmatprep.subr.mxu0 0.0
  %328 = vmatpush1.xpose.msra.mxu0 0.0
  %329 = vmatprep.subr.mxu0 0.0
  %330 = vmatpush1.xpose.msra.mxu0 0.0
  %331 = vmatprep.subr.mxu0 0.0
  %332 = vmatpush1.xpose.msra.mxu0 0.0
  %333 = vmatprep.subr.mxu0 0.0
  %334 = vmatpush1.xpose.msra.mxu0 0.0
  %335 = vmatprep.subr.mxu0 0.0
  %336 = vmatpush1.xpose.msra.mxu0 0.0
  %337 = vmatprep.subr.mxu0 0.0
  %338 = vmatpush1.xpose.msra.mxu0 0.0
  %339 = vmatprep.subr.mxu0 0.0
  %340 = vmatpush1.xpose.msra.mxu0 0.0
  %341 = vmatprep.subr.mxu0 0.0
  %342 = vmatpush1.xpose.msra.mxu0 0.0
  %343 = vmatprep.subr.mxu0 0.0
  %344 = vmatpush1.xpose.msra.mxu0 0.0
  %345 = vmatprep.subr.mxu0 0.0
  %346 = vmatpush1.xpose.msra.mxu0 0.0
  %347 = vmatprep.subr.mxu0 0.0
  %348 = vmatpush1.xpose.msra.mxu0 0.0
  %349 = vmatprep.subr.mxu0 0.0
  %350 = vmatpush1.xpose.msra.mxu0 0.0
  %351 = vmatprep.subr.mxu0 0.0
  %352 = vmatpush1.xpose.msra.mxu0 0.0
  %353 = vmatprep.subr.mxu0 0.0
  %354 = vmatpush1.xpose.msra.mxu0 0.0
  %355 = vmatprep.subr.mxu0 0.0
  %356 = vmatpush1.xpose.msra.mxu0 0.0
  %357 = vmatprep.subr.mxu0 0.0
  %358 = vmatpush1.xpose.msra.mxu0 0.0
  %359 = vmatprep.subr.mxu0 0.0
  %360 = vmatpush1.xpose.msra.mxu0 0.0
  %361 = vmatprep.subr.mxu0 0.0
  %362 = vmatpush1.xpose.msra.mxu0 0.0
  %363 = vmatprep.mubr.f32.mxu0 0.0
  %364 = vmatmul.mubr.f32.gmra.mrb[0].mxu0 %v294
  %v365 = vpop.f32.mrb[0].mxu0
  %v366 = vadd.f32 0.00064, %v365
  %v367 = vpop.f32.mrb[0].mxu0
  %368 = vmatprep.mubr.f32.mxu0 0.0
  %369 = vmatmul.mubr.f32.gmra.mrb[0].mxu0 %v297
  %v370 = vpop.f32.mrb[0].mxu0
  %v371 = vadd.f32 0.00064, %v370
  %v372 = vpop.f32.mrb[0].mxu0
  %373 = vdwg.mxu0
  %v374 = vrsqrt.pop %v366
  %v375 = vrsqrt.pop %v371
  %v376 = vmul.f32 %v206, %v374
  %v377 = vmul.f32 %v207, %v375
  %v378 = vld [vmem:[%s3] sm:$0x1]
  %v380 = vlaneseq
  %v381 = vshrl.u32 %v380, 7
  %v382 = vsub.s32 0, %v381
  %v383 = vrot.slane %v378, %v382
  %v385 = vmul.f32 %v376, %v383
  %v386 = vmul.f32 %v377, %v383
  %v387 = vld [vmem:[%s4] sm:$0x1]
  %v389 = vlaneseq
  %v390 = vshrl.u32 %v389, 7
  %v391 = vsub.s32 0, %v390
  %v392 = vrot.slane %v387, %v391
  %v394 = vadd.f32 %v385, %v392
  %v395 = vadd.f32 %v386, %v392
  %v396 = vld [vmem:[%s1] sm:$0xff]
  %v397 = vld [vmem:[%s1 + $0x8] sm:$0xff]
  %v398 = vsub.f32 0.0, %v396
  %v399 = vsub.f32 0.0, %v397
  %v400 = vmul.f32 %v398, 1.442695
  %v401 = vpow.pop %v400
  %v402 = vmul.f32 %v399, 1.442695
  %v403 = vpow.pop %v402
  %v404 = vadd.f32 %v401, 1.0
  %v405 = vadd.f32 %v403, 1.0
  %v406 = vrcp.pop %v404
  %v407 = vrcp.pop %v405
  %v408 = vmul.f32 %v396, %v406
  %v409 = vmul.f32 %v397, %v407
  %v410 = vmul.f32 %v394, %v408
  %v411 = vmul.f32 %v395, %v409
  %v412 = vpack.c.bf16 %v411, %v410
  %v414 = vunpack.c.l.b16 %v412
  %v415 = vunpack.c.h.b16 %v412
  %v416 = vpack.c.b16 %v414, %v414
  %v417 = vpack.c.b16 %v415, %v415
  %vm420 = vcmask 257024
  %421 = vst.msk [vmem:[%s5] sm:$0xf] %vm420, %v416
  %422 = vst.msk [vmem:[%s5 + $0x4] sm:$0xf] %vm420, %v417
  // Predicated region
  $region22: #{v5tune_forward.13} parent=0 // pred_check
    _
  $region23: #{v5tune_forward.13} parent=0 // pred_check_branch
    %424 = sbr.rel (0) target = $region25
  $region24: #{v5tune_forward.13} parent=0 // pred_region
    _
  $region25: #{v5tune_forward.13} parent=0 // pred_fallthru
    _
  // Predicated region
  $region26: #{v5tune_forward.13} parent=0 // pred_check
    _
  $region27: #{v5tune_forward.13} parent=0 // pred_check_branch
    %426 = sbr.rel (0) target = $region29
  $region28: #{v5tune_forward.13} parent=0 // pred_region
    _
  $region29: #{v5tune_forward.13} parent=0 // pred_fallthru
    _

// kernel: v5tune_forward.12
$region0: #{v5tune_forward.12}
  #allocation0 [shape = 'u32[]', space=smem, size = 0x4, offset = 0x4, fixed_abs, tag = 'smem constant byte address 0x4 - core index']
  #allocation1 [shape = 'u32[144,128]{1,0:T(1,128)}', space=vmem, size = 0x12000, scoped, tag = 'internal scratch']
  #allocation2 [shape = 'f32[4,8,8]{2,1,0:T(8,128)}', space=vmem, size = 0x4000, scoped, tag = 'scratch operand']
  %s0 = inlined_call_operand.vmem [shape: f32[2,8,32], index: 0, kind: input, shape index: {}]
  %s1 = inlined_call_operand.vmem [shape: f32[2,8,32], index: 1, kind: input, shape index: {}]
  %s2 = inlined_call_operand.vmem [shape: f32[2,8,32], index: 2, kind: input, shape index: {}]
  %s3 = inlined_call_operand.vmem [shape: f32[4,8,8], index: 3, kind: input, shape index: {}]
  %s4 = inlined_call_operand.vmem [shape: f32[1,32], index: 4, kind: input, shape index: {}]
  %s5 = inlined_call_operand.vmem [shape: f32[1,32], index: 5, kind: input, shape index: {}]
  %s6 = inlined_call_operand.vmem [shape: f32[32,4], index: 6, kind: input, shape index: {}]
  %s7 = inlined_call_operand.vmem [shape: bf16[2,8,32], index: 7, kind: output, shape index: {}]
  %s8 = sld [smem:[#allocation0]]
  $region65: #{v5tune_forward.12} parent=0
    _
  %s10 = ssub.s32 1, %s8
  %s11 = scalar_select 0, %s10, %s8
  loop: start=0, step=1, limit=4
  $region2: #{v5tune_forward.12} parent=0 // loop_pre_header
    _
  $region3: #{v5tune_forward.12} parent=0 // loop_header
    %s13 = sphi 0, %s17
    %p14 = scmp.ge.s32.totalorder %s13, 4
    %s20 = sphi 0, %s32
    %s21 = sphi 0, %s28
    %s22 = sphi 0, %s20
    %s23 = sphi 0, %s21
    %s24 = sphi 0, %s22
    %s25 = sphi 0, %s23
    %s37 = sphi 0, %s39
    %s40 = sphi 0, %s37
    %s41 = sphi 0, %s40
    %s57 = sphi 0, %s41
    %s65 = sphi 0, %s67
    %s68 = sphi 0, %s65
    %s69 = sphi 0, %s68
    %s85 = sphi 0, %s69
    %s93 = sphi 0, %s95
    %s96 = sphi 0, %s93
    %s97 = sphi 0, %s96
    %s113 = sphi 0, %s97
    %s117 = sphi 0, %s117
    %s119 = sphi 0, %s117
    %s120 = sphi 0, %s119
    %s134 = sphi 0, %s120
    %s138 = sphi 0, %s138
    %s140 = sphi 0, %s138
    %s141 = sphi 0, %s140
    %s155 = sphi 0, %s141
    %s159 = sphi 0, %s159
    %s161 = sphi 0, %s159
    %s162 = sphi 0, %s161
    %s176 = sphi 0, %s162
    %s180 = sphi 0, %s180
    %s182 = sphi 0, %s180
    %s183 = sphi 0, %s182
    %s197 = sphi 0, %s183
    %s205 = sphi 0, %s207
    %s208 = sphi 0, %s205
    %s209 = sphi 0, %s208
    %s225 = sphi 0, %s209
  $region4: #{v5tune_forward.12} parent=0 // loop_header_branch
    %16 = sbr.rel (%p14) target = $region8
  $region5: #{v5tune_forward.12} parent=0 // loop_body
    %s18 = ssub.s32 %s13, 1
    %s19 = ssub.s32 %s13, 2
    %s26 = sadd.s32 1, %s21
    %p27 = scmp.ge.s32.totalorder %s26, 1
    %s28 = scalar_select %p27, 0, %s26
    %s29 = sadd.s32 1, %s20
    %s30 = scalar_select %p27, %s29, %s20
    %p31 = scmp.ge.s32.totalorder %s30, 2
    %s32 = scalar_select %p31, 0, %s30
    %s33 = ssub.s32 %s20, %s32
    %s34 = ssub.s32 %s21, %s28
    %s35 = sor.u32 %s33, %s34
    %p36 = scmp.eq.s32.totalorder %s35, 0
    %s38 = sadd.s32 %s37, 1
    %s39 = scalar_select %p36, %s37, %s38
    %p42 = pneg %p36
    %p43 = scmp.eq.s32.totalorder %s13, 1
    %p44 = por %p42, %p43
    %p45 = scmp.ne.s32.totalorder %s37, %s40
    %p46 = scmp.eq.s32.totalorder %s13, 0
    %p47 = por %p45, %p46
    %p48 = scmp.ne.s32.totalorder %s37, %s40
    %p49 = scmp.eq.s32.totalorder %s18, 1
    %p50 = por %p48, %p49
    %p51 = scmp.ne.s32.totalorder %s40, %s41
    %p52 = scmp.eq.s32.totalorder %s18, 0
    %p53 = por %p51, %p52
    %p54 = scmp.ne.s32.totalorder %s40, %s41
    %p55 = scmp.eq.s32.totalorder %s19, 1
    %p56 = por %p54, %p55
    %p58 = scmp.ne.s32.totalorder %s41, %s57
    %p59 = scmp.eq.s32.totalorder %s19, 0
    %p60 = por %p58, %p59
    %s61 = ssub.s32 %s20, %s32
    %s62 = ssub.s32 %s21, %s28
    %s63 = sor.u32 %s61, %s62
    %p64 = scmp.eq.s32.totalorder %s63, 0
    %s66 = sadd.s32 %s65, 1
    %s67 = scalar_select %p64, %s65, %s66
    %p70 = pneg %p64
    %p71 = scmp.eq.s32.totalorder %s13, 1
    %p72 = por %p70, %p71
    %p73 = scmp.ne.s32.totalorder %s65, %s68
    %p74 = scmp.eq.s32.totalorder %s13, 0
    %p75 = por %p73, %p74
    %p76 = scmp.ne.s32.totalorder %s65, %s68
    %p77 = scmp.eq.s32.totalorder %s18, 1
    %p78 = por %p76, %p77
    %p79 = scmp.ne.s32.totalorder %s68, %s69
    %p80 = scmp.eq.s32.totalorder %s18, 0
    %p81 = por %p79, %p80
    %p82 = scmp.ne.s32.totalorder %s68, %s69
    %p83 = scmp.eq.s32.totalorder %s19, 1
    %p84 = por %p82, %p83
    %p86 = scmp.ne.s32.totalorder %s69, %s85
    %p87 = scmp.eq.s32.totalorder %s19, 0
    %p88 = por %p86, %p87
    %s89 = ssub.s32 %s20, %s32
    %s90 = ssub.s32 %s21, %s28
    %s91 = sor.u32 %s89, %s90
    %p92 = scmp.eq.s32.totalorder %s91, 0
    %s94 = sadd.s32 %s93, 1
    %s95 = scalar_select %p92, %s93, %s94
    %p98 = pneg %p92
    %p99 = scmp.eq.s32.totalorder %s13, 1
    %p100 = por %p98, %p99
    %p101 = scmp.ne.s32.totalorder %s93, %s96
    %p102 = scmp.eq.s32.totalorder %s13, 0
    %p103 = por %p101, %p102
    %p104 = scmp.ne.s32.totalorder %s93, %s96
    %p105 = scmp.eq.s32.totalorder %s18, 1
    %p106 = por %p104, %p105
    %p107 = scmp.ne.s32.totalorder %s96, %s97
    %p108 = scmp.eq.s32.totalorder %s18, 0
    %p109 = por %p107, %p108
    %p110 = scmp.ne.s32.totalorder %s96, %s97
    %p111 = scmp.eq.s32.totalorder %s19, 1
    %p112 = por %p110, %p111
    %p114 = scmp.ne.s32.totalorder %s97, %s113
    %p115 = scmp.eq.s32.totalorder %s19, 0
    %p116 = por %p114, %p115
    %s118 = sadd.s32 %s117, 1
    %p121 = scmp.eq.s32.totalorder %s13, 1
    %p122 = scmp.ne.s32.totalorder %s117, %s119
    %p123 = scmp.eq.s32.totalorder %s13, 0
    %p124 = por %p122, %p123
    %p125 = scmp.ne.s32.totalorder %s117, %s119
    %p126 = scmp.eq.s32.totalorder %s18, 1
    %p127 = por %p125, %p126
    %p128 = scmp.ne.s32.totalorder %s119, %s120
    %p129 = scmp.eq.s32.totalorder %s18, 0
    %p130 = por %p128, %p129
    %p131 = scmp.ne.s32.totalorder %s119, %s120
    %p132 = scmp.eq.s32.totalorder %s19, 1
    %p133 = por %p131, %p132
    %p135 = scmp.ne.s32.totalorder %s120, %s134
    %p136 = scmp.eq.s32.totalorder %s19, 0
    %p137 = por %p135, %p136
    %s139 = sadd.s32 %s138, 1
    %p142 = scmp.eq.s32.totalorder %s13, 1
    %p143 = scmp.ne.s32.totalorder %s138, %s140
    %p144 = scmp.eq.s32.totalorder %s13, 0
    %p145 = por %p143, %p144
    %p146 = scmp.ne.s32.totalorder %s138, %s140
    %p147 = scmp.eq.s32.totalorder %s18, 1
    %p148 = por %p146, %p147
    %p149 = scmp.ne.s32.totalorder %s140, %s141
    %p150 = scmp.eq.s32.totalorder %s18, 0
    %p151 = por %p149, %p150
    %p152 = scmp.ne.s32.totalorder %s140, %s141
    %p153 = scmp.eq.s32.totalorder %s19, 1
    %p154 = por %p152, %p153
    %p156 = scmp.ne.s32.totalorder %s141, %s155
    %p157 = scmp.eq.s32.totalorder %s19, 0
    %p158 = por %p156, %p157
    %s160 = sadd.s32 %s159, 1
    %p163 = scmp.eq.s32.totalorder %s13, 1
    %p164 = scmp.ne.s32.totalorder %s159, %s161
    %p165 = scmp.eq.s32.totalorder %s13, 0
    %p166 = por %p164, %p165
    %p167 = scmp.ne.s32.totalorder %s159, %s161
    %p168 = scmp.eq.s32.totalorder %s18, 1
    %p169 = por %p167, %p168
    %p170 = scmp.ne.s32.totalorder %s161, %s162
    %p171 = scmp.eq.s32.totalorder %s18, 0
    %p172 = por %p170, %p171
    %p173 = scmp.ne.s32.totalorder %s161, %s162
    %p174 = scmp.eq.s32.totalorder %s19, 1
    %p175 = por %p173, %p174
    %p177 = scmp.ne.s32.totalorder %s162, %s176
    %p178 = scmp.eq.s32.totalorder %s19, 0
    %p179 = por %p177, %p178
    %s181 = sadd.s32 %s180, 1
    %p184 = scmp.eq.s32.totalorder %s13, 1
    %p185 = scmp.ne.s32.totalorder %s180, %s182
    %p186 = scmp.eq.s32.totalorder %s13, 0
    %p187 = por %p185, %p186
    %p188 = scmp.ne.s32.totalorder %s180, %s182
    %p189 = scmp.eq.s32.totalorder %s18, 1
    %p190 = por %p188, %p189
    %p191 = scmp.ne.s32.totalorder %s182, %s183
    %p192 = scmp.eq.s32.totalorder %s18, 0
    %p193 = por %p191, %p192
    %p194 = scmp.ne.s32.totalorder %s182, %s183
    %p195 = scmp.eq.s32.totalorder %s19, 1
    %p196 = por %p194, %p195
    %p198 = scmp.ne.s32.totalorder %s183, %s197
    %p199 = scmp.eq.s32.totalorder %s19, 0
    %p200 = por %p198, %p199
    %s201 = ssub.s32 %s20, %s32
    %s202 = ssub.s32 %s21, %s28
    %s203 = sor.u32 %s201, %s202
    %p204 = scmp.eq.s32.totalorder %s203, 0
    %s206 = sadd.s32 %s205, 1
    %s207 = scalar_select %p204, %s205, %s206
    %p210 = pneg %p204
    %p211 = scmp.eq.s32.totalorder %s13, 1
    %p212 = por %p210, %p211
    %p213 = scmp.ne.s32.totalorder %s205, %s208
    %p214 = scmp.eq.s32.totalorder %s13, 0
    %p215 = por %p213, %p214
    %p216 = scmp.ne.s32.totalorder %s205, %s208
    %p217 = scmp.eq.s32.totalorder %s18, 1
    %p218 = por %p216, %p217
    %p219 = scmp.ne.s32.totalorder %s208, %s209
    %p220 = scmp.eq.s32.totalorder %s18, 0
    %p221 = por %p219, %p220
    %p222 = scmp.ne.s32.totalorder %s208, %s209
    %p223 = scmp.eq.s32.totalorder %s19, 1
    %p224 = por %p222, %p223
    %p226 = scmp.ne.s32.totalorder %s209, %s225
    %p227 = scmp.eq.s32.totalorder %s19, 0
    %p228 = por %p226, %p227
    %p229 = scmp.le.s32.totalorder 1, %s13
    %p230 = scmp.lt.s32.totalorder %s13, 3
    %p231 = pnand %p229, %p230
    %p232 = pneg %p231
    // Predicated region
    $region9: #{v5tune_forward.12} parent=5 // pred_check
      _
    $region10: #{v5tune_forward.12} parent=5 // pred_check_branch
      %234 = sbr.rel (%p231) target = $region12
    $region11: #{v5tune_forward.12} parent=5 // pred_region
      %s235 = ssub.s32 %s13, 1
      // Predicated region
      $region13: #{v5tune_forward.12} parent=11 // pred_check
        %p236 = pneg %p130
      $region14: #{v5tune_forward.12} parent=11 // pred_check_branch
        %238 = sbr.rel (%p236) target = $region16
      $region15: #{v5tune_forward.12} parent=11 // pred_region
        _
      $region16: #{v5tune_forward.12} parent=11 // pred_fallthru
        _
      // Predicated region
      $region17: #{v5tune_forward.12} parent=11 // pred_check
        %p239 = pneg %p151
      $region18: #{v5tune_forward.12} parent=11 // pred_check_branch
        %241 = sbr.rel (%p239) target = $region20
      $region19: #{v5tune_forward.12} parent=11 // pred_region
        _
      $region20: #{v5tune_forward.12} parent=11 // pred_fallthru
        _
      // Predicated region
      $region21: #{v5tune_forward.12} parent=11 // pred_check
        %p242 = pneg %p172
      $region22: #{v5tune_forward.12} parent=11 // pred_check_branch
        %244 = sbr.rel (%p242) target = $region24
      $region23: #{v5tune_forward.12} parent=11 // pred_region
        _
      $region24: #{v5tune_forward.12} parent=11 // pred_fallthru
        _
      // Predicated region
      $region25: #{v5tune_forward.12} parent=11 // pred_check
        %p245 = pneg %p193
      $region26: #{v5tune_forward.12} parent=11 // pred_check_branch
        %247 = sbr.rel (%p245) target = $region28
      $region27: #{v5tune_forward.12} parent=11 // pred_region
        _
      $region28: #{v5tune_forward.12} parent=11 // pred_fallthru
        _
    $region12: #{v5tune_forward.12} parent=5 // pred_fallthru
      _
    %p248 = scmp.lt.s32.totalorder %s13, 2
    // Predicated region
    $region29: #{v5tune_forward.12} parent=5 // pred_check
      %p249 = pneg %p248
    $region30: #{v5tune_forward.12} parent=5 // pred_check_branch
      %251 = sbr.rel (%p249) target = $region32
    $region31: #{v5tune_forward.12} parent=5 // pred_region
      // Predicated region
      $region33: #{v5tune_forward.12} parent=31 // pred_check
        %p252 = pneg %p47
      $region34: #{v5tune_forward.12} parent=31 // pred_check_branch
        %254 = sbr.rel (%p252) target = $region36
      $region35: #{v5tune_forward.12} parent=31 // pred_region
        %p255 = scmp.lt.s32.totalorder %s20, 1
        %s256 = scalar_select %p255, %s20, 1
        %p257 = scmp.lt.s32.totalorder %s21, 0
        %s258 = scalar_select %p257, %s21, 0
        %s259 = sadd.s32 %s258, %s256
        %s260 = smul.addr %s259, 8
        %s261 = scalar_lea.vmem %s0, %s260
      $region36: #{v5tune_forward.12} parent=31 // pred_fallthru
        _
      // Predicated region
      $region37: #{v5tune_forward.12} parent=31 // pred_check
        %p262 = pneg %p75
      $region38: #{v5tune_forward.12} parent=31 // pred_check_branch
        %264 = sbr.rel (%p262) target = $region40
      $region39: #{v5tune_forward.12} parent=31 // pred_region
        %p265 = scmp.lt.s32.totalorder %s20, 1
        %s266 = scalar_select %p265, %s20, 1
        %p267 = scmp.lt.s32.totalorder %s21, 0
        %s268 = scalar_select %p267, %s21, 0
        %s269 = sadd.s32 %s268, %s266
        %s270 = smul.addr %s269, 8
        %s271 = scalar_lea.vmem %s1, %s270
      $region40: #{v5tune_forward.12} parent=31 // pred_fallthru
        _
      // Predicated region
      $region41: #{v5tune_forward.12} parent=31 // pred_check
        %p272 = pneg %p103
      $region42: #{v5tune_forward.12} parent=31 // pred_check_branch
        %274 = sbr.rel (%p272) target = $region44
      $region43: #{v5tune_forward.12} parent=31 // pred_region
        %p275 = scmp.lt.s32.totalorder %s20, 1
        %s276 = scalar_select %p275, %s20, 1
        %p277 = scmp.lt.s32.totalorder %s21, 0
        %s278 = scalar_select %p277, %s21, 0
        %s279 = sadd.s32 %s278, %s276
        %s280 = smul.addr %s279, 8
        %s281 = scalar_lea.vmem %s2, %s280
      $region44: #{v5tune_forward.12} parent=31 // pred_fallthru
        _
    $region32: #{v5tune_forward.12} parent=5 // pred_fallthru
      _
    %p282 = scmp.le.s32.totalorder 1, %s13
    %p283 = scmp.lt.s32.totalorder %s13, 3
    %p284 = pnand %p282, %p283
    %p285 = pneg %p284
    // Predicated region
    $region45: #{v5tune_forward.12} parent=5 // pred_check
      _
    $region46: #{v5tune_forward.12} parent=5 // pred_check_branch
      %287 = sbr.rel (%p284) target = $region48
    $region47: #{v5tune_forward.12} parent=5 // pred_region
      %s288 = ssub.s32 %s13, 1
      %p289 = scmp.lt.s32.totalorder %s22, 1
      %s290 = scalar_select %p289, %s22, 1
      %p291 = scmp.lt.s32.totalorder %s23, 0
      %s292 = scalar_select %p291, %s23, 0
      %s293 = sadd.s32 %s292, %s290
      %s294 = smul.addr %s293, 8
      %s295 = scalar_lea.vmem %s0, %s294
      %p296 = pneg %p53
      %p297 = pneg %p50
      %p298 = scmp.lt.s32.totalorder %s22, 1
      %s299 = scalar_select %p298, %s22, 1
      %p300 = scmp.lt.s32.totalorder %s23, 0
      %s301 = scalar_select %p300, %s23, 0
      %s302 = sadd.s32 %s301, %s299
      %s303 = smul.addr %s302, 8
      %s304 = scalar_lea.vmem %s1, %s303
      %p305 = pneg %p81
      %p306 = pneg %p78
      %p307 = scmp.lt.s32.totalorder %s22, 1
      %s308 = scalar_select %p307, %s22, 1
      %p309 = scmp.lt.s32.totalorder %s23, 0
      %s310 = scalar_select %p309, %s23, 0
      %s311 = sadd.s32 %s310, %s308
      %s312 = smul.addr %s311, 8
      %s313 = scalar_lea.vmem %s2, %s312
      %p314 = pneg %p109
      %p315 = pneg %p106
      %p316 = pneg %p130
      %p317 = pneg %p127
      %p318 = pneg %p151
      %p319 = pneg %p148
      %p320 = pneg %p172
      %p321 = pneg %p169
      %p322 = pneg %p193
      %p323 = pneg %p190
      %p324 = pneg %p221
      %p325 = pneg %p218
      %p326 = scmp.lt.s32.totalorder %s22, 1
      %s327 = scalar_select %p326, %s22, 1
      %p328 = scmp.lt.s32.totalorder %s23, 0
      %s329 = scalar_select %p328, %s23, 0
      %s330 = sadd.s32 %s329, %s327
      %s331 = smul.addr %s330, 4
      %s332 = scalar_lea.vmem %s7, %s331
      %p333 = scmp.lt.s32.totalorder %s22, 1
      %s334 = scalar_select %p333, %s22, 1
      %p335 = scmp.lt.s32.totalorder %s23, 0
      %s336 = scalar_select %p335, %s23, 0
      %s337 = sadd.s32 %s336, %s334
      %s338 = smul.addr %s337, 8
      %s339 = scalar_lea.vmem %s0, %s338
      %p340 = scmp.lt.s32.totalorder %s22, 1
      %s341 = scalar_select %p340, %s22, 1
      %p342 = scmp.lt.s32.totalorder %s23, 0
      %s343 = scalar_select %p342, %s23, 0
      %s344 = sadd.s32 %s343, %s341
      %s345 = smul.addr %s344, 8
      %s346 = scalar_lea.vmem %s1, %s345
      %p347 = scmp.lt.s32.totalorder %s22, 1
      %s348 = scalar_select %p347, %s22, 1
      %p349 = scmp.lt.s32.totalorder %s23, 0
      %s350 = scalar_select %p349, %s23, 0
      %s351 = sadd.s32 %s350, %s348
      %s352 = smul.addr %s351, 8
      %s353 = scalar_lea.vmem %s2, %s352
      %p354 = scmp.lt.s32.totalorder %s22, 1
      %s355 = scalar_select %p354, %s22, 1
      %p356 = scmp.lt.s32.totalorder %s23, 0
      %s357 = scalar_select %p356, %s23, 0
      %s358 = sadd.s32 %s357, %s355
      %s359 = smul.addr %s358, 4
      %s360 = scalar_lea.vmem %s7, %s359
      %p361 = scmp.eq.s32.totalorder %s23, 0
      // Predicated region
      $region49: #{v5tune_forward.12} parent=47 // pred_check
        %p362 = pneg %p361
      $region50: #{v5tune_forward.12} parent=47 // pred_check_branch
        %364 = sbr.rel (%p362) target = $region52
      $region51: #{v5tune_forward.12} parent=47 // pred_region
        %vm365 = vcmask 64512
        %366 = vst.msk [vmem:[#allocation2] sm:$0xff] %vm365, 0.0
        %367 = vst.msk [vmem:[#allocation2 + $0x8] sm:$0xff] %vm365, 0.0
        %368 = vst.msk [vmem:[#allocation2 + $0x10] sm:$0xff] %vm365, 0.0
        %369 = vst.msk [vmem:[#allocation2 + $0x18] sm:$0xff] %vm365, 0.0
      $region52: #{v5tune_forward.12} parent=47 // pred_fallthru
        _
      %v370 = vld [vmem:[%s339] sm:$0xff]
      %v371 = vld [vmem:[%s346] sm:$0xff]
      %v372 = vld [vmem:[%s353] sm:$0xff]
      %v373 = vld [vmem:[%s4] sm:$0x1]
      %v374 = vld [vmem:[%s5] sm:$0x1]
      %v375 = vld [vmem:[%s6] sm:$0xff]
      %v376 = vld [vmem:[%s6 + $0x8] sm:$0xff]
      %v377 = vld [vmem:[%s6 + $0x10] sm:$0xff]
      %v378 = vld [vmem:[%s6 + $0x18] sm:$0xff]
      %s379 = smul.u32 %s23, 8
      %s380 = scvt.s32.f32 %s379
      %v381 = vlaneseq
      %v382 = vshrl.u32 %v381, 7
      %v383 = vcvt.s32.f32 %v382
      %v384 = vstv %s380
      %v385 = vadd.f32 %v384, %v383
      %v387 = vlaneseq
      %v388 = vshrl.u32 %v387, 7
      %v389 = vsub.s32 0, %v388
      %v390 = vrot.slane %v373, %v389
      %v392 = vmul.f32 %v385, %v390
      %v393 = vmul.f32 %v392, 1.442695
      %v394 = vpow.pop %v393
      %v395 = vsub.f32 7.0, %v385
      %v396 = vmul.f32 %v395, %v390
      %v397 = vmul.f32 %v396, 1.442695
      %v398 = vpow.pop %v397
      %v399 = vmul.f32 %v370, %v394
      %v400 = vmul.f32 %v371, %v398
      %v402 = vlaneseq
      %v403 = vshrl.u32 %v402, 7
      %v404 = vsub.s32 0, %v403
      %v405 = vrot.slane %v374, %v404
      %v407 = vmul.f32 %v371, %v405
      %v408 = vmul.f32 %v407, %v370
      %vm409 = vcmask 261120
      %v411 = vsel %vm409, %v408, 0
      %413 = vmatprep.subr.mxu0 0.0
      %414 = vmatpush1.msra.mxu0 %v375
      %415 = vmatprep.subr.mxu0 0.0
      %416 = vmatpush1.msra.mxu0 %v376
      %417 = vmatprep.subr.mxu0 0.0
      %418 = vmatpush1.msra.mxu0 %v377
      %419 = vmatprep.subr.mxu0 0.0
      %420 = vmatpush1.msra.mxu0 %v378
      %421 = vmatprep.subr.mxu0 0.0
      %422 = vmatpush1.msra.mxu0 0.0
      %423 = vmatprep.subr.mxu0 0.0
      %424 = vmatpush1.msra.mxu0 0.0
      %425 = vmatprep.subr.mxu0 0.0
      %426 = vmatpush1.msra.mxu0 0.0
      %427 = vmatprep.subr.mxu0 0.0
      %428 = vmatpush1.msra.mxu0 0.0
      %429 = vmatprep.subr.mxu0 0.0
      %430 = vmatpush1.msra.mxu0 0.0
      %431 = vmatprep.subr.mxu0 0.0
      %432 = vmatpush1.msra.mxu0 0.0
      %433 = vmatprep.subr.mxu0 0.0
      %434 = vmatpush1.msra.mxu0 0.0
      %435 = vmatprep.subr.mxu0 0.0
      %436 = vmatpush1.msra.mxu0 0.0
      %437 = vmatprep.subr.mxu0 0.0
      %438 = vmatpush1.msra.mxu0 0.0
      %439 = vmatprep.subr.mxu0 0.0
      %440 = vmatpush1.msra.mxu0 0.0
      %441 = vmatprep.subr.mxu0 0.0
      %442 = vmatpush1.msra.mxu0 0.0
      %443 = vmatprep.subr.mxu0 0.0
      %444 = vmatpush1.msra.mxu0 0.0
      %445 = vmatprep.subr.mxu0 0.0
      %446 = vmatpush1.msra.mxu0 0.0
      %447 = vmatprep.subr.mxu0 0.0
      %448 = vmatpush1.msra.mxu0 0.0
      %449 = vmatprep.subr.mxu0 0.0
      %450 = vmatpush1.msra.mxu0 0.0
      %451 = vmatprep.subr.mxu0 0.0
      %452 = vmatpush1.msra.mxu0 0.0
      %453 = vmatprep.subr.mxu0 0.0
      %454 = vmatpush1.msra.mxu0 0.0
      %455 = vmatprep.subr.mxu0 0.0
      %456 = vmatpush1.msra.mxu0 0.0
      %457 = vmatprep.subr.mxu0 0.0
      %458 = vmatpush1.msra.mxu0 0.0
      %459 = vmatprep.subr.mxu0 0.0
      %460 = vmatpush1.msra.mxu0 0.0
      %461 = vmatprep.subr.mxu0 0.0
      %462 = vmatpush1.msra.mxu0 0.0
      %463 = vmatprep.subr.mxu0 0.0
      %464 = vmatpush1.msra.mxu0 0.0
      %465 = vmatprep.subr.mxu0 0.0
      %466 = vmatpush1.msra.mxu0 0.0
      %467 = vmatprep.subr.mxu0 0.0
      %468 = vmatpush1.msra.mxu0 0.0
      %469 = vmatprep.subr.mxu0 0.0
      %470 = vmatpush1.msra.mxu0 0.0
      %471 = vmatprep.subr.mxu0 0.0
      %472 = vmatpush1.msra.mxu0 0.0
      %473 = vmatprep.subr.mxu0 0.0
      %474 = vmatpush1.msra.mxu0 0.0
      %475 = vmatprep.subr.mxu0 0.0
      %476 = vmatpush1.msra.mxu0 0.0
      %477 = vmatprep.mubr.f32.mxu0 0.0
      %478 = vmatmul.mubr.f32.gmra.mrb[0].mxu0 %v411
      %v479 = vpop.f32.mrb[0].mxu0
      %v480 = vadd.f32 0.0, %v479
      %v481 = vpop.f32.mrb[0].mxu0
      %482 = vdwg.mxu0
      %vm483 = vcmask 31744
      %v485 = vsel %vm483, %v480, 0
      %v488 = vsel %vm483, %v375, 0
      %v491 = vsel %vm483, %v376, 0
      %v494 = vsel %vm483, %v377, 0
      %v497 = vsel %vm483, %v378, 0
      %499 = vmatprep.subr.mxu0 0.0
      %500 = vmatpush1.xpose.msra.mxu0 %v488
      %501 = vmatprep.subr.mxu0 0.0
      %502 = vmatpush1.xpose.msra.mxu0 %v491
      %503 = vmatprep.subr.mxu0 0.0
      %504 = vmatpush1.xpose.msra.mxu0 %v494
      %505 = vmatprep.subr.mxu0 0.0
      %506 = vmatpush1.xpose.msra.mxu0 %v497
      %507 = vmatprep.subr.mxu0 0.0
      %508 = vmatpush1.xpose.msra.mxu0 0.0
      %509 = vmatprep.subr.mxu0 0.0
      %510 = vmatpush1.xpose.msra.mxu0 0.0
      %511 = vmatprep.subr.mxu0 0.0
      %512 = vmatpush1.xpose.msra.mxu0 0.0
      %513 = vmatprep.subr.mxu0 0.0
      %514 = vmatpush1.xpose.msra.mxu0 0.0
      %515 = vmatprep.subr.mxu0 0.0
      %516 = vmatpush1.xpose.msra.mxu0 0.0
      %517 = vmatprep.subr.mxu0 0.0
      %518 = vmatpush1.xpose.msra.mxu0 0.0
      %519 = vmatprep.subr.mxu0 0.0
      %520 = vmatpush1.xpose.msra.mxu0 0.0
      %521 = vmatprep.subr.mxu0 0.0
      %522 = vmatpush1.xpose.msra.mxu0 0.0
      %523 = vmatprep.subr.mxu0 0.0
      %524 = vmatpush1.xpose.msra.mxu0 0.0
      %525 = vmatprep.subr.mxu0 0.0
      %526 = vmatpush1.xpose.msra.mxu0 0.0
      %527 = vmatprep.subr.mxu0 0.0
      %528 = vmatpush1.xpose.msra.mxu0 0.0
      %529 = vmatprep.subr.mxu0 0.0
      %530 = vmatpush1.xpose.msra.mxu0 0.0
      %531 = vmatprep.subr.mxu0 0.0
      %532 = vmatpush1.xpose.msra.mxu0 0.0
      %533 = vmatprep.subr.mxu0 0.0
      %534 = vmatpush1.xpose.msra.mxu0 0.0
      %535 = vmatprep.subr.mxu0 0.0
      %536 = vmatpush1.xpose.msra.mxu0 0.0
      %537 = vmatprep.subr.mxu0 0.0
      %538 = vmatpush1.xpose.msra.mxu0 0.0
      %539 = vmatprep.subr.mxu0 0.0
      %540 = vmatpush1.xpose.msra.mxu0 0.0
      %541 = vmatprep.subr.mxu0 0.0
      %542 = vmatpush1.xpose.msra.mxu0 0.0
      %543 = vmatprep.subr.mxu0 0.0
      %544 = vmatpush1.xpose.msra.mxu0 0.0
      %545 = vmatprep.subr.mxu0 0.0
      %546 = vmatpush1.xpose.msra.mxu0 0.0
      %547 = vmatprep.subr.mxu0 0.0
      %548 = vmatpush1.xpose.msra.mxu0 0.0
      %549 = vmatprep.subr.mxu0 0.0
      %550 = vmatpush1.xpose.msra.mxu0 0.0
      %551 = vmatprep.subr.mxu0 0.0
      %552 = vmatpush1.xpose.msra.mxu0 0.0
      %553 = vmatprep.subr.mxu0 0.0
      %554 = vmatpush1.xpose.msra.mxu0 0.0
      %555 = vmatprep.subr.mxu0 0.0
      %556 = vmatpush1.xpose.msra.mxu0 0.0
      %557 = vmatprep.subr.mxu0 0.0
      %558 = vmatpush1.xpose.msra.mxu0 0.0
      %559 = vmatprep.subr.mxu0 0.0
      %560 = vmatpush1.xpose.msra.mxu0 0.0
      %561 = vmatprep.subr.mxu0 0.0
      %562 = vmatpush1.xpose.msra.mxu0 0.0
      %563 = vmatprep.mubr.f32.mxu0 0.0
      %564 = vmatmul.mubr.f32.gmra.mrb[0].mxu0 %v485
      %v565 = vpop.f32.mrb[0].mxu0
      %v566 = vadd.f32 0.0, %v565
      %v567 = vpop.f32.mrb[0].mxu0
      %568 = vdwg.mxu0
      %v569 = vmul.f32 %v566, %v372
      %v570 = vlaneseq
      %v571 = vand.u32 %v570, 127
      %vm572 = vcmp.lt.s32.totalorder %v571, %v382
      %v573 = vld [vmem:[%s3] sm:$0xff]
      %v574 = vld [vmem:[#allocation2] sm:$0xff]
      %vm575 = vcmask 64512
      %v577 = vsel %vm575, %v370, 0
      %579 = vmatprep.subr.mxu0 0.0
      %580 = vmatpush1.msra.mxu0 %v574
      %581 = vmatprep.subr.mxu0 0.0
      %582 = vmatpush1.msra.mxu0 0.0
      %583 = vmatprep.subr.mxu0 0.0
      %584 = vmatpush1.msra.mxu0 0.0
      %585 = vmatprep.subr.mxu0 0.0
      %586 = vmatpush1.msra.mxu0 0.0
      %587 = vmatprep.subr.mxu0 0.0
      %588 = vmatpush1.msra.mxu0 0.0
      %589 = vmatprep.subr.mxu0 0.0
      %590 = vmatpush1.msra.mxu0 0.0
      %591 = vmatprep.subr.mxu0 0.0
      %592 = vmatpush1.msra.mxu0 0.0
      %593 = vmatprep.subr.mxu0 0.0
      %594 = vmatpush1.msra.mxu0 0.0
      %595 = vmatprep.subr.mxu0 0.0
      %596 = vmatpush1.msra.mxu0 0.0
      %597 = vmatprep.subr.mxu0 0.0
      %598 = vmatpush1.msra.mxu0 0.0
      %599 = vmatprep.subr.mxu0 0.0
      %600 = vmatpush1.msra.mxu0 0.0
      %601 = vmatprep.subr.mxu0 0.0
      %602 = vmatpush1.msra.mxu0 0.0
      %603 = vmatprep.subr.mxu0 0.0
      %604 = vmatpush1.msra.mxu0 0.0
      %605 = vmatprep.subr.mxu0 0.0
      %606 = vmatpush1.msra.mxu0 0.0
      %607 = vmatprep.subr.mxu0 0.0
      %608 = vmatpush1.msra.mxu0 0.0
      %609 = vmatprep.subr.mxu0 0.0
      %610 = vmatpush1.msra.mxu0 0.0
      %611 = vmatprep.subr.mxu0 0.0
      %612 = vmatpush1.msra.mxu0 0.0
      %613 = vmatprep.subr.mxu0 0.0
      %614 = vmatpush1.msra.mxu0 0.0
      %615 = vmatprep.subr.mxu0 0.0
      %616 = vmatpush1.msra.mxu0 0.0
      %617 = vmatprep.subr.mxu0 0.0
      %618 = vmatpush1.msra.mxu0 0.0
      %619 = vmatprep.subr.mxu0 0.0
      %620 = vmatpush1.msra.mxu0 0.0
      %621 = vmatprep.subr.mxu0 0.0
      %622 = vmatpush1.msra.mxu0 0.0
      %623 = vmatprep.subr.mxu0 0.0
      %624 = vmatpush1.msra.mxu0 0.0
      %625 = vmatprep.subr.mxu0 0.0
      %626 = vmatpush1.msra.mxu0 0.0
      %627 = vmatprep.subr.mxu0 0.0
      %628 = vmatpush1.msra.mxu0 0.0
      %629 = vmatprep.subr.mxu0 0.0
      %630 = vmatpush1.msra.mxu0 0.0
      %631 = vmatprep.subr.mxu0 0.0
      %632 = vmatpush1.msra.mxu0 0.0
      %633 = vmatprep.subr.mxu0 0.0
      %634 = vmatpush1.msra.mxu0 0.0
      %635 = vmatprep.subr.mxu0 0.0
      %636 = vmatpush1.msra.mxu0 0.0
      %637 = vmatprep.subr.mxu0 0.0
      %638 = vmatpush1.msra.mxu0 0.0
      %639 = vmatprep.subr.mxu0 0.0
      %640 = vmatpush1.msra.mxu0 0.0
      %641 = vmatprep.subr.mxu0 0.0
      %642 = vmatpush1.msra.mxu0 0.0
      %643 = vmatprep.mubr.f32.mxu0 0.0
      %644 = vmatmul.mubr.f32.gmra.mrb[0].mxu0 %v577
      %v645 = vpop.f32.mrb[0].mxu0
      %v646 = vadd.f32 0.0, %v645
      %v647 = vpop.f32.mrb[0].mxu0
      %648 = vdwg.mxu0
      %v650 = vsel %vm575, %v399, 0
      %652 = vmatprep.subr.mxu0 0.0
      %653 = vmatpush1.msra.mxu0 %v573
      %654 = vmatprep.subr.mxu0 0.0
      %655 = vmatpush1.msra.mxu0 0.0
      %656 = vmatprep.subr.mxu0 0.0
      %657 = vmatpush1.msra.mxu0 0.0
      %658 = vmatprep.subr.mxu0 0.0
      %659 = vmatpush1.msra.mxu0 0.0
      %660 = vmatprep.subr.mxu0 0.0
      %661 = vmatpush1.msra.mxu0 0.0
      %662 = vmatprep.subr.mxu0 0.0
      %663 = vmatpush1.msra.mxu0 0.0
      %664 = vmatprep.subr.mxu0 0.0
      %665 = vmatpush1.msra.mxu0 0.0
      %666 = vmatprep.subr.mxu0 0.0
      %667 = vmatpush1.msra.mxu0 0.0
      %668 = vmatprep.subr.mxu0 0.0
      %669 = vmatpush1.msra.mxu0 0.0
      %670 = vmatprep.subr.mxu0 0.0
      %671 = vmatpush1.msra.mxu0 0.0
      %672 = vmatprep.subr.mxu0 0.0
      %673 = vmatpush1.msra.mxu0 0.0
      %674 = vmatprep.subr.mxu0 0.0
      %675 = vmatpush1.msra.mxu0 0.0
      %676 = vmatprep.subr.mxu0 0.0
      %677 = vmatpush1.msra.mxu0 0.0
      %678 = vmatprep.subr.mxu0 0.0
      %679 = vmatpush1.msra.mxu0 0.0
      %680 = vmatprep.subr.mxu0 0.0
      %681 = vmatpush1.msra.mxu0 0.0
      %682 = vmatprep.subr.mxu0 0.0
      %683 = vmatpush1.msra.mxu0 0.0
      %684 = vmatprep.subr.mxu0 0.0
      %685 = vmatpush1.msra.mxu0 0.0
      %686 = vmatprep.subr.mxu0 0.0
      %687 = vmatpush1.msra.mxu0 0.0
      %688 = vmatprep.subr.mxu0 0.0
      %689 = vmatpush1.msra.mxu0 0.0
      %690 = vmatprep.subr.mxu0 0.0
      %691 = vmatpush1.msra.mxu0 0.0
      %692 = vmatprep.subr.mxu0 0.0
      %693 = vmatpush1.msra.mxu0 0.0
      %694 = vmatprep.subr.mxu0 0.0
      %695 = vmatpush1.msra.mxu0 0.0
      %696 = vmatprep.subr.mxu0 0.0
      %697 = vmatpush1.msra.mxu0 0.0
      %698 = vmatprep.subr.mxu0 0.0
      %699 = vmatpush1.msra.mxu0 0.0
      %700 = vmatprep.subr.mxu0 0.0
      %701 = vmatpush1.msra.mxu0 0.0
      %702 = vmatprep.subr.mxu0 0.0
      %703 = vmatpush1.msra.mxu0 0.0
      %704 = vmatprep.subr.mxu0 0.0
      %705 = vmatpush1.msra.mxu0 0.0
      %706 = vmatprep.subr.mxu0 0.0
      %707 = vmatpush1.msra.mxu0 0.0
      %708 = vmatprep.subr.mxu0 0.0
      %709 = vmatpush1.msra.mxu0 0.0
      %710 = vmatprep.subr.mxu0 0.0
      %711 = vmatpush1.msra.mxu0 0.0
      %712 = vmatprep.subr.mxu0 0.0
      %713 = vmatpush1.msra.mxu0 0.0
      %714 = vmatprep.subr.mxu0 0.0
      %715 = vmatpush1.msra.mxu0 0.0
      %716 = vmatprep.mubr.f32.mxu0 0.0
      %717 = vmatmul.mubr.f32.gmra.mrb[0].mxu0 %v650
      %v718 = vpop.f32.mrb[0].mxu0
      %v719 = vadd.f32 %v646, %v718
      %v720 = vpop.f32.mrb[0].mxu0
      %721 = vdwg.mxu0
      %v723 = vsel %vm575, %v400, 0
      %725 = vmatprep.subr.mxu0 0.0
      %726 = vmatpush1.xpose.msra.mxu0 %v723
      %727 = vmatprep.subr.mxu0 0.0
      %728 = vmatpush1.xpose.msra.mxu0 0.0
      %729 = vmatprep.subr.mxu0 0.0
      %730 = vmatpush1.xpose.msra.mxu0 0.0
      %731 = vmatprep.subr.mxu0 0.0
      %732 = vmatpush1.xpose.msra.mxu0 0.0
      %733 = vmatprep.subr.mxu0 0.0
      %734 = vmatpush1.xpose.msra.mxu0 0.0
      %735 = vmatprep.subr.mxu0 0.0
      %736 = vmatpush1.xpose.msra.mxu0 0.0
      %737 = vmatprep.subr.mxu0 0.0
      %738 = vmatpush1.xpose.msra.mxu0 0.0
      %739 = vmatprep.subr.mxu0 0.0
      %740 = vmatpush1.xpose.msra.mxu0 0.0
      %741 = vmatprep.subr.mxu0 0.0
      %742 = vmatpush1.xpose.msra.mxu0 0.0
      %743 = vmatprep.subr.mxu0 0.0
      %744 = vmatpush1.xpose.msra.mxu0 0.0
      %745 = vmatprep.subr.mxu0 0.0
      %746 = vmatpush1.xpose.msra.mxu0 0.0
      %747 = vmatprep.subr.mxu0 0.0
      %748 = vmatpush1.xpose.msra.mxu0 0.0
      %749 = vmatprep.subr.mxu0 0.0
      %750 = vmatpush1.xpose.msra.mxu0 0.0
      %751 = vmatprep.subr.mxu0 0.0
      %752 = vmatpush1.xpose.msra.mxu0 0.0
      %753 = vmatprep.subr.mxu0 0.0
      %754 = vmatpush1.xpose.msra.mxu0 0.0
      %755 = vmatprep.subr.mxu0 0.0
      %756 = vmatpush1.xpose.msra.mxu0 0.0
      %757 = vmatprep.subr.mxu0 0.0
      %758 = vmatpush1.xpose.msra.mxu0 0.0
      %759 = vmatprep.subr.mxu0 0.0
      %760 = vmatpush1.xpose.msra.mxu0 0.0
      %761 = vmatprep.subr.mxu0 0.0
      %762 = vmatpush1.xpose.msra.mxu0 0.0
      %763 = vmatprep.subr.mxu0 0.0
      %764 = vmatpush1.xpose.msra.mxu0 0.0
      %765 = vmatprep.subr.mxu0 0.0
      %766 = vmatpush1.xpose.msra.mxu0 0.0
      %767 = vmatprep.subr.mxu0 0.0
      %768 = vmatpush1.xpose.msra.mxu0 0.0
      %769 = vmatprep.subr.mxu0 0.0
      %770 = vmatpush1.xpose.msra.mxu0 0.0
      %771 = vmatprep.subr.mxu0 0.0
      %772 = vmatpush1.xpose.msra.mxu0 0.0
      %773 = vmatprep.subr.mxu0 0.0
      %774 = vmatpush1.xpose.msra.mxu0 0.0
      %775 = vmatprep.subr.mxu0 0.0
      %776 = vmatpush1.xpose.msra.mxu0 0.0
      %777 = vmatprep.subr.mxu0 0.0
      %778 = vmatpush1.xpose.msra.mxu0 0.0
      %779 = vmatprep.subr.mxu0 0.0
      %780 = vmatpush1.xpose.msra.mxu0 0.0
      %781 = vmatprep.subr.mxu0 0.0
      %782 = vmatpush1.xpose.msra.mxu0 0.0
      %783 = vmatprep.subr.mxu0 0.0
      %784 = vmatpush1.xpose.msra.mxu0 0.0
      %785 = vmatprep.subr.mxu0 0.0
      %786 = vmatpush1.xpose.msra.mxu0 0.0
      %787 = vmatprep.subr.mxu0 0.0
      %788 = vmatpush1.xpose.msra.mxu0 0.0
      %789 = vmatprep.mubr.f32.mxu0 0.0
      %790 = vmatmul.mubr.f32.gmra.mrb[0].mxu0 %v577
      %v791 = vpop.f32.mrb[0].mxu0
      %v792 = vadd.f32 0.0, %v791
      %v793 = vpop.f32.mrb[0].mxu0
      %794 = vdwg.mxu0
      %v795 = vsel %vm572, %v792, 0.0
      %v797 = vsel %vm575, %v795, 0
      %799 = vmatprep.subr.mxu0 0.0
      %800 = vmatpush1.msra.mxu0 %v372
      %801 = vmatprep.subr.mxu0 0.0
      %802 = vmatpush1.msra.mxu0 0.0
      %803 = vmatprep.subr.mxu0 0.0
      %804 = vmatpush1.msra.mxu0 0.0
      %805 = vmatprep.subr.mxu0 0.0
      %806 = vmatpush1.msra.mxu0 0.0
      %807 = vmatprep.subr.mxu0 0.0
      %808 = vmatpush1.msra.mxu0 0.0
      %809 = vmatprep.subr.mxu0 0.0
      %810 = vmatpush1.msra.mxu0 0.0
      %811 = vmatprep.subr.mxu0 0.0
      %812 = vmatpush1.msra.mxu0 0.0
      %813 = vmatprep.subr.mxu0 0.0
      %814 = vmatpush1.msra.mxu0 0.0
      %815 = vmatprep.subr.mxu0 0.0
      %816 = vmatpush1.msra.mxu0 0.0
      %817 = vmatprep.subr.mxu0 0.0
      %818 = vmatpush1.msra.mxu0 0.0
      %819 = vmatprep.subr.mxu0 0.0
      %820 = vmatpush1.msra.mxu0 0.0
      %821 = vmatprep.subr.mxu0 0.0
      %822 = vmatpush1.msra.mxu0 0.0
      %823 = vmatprep.subr.mxu0 0.0
      %824 = vmatpush1.msra.mxu0 0.0
      %825 = vmatprep.subr.mxu0 0.0
      %826 = vmatpush1.msra.mxu0 0.0
      %827 = vmatprep.subr.mxu0 0.0
      %828 = vmatpush1.msra.mxu0 0.0
      %829 = vmatprep.subr.mxu0 0.0
      %830 = vmatpush1.msra.mxu0 0.0
      %831 = vmatprep.subr.mxu0 0.0
      %832 = vmatpush1.msra.mxu0 0.0
      %833 = vmatprep.subr.mxu0 0.0
      %834 = vmatpush1.msra.mxu0 0.0
      %835 = vmatprep.subr.mxu0 0.0
      %836 = vmatpush1.msra.mxu0 0.0
      %837 = vmatprep.subr.mxu0 0.0
      %838 = vmatpush1.msra.mxu0 0.0
      %839 = vmatprep.subr.mxu0 0.0
      %840 = vmatpush1.msra.mxu0 0.0
      %841 = vmatprep.subr.mxu0 0.0
      %842 = vmatpush1.msra.mxu0 0.0
      %843 = vmatprep.subr.mxu0 0.0
      %844 = vmatpush1.msra.mxu0 0.0
      %845 = vmatprep.subr.mxu0 0.0
      %846 = vmatpush1.msra.mxu0 0.0
      %847 = vmatprep.subr.mxu0 0.0
      %848 = vmatpush1.msra.mxu0 0.0
      %849 = vmatprep.subr.mxu0 0.0
      %850 = vmatpush1.msra.mxu0 0.0
      %851 = vmatprep.subr.mxu0 0.0
      %852 = vmatpush1.msra.mxu0 0.0
      %853 = vmatprep.subr.mxu0 0.0
      %854 = vmatpush1.msra.mxu0 0.0
      %855 = vmatprep.subr.mxu0 0.0
      %856 = vmatpush1.msra.mxu0 0.0
      %857 = vmatprep.subr.mxu0 0.0
      %858 = vmatpush1.msra.mxu0 0.0
      %859 = vmatprep.subr.mxu0 0.0
      %860 = vmatpush1.msra.mxu0 0.0
      %861 = vmatprep.subr.mxu0 0.0
      %862 = vmatpush1.msra.mxu0 0.0
      %863 = vmatprep.mubr.f32.mxu0 0.0
      %864 = vmatmul.mubr.f32.gmra.mrb[0].mxu0 %v797
      %v865 = vpop.f32.mrb[0].mxu0
      %v866 = vadd.f32 0.0, %v865
      %v867 = vpop.f32.mrb[0].mxu0
      %868 = vdwg.mxu0
      %v869 = vadd.f32 %v719, %v866
      %870 = vxpose.xlu0.b32.start [1/16] %v400, 128
      %871 = vxpose.xlu0.b32.cont [2/16] 0.0, 128
      %872 = vxpose.xlu0.b32.cont [3/16] 0.0, 128
      %873 = vxpose.xlu0.b32.cont [4/16] 0.0, 128
      %874 = vxpose.xlu0.b32.cont [5/16] 0.0, 128
      %875 = vxpose.xlu0.b32.cont [6/16] 0.0, 128
      %876 = vxpose.xlu0.b32.cont [7/16] 0.0, 128
      %877 = vxpose.xlu0.b32.cont [8/16] 0.0, 128
      %878 = vxpose.xlu0.b32.cont [9/16] 0.0, 128
      %879 = vxpose.xlu0.b32.cont [10/16] 0.0, 128
      %880 = vxpose.xlu0.b32.cont [11/16] 0.0, 128
      %881 = vxpose.xlu0.b32.cont [12/16] 0.0, 128
      %882 = vxpose.xlu0.b32.cont [13/16] 0.0, 128
      %883 = vxpose.xlu0.b32.cont [14/16] 0.0, 128
      %884 = vxpose.xlu0.b32.cont [15/16] 0.0, 128
      %885 = vxpose.xlu0.b32.end [16/16] 0.0, 128
      %v886 = vpop.trf.xlu0
      %v887 = vpop.trf.xlu0
      %v888 = vpop.trf.xlu0
      %v889 = vpop.trf.xlu0
      %v890 = vpop.trf.xlu0
      %v891 = vpop.trf.xlu0
      %v892 = vpop.trf.xlu0
      %v893 = vpop.trf.xlu0
      %v894 = vpop.trf.xlu0
      %v895 = vpop.trf.xlu0
      %v896 = vpop.trf.xlu0
      %v897 = vpop.trf.xlu0
      %v898 = vpop.trf.xlu0
      %v899 = vpop.trf.xlu0
      %v900 = vpop.trf.xlu0
      %v901 = vpop.trf.xlu0
      %v903 = vsel %vm575, %v886, 0
      %905 = vmatprep.subr.mxu0 0.0
      %906 = vmatpush1.msra.mxu0 %v372
      %907 = vmatprep.subr.mxu0 0.0
      %908 = vmatpush1.msra.mxu0 0.0
      %909 = vmatprep.subr.mxu0 0.0
      %910 = vmatpush1.msra.mxu0 0.0
      %911 = vmatprep.subr.mxu0 0.0
      %912 = vmatpush1.msra.mxu0 0.0
      %913 = vmatprep.subr.mxu0 0.0
      %914 = vmatpush1.msra.mxu0 0.0
      %915 = vmatprep.subr.mxu0 0.0
      %916 = vmatpush1.msra.mxu0 0.0
      %917 = vmatprep.subr.mxu0 0.0
      %918 = vmatpush1.msra.mxu0 0.0
      %919 = vmatprep.subr.mxu0 0.0
      %920 = vmatpush1.msra.mxu0 0.0
      %921 = vmatprep.subr.mxu0 0.0
      %922 = vmatpush1.msra.mxu0 0.0
      %923 = vmatprep.subr.mxu0 0.0
      %924 = vmatpush1.msra.mxu0 0.0
      %925 = vmatprep.subr.mxu0 0.0
      %926 = vmatpush1.msra.mxu0 0.0
      %927 = vmatprep.subr.mxu0 0.0
      %928 = vmatpush1.msra.mxu0 0.0
      %929 = vmatprep.subr.mxu0 0.0
      %930 = vmatpush1.msra.mxu0 0.0
      %931 = vmatprep.subr.mxu0 0.0
      %932 = vmatpush1.msra.mxu0 0.0
      %933 = vmatprep.subr.mxu0 0.0
      %934 = vmatpush1.msra.mxu0 0.0
      %935 = vmatprep.subr.mxu0 0.0
      %936 = vmatpush1.msra.mxu0 0.0
      %937 = vmatprep.subr.mxu0 0.0
      %938 = vmatpush1.msra.mxu0 0.0
      %939 = vmatprep.subr.mxu0 0.0
      %940 = vmatpush1.msra.mxu0 0.0
      %941 = vmatprep.subr.mxu0 0.0
      %942 = vmatpush1.msra.mxu0 0.0
      %943 = vmatprep.subr.mxu0 0.0
      %944 = vmatpush1.msra.mxu0 0.0
      %945 = vmatprep.subr.mxu0 0.0
      %946 = vmatpush1.msra.mxu0 0.0
      %947 = vmatprep.subr.mxu0 0.0
      %948 = vmatpush1.msra.mxu0 0.0
      %949 = vmatprep.subr.mxu0 0.0
      %950 = vmatpush1.msra.mxu0 0.0
      %951 = vmatprep.subr.mxu0 0.0
      %952 = vmatpush1.msra.mxu0 0.0
      %953 = vmatprep.subr.mxu0 0.0
      %954 = vmatpush1.msra.mxu0 0.0
      %955 = vmatprep.subr.mxu0 0.0
      %956 = vmatpush1.msra.mxu0 0.0
      %957 = vmatprep.subr.mxu0 0.0
      %958 = vmatpush1.msra.mxu0 0.0
      %959 = vmatprep.subr.mxu0 0.0
      %960 = vmatpush1.msra.mxu0 0.0
      %961 = vmatprep.subr.mxu0 0.0
      %962 = vmatpush1.msra.mxu0 0.0
      %963 = vmatprep.subr.mxu0 0.0
      %964 = vmatpush1.msra.mxu0 0.0
      %965 = vmatprep.subr.mxu0 0.0
      %966 = vmatpush1.msra.mxu0 0.0
      %967 = vmatprep.subr.mxu0 0.0
      %968 = vmatpush1.msra.mxu0 0.0
      %969 = vmatprep.mubr.f32.mxu0 0.0
      %970 = vmatmul.mubr.f32.gmra.mrb[0].mxu0 %v903
      %v971 = vpop.f32.mrb[0].mxu0
      %v972 = vadd.f32 0.0, %v971
      %v973 = vpop.f32.mrb[0].mxu0
      %974 = vdwg.mxu0
      %v975 = vadd.f32 %v574, %v972
      %976 = vst.msk [vmem:[#allocation2] sm:$0xff] %vm575, %v975
      %s977 = scalar_lea.vmem %s3, 8
      %v978 = vld [vmem:[%s977] sm:$0xff]
      %s979 = scalar_lea.vmem [#allocation2], 8
      %v980 = vld [vmem:[%s979] sm:$0xff]
      %981 = vrot.lane.b32.xlu0 %v370, 120
      %v982 = vpop.permute.xlu0 %981
      %v983 = vsel %vm575, %v982, 0
      %985 = vmatprep.subr.mxu0 0.0
      %986 = vmatpush1.msra.mxu0 %v980
      %987 = vmatprep.subr.mxu0 0.0
      %988 = vmatpush1.msra.mxu0 0.0
      %989 = vmatprep.subr.mxu0 0.0
      %990 = vmatpush1.msra.mxu0 0.0
      %991 = vmatprep.subr.mxu0 0.0
      %992 = vmatpush1.msra.mxu0 0.0
      %993 = vmatprep.subr.mxu0 0.0
      %994 = vmatpush1.msra.mxu0 0.0
      %995 = vmatprep.subr.mxu0 0.0
      %996 = vmatpush1.msra.mxu0 0.0
      %997 = vmatprep.subr.mxu0 0.0
      %998 = vmatpush1.msra.mxu0 0.0
      %999 = vmatprep.subr.mxu0 0.0
      %1000 = vmatpush1.msra.mxu0 0.0
      %1001 = vmatprep.subr.mxu0 0.0
      %1002 = vmatpush1.msra.mxu0 0.0
      %1003 = vmatprep.subr.mxu0 0.0
      %1004 = vmatpush1.msra.mxu0 0.0
      %1005 = vmatprep.subr.mxu0 0.0
      %1006 = vmatpush1.msra.mxu0 0.0
      %1007 = vmatprep.subr.mxu0 0.0
      %1008 = vmatpush1.msra.mxu0 0.0
      %1009 = vmatprep.subr.mxu0 0.0
      %1010 = vmatpush1.msra.mxu0 0.0
      %1011 = vmatprep.subr.mxu0 0.0
      %1012 = vmatpush1.msra.mxu0 0.0
      %1013 = vmatprep.subr.mxu0 0.0
      %1014 = vmatpush1.msra.mxu0 0.0
      %1015 = vmatprep.subr.mxu0 0.0
      %1016 = vmatpush1.msra.mxu0 0.0
      %1017 = vmatprep.subr.mxu0 0.0
      %1018 = vmatpush1.msra.mxu0 0.0
      %1019 = vmatprep.subr.mxu0 0.0
      %1020 = vmatpush1.msra.mxu0 0.0
      %1021 = vmatprep.subr.mxu0 0.0
      %1022 = vmatpush1.msra.mxu0 0.0
      %1023 = vmatprep.subr.mxu0 0.0
      %1024 = vmatpush1.msra.mxu0 0.0
      %1025 = vmatprep.subr.mxu0 0.0
      %1026 = vmatpush1.msra.mxu0 0.0
      %1027 = vmatprep.subr.mxu0 0.0
      %1028 = vmatpush1.msra.mxu0 0.0
      %1029 = vmatprep.subr.mxu0 0.0
      %1030 = vmatpush1.msra.mxu0 0.0
      %1031 = vmatprep.subr.mxu0 0.0
      %1032 = vmatpush1.msra.mxu0 0.0
      %1033 = vmatprep.subr.mxu0 0.0
      %1034 = vmatpush1.msra.mxu0 0.0
      %1035 = vmatprep.subr.mxu0 0.0
      %1036 = vmatpush1.msra.mxu0 0.0
      %1037 = vmatprep.subr.mxu0 0.0
      %1038 = vmatpush1.msra.mxu0 0.0
      %1039 = vmatprep.subr.mxu0 0.0
      %1040 = vmatpush1.msra.mxu0 0.0
      %1041 = vmatprep.subr.mxu0 0.0
      %1042 = vmatpush1.msra.mxu0 0.0
      %1043 = vmatprep.subr.mxu0 0.0
      %1044 = vmatpush1.msra.mxu0 0.0
      %1045 = vmatprep.subr.mxu0 0.0
      %1046 = vmatpush1.msra.mxu0 0.0
      %1047 = vmatprep.subr.mxu0 0.0
      %1048 = vmatpush1.msra.mxu0 0.0
      %1049 = vmatprep.mubr.f32.mxu0 0.0
      %1050 = vmatmul.mubr.f32.gmra.mrb[0].mxu0 %v983
      %v1051 = vpop.f32.mrb[0].mxu0
      %v1052 = vadd.f32 0.0, %v1051
      %v1053 = vpop.f32.mrb[0].mxu0
      %1054 = vdwg.mxu0
      %1055 = vrot.lane.b32.xlu0 %v399, 120
      %v1056 = vpop.permute.xlu0 %1055
      %v1057 = vsel %vm575, %v1056, 0
      %1059 = vmatprep.subr.mxu0 0.0
      %1060 = vmatpush1.msra.mxu0 %v978
      %1061 = vmatprep.subr.mxu0 0.0
      %1062 = vmatpush1.msra.mxu0 0.0
      %1063 = vmatprep.subr.mxu0 0.0
      %1064 = vmatpush1.msra.mxu0 0.0
      %1065 = vmatprep.subr.mxu0 0.0
      %1066 = vmatpush1.msra.mxu0 0.0
      %1067 = vmatprep.subr.mxu0 0.0
      %1068 = vmatpush1.msra.mxu0 0.0
      %1069 = vmatprep.subr.mxu0 0.0
      %1070 = vmatpush1.msra.mxu0 0.0
      %1071 = vmatprep.subr.mxu0 0.0
      %1072 = vmatpush1.msra.mxu0 0.0
      %1073 = vmatprep.subr.mxu0 0.0
      %1074 = vmatpush1.msra.mxu0 0.0
      %1075 = vmatprep.subr.mxu0 0.0
      %1076 = vmatpush1.msra.mxu0 0.0
      %1077 = vmatprep.subr.mxu0 0.0
      %1078 = vmatpush1.msra.mxu0 0.0
      %1079 = vmatprep.subr.mxu0 0.0
      %1080 = vmatpush1.msra.mxu0 0.0
      %1081 = vmatprep.subr.mxu0 0.0
      %1082 = vmatpush1.msra.mxu0 0.0
      %1083 = vmatprep.subr.mxu0 0.0
      %1084 = vmatpush1.msra.mxu0 0.0
      %1085 = vmatprep.subr.mxu0 0.0
      %1086 = vmatpush1.msra.mxu0 0.0
      %1087 = vmatprep.subr.mxu0 0.0
      %1088 = vmatpush1.msra.mxu0 0.0
      %1089 = vmatprep.subr.mxu0 0.0
      %1090 = vmatpush1.msra.mxu0 0.0
      %1091 = vmatprep.subr.mxu0 0.0
      %1092 = vmatpush1.msra.mxu0 0.0
      %1093 = vmatprep.subr.mxu0 0.0
      %1094 = vmatpush1.msra.mxu0 0.0
      %1095 = vmatprep.subr.mxu0 0.0
      %1096 = vmatpush1.msra.mxu0 0.0
      %1097 = vmatprep.subr.mxu0 0.0
      %1098 = vmatpush1.msra.mxu0 0.0
      %1099 = vmatprep.subr.mxu0 0.0
      %1100 = vmatpush1.msra.mxu0 0.0
      %1101 = vmatprep.subr.mxu0 0.0
      %1102 = vmatpush1.msra.mxu0 0.0
      %1103 = vmatprep.subr.mxu0 0.0
      %1104 = vmatpush1.msra.mxu0 0.0
      %1105 = vmatprep.subr.mxu0 0.0
      %1106 = vmatpush1.msra.mxu0 0.0
      %1107 = vmatprep.subr.mxu0 0.0
      %1108 = vmatpush1.msra.mxu0 0.0
      %1109 = vmatprep.subr.mxu0 0.0
      %1110 = vmatpush1.msra.mxu0 0.0
      %1111 = vmatprep.subr.mxu0 0.0
      %1112 = vmatpush1.msra.mxu0 0.0
      %1113 = vmatprep.subr.mxu0 0.0
      %1114 = vmatpush1.msra.mxu0 0.0
      %1115 = vmatprep.subr.mxu0 0.0
      %1116 = vmatpush1.msra.mxu0 0.0
      %1117 = vmatprep.subr.mxu0 0.0
      %1118 = vmatpush1.msra.mxu0 0.0
      %1119 = vmatprep.subr.mxu0 0.0
      %1120 = vmatpush1.msra.mxu0 0.0
      %1121 = vmatprep.subr.mxu0 0.0
      %1122 = vmatpush1.msra.mxu0 0.0
      %1123 = vmatprep.mubr.f32.mxu0 0.0
      %1124 = vmatmul.mubr.f32.gmra.mrb[0].mxu0 %v1057
      %v1125 = vpop.f32.mrb[0].mxu0
      %v1126 = vadd.f32 %v1052, %v1125
      %v1127 = vpop.f32.mrb[0].mxu0
      %1128 = vdwg.mxu0
      %1129 = vrot.lane.b32.xlu0 %v400, 120
      %v1130 = vpop.permute.xlu0 %1129
      %v1131 = vsel %vm575, %v1130, 0
      %1133 = vmatprep.subr.mxu0 0.0
      %1134 = vmatpush1.xpose.msra.mxu0 %v1131
      %1135 = vmatprep.subr.mxu0 0.0
      %1136 = vmatpush1.xpose.msra.mxu0 0.0
      %1137 = vmatprep.subr.mxu0 0.0
      %1138 = vmatpush1.xpose.msra.mxu0 0.0
      %1139 = vmatprep.subr.mxu0 0.0
      %1140 = vmatpush1.xpose.msra.mxu0 0.0
      %1141 = vmatprep.subr.mxu0 0.0
      %1142 = vmatpush1.xpose.msra.mxu0 0.0
      %1143 = vmatprep.subr.mxu0 0.0
      %1144 = vmatpush1.xpose.msra.mxu0 0.0
      %1145 = vmatprep.subr.mxu0 0.0
      %1146 = vmatpush1.xpose.msra.mxu0 0.0
      %1147 = vmatprep.subr.mxu0 0.0
      %1148 = vmatpush1.xpose.msra.mxu0 0.0
      %1149 = vmatprep.subr.mxu0 0.0
      %1150 = vmatpush1.xpose.msra.mxu0 0.0
      %1151 = vmatprep.subr.mxu0 0.0
      %1152 = vmatpush1.xpose.msra.mxu0 0.0
      %1153 = vmatprep.subr.mxu0 0.0
      %1154 = vmatpush1.xpose.msra.mxu0 0.0
      %1155 = vmatprep.subr.mxu0 0.0
      %1156 = vmatpush1.xpose.msra.mxu0 0.0
      %1157 = vmatprep.subr.mxu0 0.0
      %1158 = vmatpush1.xpose.msra.mxu0 0.0
      %1159 = vmatprep.subr.mxu0 0.0
      %1160 = vmatpush1.xpose.msra.mxu0 0.0
      %1161 = vmatprep.subr.mxu0 0.0
      %1162 = vmatpush1.xpose.msra.mxu0 0.0
      %1163 = vmatprep.subr.mxu0 0.0
      %1164 = vmatpush1.xpose.msra.mxu0 0.0
      %1165 = vmatprep.subr.mxu0 0.0
      %1166 = vmatpush1.xpose.msra.mxu0 0.0
      %1167 = vmatprep.subr.mxu0 0.0
      %1168 = vmatpush1.xpose.msra.mxu0 0.0
      %1169 = vmatprep.subr.mxu0 0.0
      %1170 = vmatpush1.xpose.msra.mxu0 0.0
      %1171 = vmatprep.subr.mxu0 0.0
      %1172 = vmatpush1.xpose.msra.mxu0 0.0
      %1173 = vmatprep.subr.mxu0 0.0
      %1174 = vmatpush1.xpose.msra.mxu0 0.0
      %1175 = vmatprep.subr.mxu0 0.0
      %1176 = vmatpush1.xpose.msra.mxu0 0.0
      %1177 = vmatprep.subr.mxu0 0.0
      %1178 = vmatpush1.xpose.msra.mxu0 0.0
      %1179 = vmatprep.subr.mxu0 0.0
      %1180 = vmatpush1.xpose.msra.mxu0 0.0
      %1181 = vmatprep.subr.mxu0 0.0
      %1182 = vmatpush1.xpose.msra.mxu0 0.0
      %1183 = vmatprep.subr.mxu0 0.0
      %1184 = vmatpush1.xpose.msra.mxu0 0.0
      %1185 = vmatprep.subr.mxu0 0.0
      %1186 = vmatpush1.xpose.msra.mxu0 0.0
      %1187 = vmatprep.subr.mxu0 0.0
      %1188 = vmatpush1.xpose.msra.mxu0 0.0
      %1189 = vmatprep.subr.mxu0 0.0
      %1190 = vmatpush1.xpose.msra.mxu0 0.0
      %1191 = vmatprep.subr.mxu0 0.0
      %1192 = vmatpush1.xpose.msra.mxu0 0.0
      %1193 = vmatprep.subr.mxu0 0.0
      %1194 = vmatpush1.xpose.msra.mxu0 0.0
      %1195 = vmatprep.subr.mxu0 0.0
      %1196 = vmatpush1.xpose.msra.mxu0 0.0
      %1197 = vmatprep.mubr.f32.mxu0 0.0
      %1198 = vmatmul.mubr.f32.gmra.mrb[0].mxu0 %v983
      %v1199 = vpop.f32.mrb[0].mxu0
      %v1200 = vadd.f32 0.0, %v1199
      %v1201 = vpop.f32.mrb[0].mxu0
      %1202 = vdwg.mxu0
      %v1203 = vsel %vm572, %v1200, 0.0
      %1205 = vrot.lane.b32.xlu0 %v372, 120
      %v1206 = vpop.permute.xlu0 %1205
      %v1209 = vsel %vm575, %v1203, 0
      %1211 = vmatprep.subr.mxu0 0.0
      %1212 = vmatpush1.msra.mxu0 %v1206
      %1213 = vmatprep.subr.mxu0 0.0
      %1214 = vmatpush1.msra.mxu0 0.0
      %1215 = vmatprep.subr.mxu0 0.0
      %1216 = vmatpush1.msra.mxu0 0.0
      %1217 = vmatprep.subr.mxu0 0.0
      %1218 = vmatpush1.msra.mxu0 0.0
      %1219 = vmatprep.subr.mxu0 0.0
      %1220 = vmatpush1.msra.mxu0 0.0
      %1221 = vmatprep.subr.mxu0 0.0
      %1222 = vmatpush1.msra.mxu0 0.0
      %1223 = vmatprep.subr.mxu0 0.0
      %1224 = vmatpush1.msra.mxu0 0.0
      %1225 = vmatprep.subr.mxu0 0.0
      %1226 = vmatpush1.msra.mxu0 0.0
      %1227 = vmatprep.subr.mxu0 0.0
      %1228 = vmatpush1.msra.mxu0 0.0
      %1229 = vmatprep.subr.mxu0 0.0
      %1230 = vmatpush1.msra.mxu0 0.0
      %1231 = vmatprep.subr.mxu0 0.0
      %1232 = vmatpush1.msra.mxu0 0.0
      %1233 = vmatprep.subr.mxu0 0.0
      %1234 = vmatpush1.msra.mxu0 0.0
      %1235 = vmatprep.subr.mxu0 0.0
      %1236 = vmatpush1.msra.mxu0 0.0
      %1237 = vmatprep.subr.mxu0 0.0
      %1238 = vmatpush1.msra.mxu0 0.0
      %1239 = vmatprep.subr.mxu0 0.0
      %1240 = vmatpush1.msra.mxu0 0.0
      %1241 = vmatprep.subr.mxu0 0.0
      %1242 = vmatpush1.msra.mxu0 0.0
      %1243 = vmatprep.subr.mxu0 0.0
      %1244 = vmatpush1.msra.mxu0 0.0
      %1245 = vmatprep.subr.mxu0 0.0
      %1246 = vmatpush1.msra.mxu0 0.0
      %1247 = vmatprep.subr.mxu0 0.0
      %1248 = vmatpush1.msra.mxu0 0.0
      %1249 = vmatprep.subr.mxu0 0.0
      %1250 = vmatpush1.msra.mxu0 0.0
      %1251 = vmatprep.subr.mxu0 0.0
      %1252 = vmatpush1.msra.mxu0 0.0
      %1253 = vmatprep.subr.mxu0 0.0
      %1254 = vmatpush1.msra.mxu0 0.0
      %1255 = vmatprep.subr.mxu0 0.0
      %1256 = vmatpush1.msra.mxu0 0.0
      %1257 = vmatprep.subr.mxu0 0.0
      %1258 = vmatpush1.msra.mxu0 0.0
      %1259 = vmatprep.subr.mxu0 0.0
      %1260 = vmatpush1.msra.mxu0 0.0
      %1261 = vmatprep.subr.mxu0 0.0
      %1262 = vmatpush1.msra.mxu0 0.0
      %1263 = vmatprep.subr.mxu0 0.0
      %1264 = vmatpush1.msra.mxu0 0.0
      %1265 = vmatprep.subr.mxu0 0.0
      %1266 = vmatpush1.msra.mxu0 0.0
      %1267 = vmatprep.subr.mxu0 0.0
      %1268 = vmatpush1.msra.mxu0 0.0
      %1269 = vmatprep.subr.mxu0 0.0
      %1270 = vmatpush1.msra.mxu0 0.0
      %1271 = vmatprep.subr.mxu0 0.0
      %1272 = vmatpush1.msra.mxu0 0.0
      %1273 = vmatprep.subr.mxu0 0.0
      %1274 = vmatpush1.msra.mxu0 0.0
      %1275 = vmatprep.mubr.f32.mxu0 0.0
      %1276 = vmatmul.mubr.f32.gmra.mrb[0].mxu0 %v1209
      %v1277 = vpop.f32.mrb[0].mxu0
      %v1278 = vadd.f32 0.0, %v1277
      %v1279 = vpop.f32.mrb[0].mxu0
      %1280 = vdwg.mxu0
      %v1281 = vadd.f32 %v1126, %v1278
      %1283 = vxpose.xlu0.b32.start [1/16] %v1130, 128
      %1284 = vxpose.xlu0.b32.cont [2/16] 0.0, 128
      %1285 = vxpose.xlu0.b32.cont [3/16] 0.0, 128
      %1286 = vxpose.xlu0.b32.cont [4/16] 0.0, 128
      %1287 = vxpose.xlu0.b32.cont [5/16] 0.0, 128
      %1288 = vxpose.xlu0.b32.cont [6/16] 0.0, 128
      %1289 = vxpose.xlu0.b32.cont [7/16] 0.0, 128
      %1290 = vxpose.xlu0.b32.cont [8/16] 0.0, 128
      %1291 = vxpose.xlu0.b32.cont [9/16] 0.0, 128
      %1292 = vxpose.xlu0.b32.cont [10/16] 0.0, 128
      %1293 = vxpose.xlu0.b32.cont [11/16] 0.0, 128
      %1294 = vxpose.xlu0.b32.cont [12/16] 0.0, 128
      %1295 = vxpose.xlu0.b32.cont [13/16] 0.0, 128
      %1296 = vxpose.xlu0.b32.cont [14/16] 0.0, 128
      %1297 = vxpose.xlu0.b32.cont [15/16] 0.0, 128
      %1298 = vxpose.xlu0.b32.end [16/16] 0.0, 128
      %v1299 = vpop.trf.xlu0
      %v1300 = vpop.trf.xlu0
      %v1301 = vpop.trf.xlu0
      %v1302 = vpop.trf.xlu0
      %v1303 = vpop.trf.xlu0
      %v1304 = vpop.trf.xlu0
      %v1305 = vpop.trf.xlu0
      %v1306 = vpop.trf.xlu0
      %v1307 = vpop.trf.xlu0
      %v1308 = vpop.trf.xlu0
      %v1309 = vpop.trf.xlu0
      %v1310 = vpop.trf.xlu0
      %v1311 = vpop.trf.xlu0
      %v1312 = vpop.trf.xlu0
      %v1313 = vpop.trf.xlu0
      %v1314 = vpop.trf.xlu0
      %v1316 = vsel %vm575, %v1299, 0
      %1318 = vmatprep.subr.mxu0 0.0
      %1319 = vmatpush1.msra.mxu0 %v1206
      %1320 = vmatprep.subr.mxu0 0.0
      %1321 = vmatpush1.msra.mxu0 0.0
      %1322 = vmatprep.subr.mxu0 0.0
      %1323 = vmatpush1.msra.mxu0 0.0
      %1324 = vmatprep.subr.mxu0 0.0
      %1325 = vmatpush1.msra.mxu0 0.0
      %1326 = vmatprep.subr.mxu0 0.0
      %1327 = vmatpush1.msra.mxu0 0.0
      %1328 = vmatprep.subr.mxu0 0.0
      %1329 = vmatpush1.msra.mxu0 0.0
      %1330 = vmatprep.subr.mxu0 0.0
      %1331 = vmatpush1.msra.mxu0 0.0
      %1332 = vmatprep.subr.mxu0 0.0
      %1333 = vmatpush1.msra.mxu0 0.0
      %1334 = vmatprep.subr.mxu0 0.0
      %1335 = vmatpush1.msra.mxu0 0.0
      %1336 = vmatprep.subr.mxu0 0.0
      %1337 = vmatpush1.msra.mxu0 0.0
      %1338 = vmatprep.subr.mxu0 0.0
      %1339 = vmatpush1.msra.mxu0 0.0
      %1340 = vmatprep.subr.mxu0 0.0
      %1341 = vmatpush1.msra.mxu0 0.0
      %1342 = vmatprep.subr.mxu0 0.0
      %1343 = vmatpush1.msra.mxu0 0.0
      %1344 = vmatprep.subr.mxu0 0.0
      %1345 = vmatpush1.msra.mxu0 0.0
      %1346 = vmatprep.subr.mxu0 0.0
      %1347 = vmatpush1.msra.mxu0 0.0
      %1348 = vmatprep.subr.mxu0 0.0
      %1349 = vmatpush1.msra.mxu0 0.0
      %1350 = vmatprep.subr.mxu0 0.0
      %1351 = vmatpush1.msra.mxu0 0.0
      %1352 = vmatprep.subr.mxu0 0.0
      %1353 = vmatpush1.msra.mxu0 0.0
      %1354 = vmatprep.subr.mxu0 0.0
      %1355 = vmatpush1.msra.mxu0 0.0
      %1356 = vmatprep.subr.mxu0 0.0
      %1357 = vmatpush1.msra.mxu0 0.0
      %1358 = vmatprep.subr.mxu0 0.0
      %1359 = vmatpush1.msra.mxu0 0.0
      %1360 = vmatprep.subr.mxu0 0.0
      %1361 = vmatpush1.msra.mxu0 0.0
      %1362 = vmatprep.subr.mxu0 0.0
      %1363 = vmatpush1.msra.mxu0 0.0
      %1364 = vmatprep.subr.mxu0 0.0
      %1365 = vmatpush1.msra.mxu0 0.0
      %1366 = vmatprep.subr.mxu0 0.0
      %1367 = vmatpush1.msra.mxu0 0.0
      %1368 = vmatprep.subr.mxu0 0.0
      %1369 = vmatpush1.msra.mxu0 0.0
      %1370 = vmatprep.subr.mxu0 0.0
      %1371 = vmatpush1.msra.mxu0 0.0
      %1372 = vmatprep.subr.mxu0 0.0
      %1373 = vmatpush1.msra.mxu0 0.0
      %1374 = vmatprep.subr.mxu0 0.0
      %1375 = vmatpush1.msra.mxu0 0.0
      %1376 = vmatprep.subr.mxu0 0.0
      %1377 = vmatpush1.msra.mxu0 0.0
      %1378 = vmatprep.subr.mxu0 0.0
      %1379 = vmatpush1.msra.mxu0 0.0
      %1380 = vmatprep.subr.mxu0 0.0
      %1381 = vmatpush1.msra.mxu0 0.0
      %1382 = vmatprep.mubr.f32.mxu0 0.0
      %1383 = vmatmul.mubr.f32.gmra.mrb[0].mxu0 %v1316
      %v1384 = vpop.f32.mrb[0].mxu0
      %v1385 = vadd.f32 0.0, %v1384
      %v1386 = vpop.f32.mrb[0].mxu0
      %1387 = vdwg.mxu0
      %v1388 = vadd.f32 %v980, %v1385
      %1389 = vst.msk [vmem:[%s979] sm:$0xff] %vm575, %v1388
      %s1390 = scalar_lea.vmem %s3, 16
      %v1391 = vld [vmem:[%s1390] sm:$0xff]
      %s1392 = scalar_lea.vmem [#allocation2], 16
      %v1393 = vld [vmem:[%s1392] sm:$0xff]
      %1394 = vrot.lane.b32.xlu0 %v370, 112
      %v1395 = vpop.permute.xlu0 %1394
      %v1396 = vsel %vm575, %v1395, 0
      %1398 = vmatprep.subr.mxu0 0.0
      %1399 = vmatpush1.msra.mxu0 %v1393
      %1400 = vmatprep.subr.mxu0 0.0
      %1401 = vmatpush1.msra.mxu0 0.0
      %1402 = vmatprep.subr.mxu0 0.0
      %1403 = vmatpush1.msra.mxu0 0.0
      %1404 = vmatprep.subr.mxu0 0.0
      %1405 = vmatpush1.msra.mxu0 0.0
      %1406 = vmatprep.subr.mxu0 0.0
      %1407 = vmatpush1.msra.mxu0 0.0
      %1408 = vmatprep.subr.mxu0 0.0
      %1409 = vmatpush1.msra.mxu0 0.0
      %1410 = vmatprep.subr.mxu0 0.0
      %1411 = vmatpush1.msra.mxu0 0.0
      %1412 = vmatprep.subr.mxu0 0.0
      %1413 = vmatpush1.msra.mxu0 0.0
      %1414 = vmatprep.subr.mxu0 0.0
      %1415 = vmatpush1.msra.mxu0 0.0
      %1416 = vmatprep.subr.mxu0 0.0
      %1417 = vmatpush1.msra.mxu0 0.0
      %1418 = vmatprep.subr.mxu0 0.0
      %1419 = vmatpush1.msra.mxu0 0.0
      %1420 = vmatprep.subr.mxu0 0.0
      %1421 = vmatpush1.msra.mxu0 0.0
      %1422 = vmatprep.subr.mxu0 0.0
      %1423 = vmatpush1.msra.mxu0 0.0
      %1424 = vmatprep.subr.mxu0 0.0
      %1425 = vmatpush1.msra.mxu0 0.0
      %1426 = vmatprep.subr.mxu0 0.0
      %1427 = vmatpush1.msra.mxu0 0.0
      %1428 = vmatprep.subr.mxu0 0.0
      %1429 = vmatpush1.msra.mxu0 0.0
      %1430 = vmatprep.subr.mxu0 0.0
      %1431 = vmatpush1.msra.mxu0 0.0
      %1432 = vmatprep.subr.mxu0 0.0
      %1433 = vmatpush1.msra.mxu0 0.0
      %1434 = vmatprep.subr.mxu0 0.0
      %1435 = vmatpush1.msra.mxu0 0.0
      %1436 = vmatprep.subr.mxu0 0.0
      %1437 = vmatpush1.msra.mxu0 0.0
      %1438 = vmatprep.subr.mxu0 0.0
      %1439 = vmatpush1.msra.mxu0 0.0
      %1440 = vmatprep.subr.mxu0 0.0
      %1441 = vmatpush1.msra.mxu0 0.0
      %1442 = vmatprep.subr.mxu0 0.0
      %1443 = vmatpush1.msra.mxu0 0.0
      %1444 = vmatprep.subr.mxu0 0.0
      %1445 = vmatpush1.msra.mxu0 0.0
      %1446 = vmatprep.subr.mxu0 0.0
      %1447 = vmatpush1.msra.mxu0 0.0
      %1448 = vmatprep.subr.mxu0 0.0
      %1449 = vmatpush1.msra.mxu0 0.0
      %1450 = vmatprep.subr.mxu0 0.0
      %1451 = vmatpush1.msra.mxu0 0.0
      %1452 = vmatprep.subr.mxu0 0.0
      %1453 = vmatpush1.msra.mxu0 0.0
      %1454 = vmatprep.subr.mxu0 0.0
      %1455 = vmatpush1.msra.mxu0 0.0
      %1456 = vmatprep.subr.mxu0 0.0
      %1457 = vmatpush1.msra.mxu0 0.0
      %1458 = vmatprep.subr.mxu0 0.0
      %1459 = vmatpush1.msra.mxu0 0.0
      %1460 = vmatprep.subr.mxu0 0.0
      %1461 = vmatpush1.msra.mxu0 0.0
      %1462 = vmatprep.mubr.f32.mxu0 0.0
      %1463 = vmatmul.mubr.f32.gmra.mrb[0].mxu0 %v1396
      %v1464 = vpop.f32.mrb[0].mxu0
      %v1465 = vadd.f32 0.0, %v1464
      %v1466 = vpop.f32.mrb[0].mxu0
      %1467 = vdwg.mxu0
      %1468 = vrot.lane.b32.xlu0 %v399, 112
      %v1469 = vpop.permute.xlu0 %1468
      %v1470 = vsel %vm575, %v1469, 0
      %1472 = vmatprep.subr.mxu0 0.0
      %1473 = vmatpush1.msra.mxu0 %v1391
      %1474 = vmatprep.subr.mxu0 0.0
      %1475 = vmatpush1.msra.mxu0 0.0
      %1476 = vmatprep.subr.mxu0 0.0
      %1477 = vmatpush1.msra.mxu0 0.0
      %1478 = vmatprep.subr.mxu0 0.0
      %1479 = vmatpush1.msra.mxu0 0.0
      %1480 = vmatprep.subr.mxu0 0.0
      %1481 = vmatpush1.msra.mxu0 0.0
      %1482 = vmatprep.subr.mxu0 0.0
      %1483 = vmatpush1.msra.mxu0 0.0
      %1484 = vmatprep.subr.mxu0 0.0
      %1485 = vmatpush1.msra.mxu0 0.0
      %1486 = vmatprep.subr.mxu0 0.0
      %1487 = vmatpush1.msra.mxu0 0.0
      %1488 = vmatprep.subr.mxu0 0.0
      %1489 = vmatpush1.msra.mxu0 0.0
      %1490 = vmatprep.subr.mxu0 0.0
      %1491 = vmatpush1.msra.mxu0 0.0
      %1492 = vmatprep.subr.mxu0 0.0
      %1493 = vmatpush1.msra.mxu0 0.0
      %1494 = vmatprep.subr.mxu0 0.0
      %1495 = vmatpush1.msra.mxu0 0.0
      %1496 = vmatprep.subr.mxu0 0.0
      %1497 = vmatpush1.msra.mxu0 0.0
      %1498 = vmatprep.subr.mxu0 0.0
      %1499 = vmatpush1.msra.mxu0 0.0
      %1500 = vmatprep.subr.mxu0 0.0
      %1501 = vmatpush1.msra.mxu0 0.0
      %1502 = vmatprep.subr.mxu0 0.0
      %1503 = vmatpush1.msra.mxu0 0.0
      %1504 = vmatprep.subr.mxu0 0.0
      %1505 = vmatpush1.msra.mxu0 0.0
      %1506 = vmatprep.subr.mxu0 0.0
      %1507 = vmatpush1.msra.mxu0 0.0
      %1508 = vmatprep.subr.mxu0 0.0
      %1509 = vmatpush1.msra.mxu0 0.0
      %1510 = vmatprep.subr.mxu0 0.0
      %1511 = vmatpush1.msra.mxu0 0.0
      %1512 = vmatprep.subr.mxu0 0.0
      %1513 = vmatpush1.msra.mxu0 0.0
      %1514 = vmatprep.subr.mxu0 0.0
      %1515 = vmatpush1.msra.mxu0 0.0
      %1516 = vmatprep.subr.mxu0 0.0
      %1517 = vmatpush1.msra.mxu0 0.0
      %1518 = vmatprep.subr.mxu0 0.0
      %1519 = vmatpush1.msra.mxu0 0.0
      %1520 = vmatprep.subr.mxu0 0.0
      %1521 = vmatpush1.msra.mxu0 0.0
      %1522 = vmatprep.subr.mxu0 0.0
      %1523 = vmatpush1.msra.mxu0 0.0
      %1524 = vmatprep.subr.mxu0 0.0
      %1525 = vmatpush1.msra.mxu0 0.0
      %1526 = vmatprep.subr.mxu0 0.0
      %1527 = vmatpush1.msra.mxu0 0.0
      %1528 = vmatprep.subr.mxu0 0.0
      %1529 = vmatpush1.msra.mxu0 0.0
      %1530 = vmatprep.subr.mxu0 0.0
      %1531 = vmatpush1.msra.mxu0 0.0
      %1532 = vmatprep.subr.mxu0 0.0
      %1533 = vmatpush1.msra.mxu0 0.0
      %1534 = vmatprep.subr.mxu0 0.0
      %1535 = vmatpush1.msra.mxu0 0.0
      %1536 = vmatprep.mubr.f32.mxu0 0.0
      %1537 = vmatmul.mubr.f32.gmra.mrb[0].mxu0 %v1470
      %v1538 = vpop.f32.mrb[0].mxu0
      %v1539 = vadd.f32 %v1465, %v1538
      %v1540 = vpop.f32.mrb[0].mxu0
      %1541 = vdwg.mxu0
      %1542 = vrot.lane.b32.xlu0 %v400, 112
      %v1543 = vpop.permute.xlu0 %1542
      %v1544 = vsel %vm575, %v1543, 0
      %1546 = vmatprep.subr.mxu0 0.0
      %1547 = vmatpush1.xpose.msra.mxu0 %v1544
      %1548 = vmatprep.subr.mxu0 0.0
      %1549 = vmatpush1.xpose.msra.mxu0 0.0
      %1550 = vmatprep.subr.mxu0 0.0
      %1551 = vmatpush1.xpose.msra.mxu0 0.0
      %1552 = vmatprep.subr.mxu0 0.0
      %1553 = vmatpush1.xpose.msra.mxu0 0.0
      %1554 = vmatprep.subr.mxu0 0.0
      %1555 = vmatpush1.xpose.msra.mxu0 0.0
      %1556 = vmatprep.subr.mxu0 0.0
      %1557 = vmatpush1.xpose.msra.mxu0 0.0
      %1558 = vmatprep.subr.mxu0 0.0
      %1559 = vmatpush1.xpose.msra.mxu0 0.0
      %1560 = vmatprep.subr.mxu0 0.0
      %1561 = vmatpush1.xpose.msra.mxu0 0.0
      %1562 = vmatprep.subr.mxu0 0.0
      %1563 = vmatpush1.xpose.msra.mxu0 0.0
      %1564 = vmatprep.subr.mxu0 0.0
      %1565 = vmatpush1.xpose.msra.mxu0 0.0
      %1566 = vmatprep.subr.mxu0 0.0
      %1567 = vmatpush1.xpose.msra.mxu0 0.0
      %1568 = vmatprep.subr.mxu0 0.0
      %1569 = vmatpush1.xpose.msra.mxu0 0.0
      %1570 = vmatprep.subr.mxu0 0.0
      %1571 = vmatpush1.xpose.msra.mxu0 0.0
      %1572 = vmatprep.subr.mxu0 0.0
      %1573 = vmatpush1.xpose.msra.mxu0 0.0
      %1574 = vmatprep.subr.mxu0 0.0
      %1575 = vmatpush1.xpose.msra.mxu0 0.0
      %1576 = vmatprep.subr.mxu0 0.0
      %1577 = vmatpush1.xpose.msra.mxu0 0.0
      %1578 = vmatprep.subr.mxu0 0.0
      %1579 = vmatpush1.xpose.msra.mxu0 0.0
      %1580 = vmatprep.subr.mxu0 0.0
      %1581 = vmatpush1.xpose.msra.mxu0 0.0
      %1582 = vmatprep.subr.mxu0 0.0
      %1583 = vmatpush1.xpose.msra.mxu0 0.0
      %1584 = vmatprep.subr.mxu0 0.0
      %1585 = vmatpush1.xpose.msra.mxu0 0.0
      %1586 = vmatprep.subr.mxu0 0.0
      %1587 = vmatpush1.xpose.msra.mxu0 0.0
      %1588 = vmatprep.subr.mxu0 0.0
      %1589 = vmatpush1.xpose.msra.mxu0 0.0
      %1590 = vmatprep.subr.mxu0 0.0
      %1591 = vmatpush1.xpose.msra.mxu0 0.0
      %1592 = vmatprep.subr.mxu0 0.0
      %1593 = vmatpush1.xpose.msra.mxu0 0.0
      %1594 = vmatprep.subr.mxu0 0.0
      %1595 = vmatpush1.xpose.msra.mxu0 0.0
      %1596 = vmatprep.subr.mxu0 0.0
      %1597 = vmatpush1.xpose.msra.mxu0 0.0
      %1598 = vmatprep.subr.mxu0 0.0
      %1599 = vmatpush1.xpose.msra.mxu0 0.0
      %1600 = vmatprep.subr.mxu0 0.0
      %1601 = vmatpush1.xpose.msra.mxu0 0.0
      %1602 = vmatprep.subr.mxu0 0.0
      %1603 = vmatpush1.xpose.msra.mxu0 0.0
      %1604 = vmatprep.subr.mxu0 0.0
      %1605 = vmatpush1.xpose.msra.mxu0 0.0
      %1606 = vmatprep.subr.mxu0 0.0
      %1607 = vmatpush1.xpose.msra.mxu0 0.0
      %1608 = vmatprep.subr.mxu0 0.0
      %1609 = vmatpush1.xpose.msra.mxu0 0.0
      %1610 = vmatprep.mubr.f32.mxu0 0.0
      %1611 = vmatmul.mubr.f32.gmra.mrb[0].mxu0 %v1396
      %v1612 = vpop.f32.mrb[0].mxu0
      %v1613 = vadd.f32 0.0, %v1612
      %v1614 = vpop.f32.mrb[0].mxu0
      %1615 = vdwg.mxu0
      %v1616 = vsel %vm572, %v1613, 0.0
      %1617 = vrot.lane.b32.xlu0 %v372, 112
      %v1618 = vpop.permute.xlu0 %1617
      %v1621 = vsel %vm575, %v1616, 0
      %1623 = vmatprep.subr.mxu0 0.0
      %1624 = vmatpush1.msra.mxu0 %v1618
      %1625 = vmatprep.subr.mxu0 0.0
      %1626 = vmatpush1.msra.mxu0 0.0
      %1627 = vmatprep.subr.mxu0 0.0
      %1628 = vmatpush1.msra.mxu0 0.0
      %1629 = vmatprep.subr.mxu0 0.0
      %1630 = vmatpush1.msra.mxu0 0.0
      %1631 = vmatprep.subr.mxu0 0.0
      %1632 = vmatpush1.msra.mxu0 0.0
      %1633 = vmatprep.subr.mxu0 0.0
      %1634 = vmatpush1.msra.mxu0 0.0
      %1635 = vmatprep.subr.mxu0 0.0
      %1636 = vmatpush1.msra.mxu0 0.0
      %1637 = vmatprep.subr.mxu0 0.0
      %1638 = vmatpush1.msra.mxu0 0.0
      %1639 = vmatprep.subr.mxu0 0.0
      %1640 = vmatpush1.msra.mxu0 0.0
      %1641 = vmatprep.subr.mxu0 0.0
      %1642 = vmatpush1.msra.mxu0 0.0
      %1643 = vmatprep.subr.mxu0 0.0
      %1644 = vmatpush1.msra.mxu0 0.0
      %1645 = vmatprep.subr.mxu0 0.0
      %1646 = vmatpush1.msra.mxu0 0.0
      %1647 = vmatprep.subr.mxu0 0.0
      %1648 = vmatpush1.msra.mxu0 0.0
      %1649 = vmatprep.subr.mxu0 0.0
      %1650 = vmatpush1.msra.mxu0 0.0
      %1651 = vmatprep.subr.mxu0 0.0
      %1652 = vmatpush1.msra.mxu0 0.0
      %1653 = vmatprep.subr.mxu0 0.0
      %1654 = vmatpush1.msra.mxu0 0.0
      %1655 = vmatprep.subr.mxu0 0.0
      %1656 = vmatpush1.msra.mxu0 0.0
      %1657 = vmatprep.subr.mxu0 0.0
      %1658 = vmatpush1.msra.mxu0 0.0
      %1659 = vmatprep.subr.mxu0 0.0
      %1660 = vmatpush1.msra.mxu0 0.0
      %1661 = vmatprep.subr.mxu0 0.0
      %1662 = vmatpush1.msra.mxu0 0.0
      %1663 = vmatprep.subr.mxu0 0.0
      %1664 = vmatpush1.msra.mxu0 0.0
      %1665 = vmatprep.subr.mxu0 0.0
      %1666 = vmatpush1.msra.mxu0 0.0
      %1667 = vmatprep.subr.mxu0 0.0
      %1668 = vmatpush1.msra.mxu0 0.0
      %1669 = vmatprep.subr.mxu0 0.0
      %1670 = vmatpush1.msra.mxu0 0.0
      %1671 = vmatprep.subr.mxu0 0.0
      %1672 = vmatpush1.msra.mxu0 0.0
      %1673 = vmatprep.subr.mxu0 0.0
      %1674 = vmatpush1.msra.mxu0 0.0
      %1675 = vmatprep.subr.mxu0 0.0
      %1676 = vmatpush1.msra.mxu0 0.0
      %1677 = vmatprep.subr.mxu0 0.0
      %1678 = vmatpush1.msra.mxu0 0.0
      %1679 = vmatprep.subr.mxu0 0.0
      %1680 = vmatpush1.msra.mxu0 0.0
      %1681 = vmatprep.subr.mxu0 0.0
      %1682 = vmatpush1.msra.mxu0 0.0
      %1683 = vmatprep.subr.mxu0 0.0
      %1684 = vmatpush1.msra.mxu0 0.0
      %1685 = vmatprep.subr.mxu0 0.0
      %1686 = vmatpush1.msra.mxu0 0.0
      %1687 = vmatprep.mubr.f32.mxu0 0.0
      %1688 = vmatmul.mubr.f32.gmra.mrb[0].mxu0 %v1621
      %v1689 = vpop.f32.mrb[0].mxu0
      %v1690 = vadd.f32 0.0, %v1689
      %v1691 = vpop.f32.mrb[0].mxu0
      %1692 = vdwg.mxu0
      %v1693 = vadd.f32 %v1539, %v1690
      %1695 = vxpose.xlu0.b32.start [1/16] %v1543, 128
      %1696 = vxpose.xlu0.b32.cont [2/16] 0.0, 128
      %1697 = vxpose.xlu0.b32.cont [3/16] 0.0, 128
      %1698 = vxpose.xlu0.b32.cont [4/16] 0.0, 128
      %1699 = vxpose.xlu0.b32.cont [5/16] 0.0, 128
      %1700 = vxpose.xlu0.b32.cont [6/16] 0.0, 128
      %1701 = vxpose.xlu0.b32.cont [7/16] 0.0, 128
      %1702 = vxpose.xlu0.b32.cont [8/16] 0.0, 128
      %1703 = vxpose.xlu0.b32.cont [9/16] 0.0, 128
      %1704 = vxpose.xlu0.b32.cont [10/16] 0.0, 128
      %1705 = vxpose.xlu0.b32.cont [11/16] 0.0, 128
      %1706 = vxpose.xlu0.b32.cont [12/16] 0.0, 128
      %1707 = vxpose.xlu0.b32.cont [13/16] 0.0, 128
      %1708 = vxpose.xlu0.b32.cont [14/16] 0.0, 128
      %1709 = vxpose.xlu0.b32.cont [15/16] 0.0, 128
      %1710 = vxpose.xlu0.b32.end [16/16] 0.0, 128
      %v1711 = vpop.trf.xlu0
      %v1712 = vpop.trf.xlu0
      %v1713 = vpop.trf.xlu0
      %v1714 = vpop.trf.xlu0
      %v1715 = vpop.trf.xlu0
      %v1716 = vpop.trf.xlu0
      %v1717 = vpop.trf.xlu0
      %v1718 = vpop.trf.xlu0
      %v1719 = vpop.trf.xlu0
      %v1720 = vpop.trf.xlu0
      %v1721 = vpop.trf.xlu0
      %v1722 = vpop.trf.xlu0
      %v1723 = vpop.trf.xlu0
      %v1724 = vpop.trf.xlu0
      %v1725 = vpop.trf.xlu0
      %v1726 = vpop.trf.xlu0
      %v1728 = vsel %vm575, %v1711, 0
      %1730 = vmatprep.subr.mxu0 0.0
      %1731 = vmatpush1.msra.mxu0 %v1618
      %1732 = vmatprep.subr.mxu0 0.0
      %1733 = vmatpush1.msra.mxu0 0.0
      %1734 = vmatprep.subr.mxu0 0.0
      %1735 = vmatpush1.msra.mxu0 0.0
      %1736 = vmatprep.subr.mxu0 0.0
      %1737 = vmatpush1.msra.mxu0 0.0
      %1738 = vmatprep.subr.mxu0 0.0
      %1739 = vmatpush1.msra.mxu0 0.0
      %1740 = vmatprep.subr.mxu0 0.0
      %1741 = vmatpush1.msra.mxu0 0.0
      %1742 = vmatprep.subr.mxu0 0.0
      %1743 = vmatpush1.msra.mxu0 0.0
      %1744 = vmatprep.subr.mxu0 0.0
      %1745 = vmatpush1.msra.mxu0 0.0
      %1746 = vmatprep.subr.mxu0 0.0
      %1747 = vmatpush1.msra.mxu0 0.0
      %1748 = vmatprep.subr.mxu0 0.0
      %1749 = vmatpush1.msra.mxu0 0.0
      %1750 = vmatprep.subr.mxu0 0.0
      %1751 = vmatpush1.msra.mxu0 0.0
      %1752 = vmatprep.subr.mxu0 0.0
      %1753 = vmatpush1.msra.mxu0 0.0
      %1754 = vmatprep.subr.mxu0 0.0
      %1755 = vmatpush1.msra.mxu0 0.0
      %1756 = vmatprep.subr.mxu0 0.0
      %1757 = vmatpush1.msra.mxu0 0.0
      %1758 = vmatprep.subr.mxu0 0.0
      %1759 = vmatpush1.msra.mxu0 0.0
      %1760 = vmatprep.subr.mxu0 0.0
      %1761 = vmatpush1.msra.mxu0 0.0
      %1762 = vmatprep.subr.mxu0 0.0
      %1763 = vmatpush1.msra.mxu0 0.0
      %1764 = vmatprep.subr.mxu0 0.0
      %1765 = vmatpush1.msra.mxu0 0.0
      %1766 = vmatprep.subr.mxu0 0.0
      %1767 = vmatpush1.msra.mxu0 0.0
      %1768 = vmatprep.subr.mxu0 0.0
      %1769 = vmatpush1.msra.mxu0 0.0
      %1770 = vmatprep.subr.mxu0 0.0
      %1771 = vmatpush1.msra.mxu0 0.0
      %1772 = vmatprep.subr.mxu0 0.0
      %1773 = vmatpush1.msra.mxu0 0.0
      %1774 = vmatprep.subr.mxu0 0.0
      %1775 = vmatpush1.msra.mxu0 0.0
      %1776 = vmatprep.subr.mxu0 0.0
      %1777 = vmatpush1.msra.mxu0 0.0
      %1778 = vmatprep.subr.mxu0 0.0
      %1779 = vmatpush1.msra.mxu0 0.0
      %1780 = vmatprep.subr.mxu0 0.0
      %1781 = vmatpush1.msra.mxu0 0.0
      %1782 = vmatprep.subr.mxu0 0.0
      %1783 = vmatpush1.msra.mxu0 0.0
      %1784 = vmatprep.subr.mxu0 0.0
      %1785 = vmatpush1.msra.mxu0 0.0
      %1786 = vmatprep.subr.mxu0 0.0
      %1787 = vmatpush1.msra.mxu0 0.0
      %1788 = vmatprep.subr.mxu0 0.0
      %1789 = vmatpush1.msra.mxu0 0.0
      %1790 = vmatprep.subr.mxu0 0.0
      %1791 = vmatpush1.msra.mxu0 0.0
      %1792 = vmatprep.subr.mxu0 0.0
      %1793 = vmatpush1.msra.mxu0 0.0
      %1794 = vmatprep.mubr.f32.mxu0 0.0
      %1795 = vmatmul.mubr.f32.gmra.mrb[0].mxu0 %v1728
      %v1796 = vpop.f32.mrb[0].mxu0
      %v1797 = vadd.f32 0.0, %v1796
      %v1798 = vpop.f32.mrb[0].mxu0
      %1799 = vdwg.mxu0
      %v1800 = vadd.f32 %v1393, %v1797
      %1801 = vst.msk [vmem:[%s1392] sm:$0xff] %vm575, %v1800
      %s1802 = scalar_lea.vmem %s3, 24
      %v1803 = vld [vmem:[%s1802] sm:$0xff]
      %s1804 = scalar_lea.vmem [#allocation2], 24
      %v1805 = vld [vmem:[%s1804] sm:$0xff]
      %1806 = vrot.lane.b32.xlu0 %v370, 104
      %v1807 = vpop.permute.xlu0 %1806
      %v1808 = vsel %vm575, %v1807, 0
      %1810 = vmatprep.subr.mxu0 0.0
      %1811 = vmatpush1.msra.mxu0 %v1805
      %1812 = vmatprep.subr.mxu0 0.0
      %1813 = vmatpush1.msra.mxu0 0.0
      %1814 = vmatprep.subr.mxu0 0.0
      %1815 = vmatpush1.msra.mxu0 0.0
      %1816 = vmatprep.subr.mxu0 0.0
      %1817 = vmatpush1.msra.mxu0 0.0
      %1818 = vmatprep.subr.mxu0 0.0
      %1819 = vmatpush1.msra.mxu0 0.0
      %1820 = vmatprep.subr.mxu0 0.0
      %1821 = vmatpush1.msra.mxu0 0.0
      %1822 = vmatprep.subr.mxu0 0.0
      %1823 = vmatpush1.msra.mxu0 0.0
      %1824 = vmatprep.subr.mxu0 0.0
      %1825 = vmatpush1.msra.mxu0 0.0
      %1826 = vmatprep.subr.mxu0 0.0
      %1827 = vmatpush1.msra.mxu0 0.0
      %1828 = vmatprep.subr.mxu0 0.0
      %1829 = vmatpush1.msra.mxu0 0.0
      %1830 = vmatprep.subr.mxu0 0.0
      %1831 = vmatpush1.msra.mxu0 0.0
      %1832 = vmatprep.subr.mxu0 0.0
      %1833 = vmatpush1.msra.mxu0 0.0
      %1834 = vmatprep.subr.mxu0 0.0
      %1835 = vmatpush1.msra.mxu0 0.0
      %1836 = vmatprep.subr.mxu0 0.0
      %1837 = vmatpush1.msra.mxu0 0.0
      %1838 = vmatprep.subr.mxu0 0.0
      %1839 = vmatpush1.msra.mxu0 0.0
      %1840 = vmatprep.subr.mxu0 0.0
      %1841 = vmatpush1.msra.mxu0 0.0
      %1842 = vmatprep.subr.mxu0 0.0
      %1843 = vmatpush1.msra.mxu0 0.0
      %1844 = vmatprep.subr.mxu0 0.0
      %1845 = vmatpush1.msra.mxu0 0.0
      %1846 = vmatprep.subr.mxu0 0.0
      %1847 = vmatpush1.msra.mxu0 0.0
      %1848 = vmatprep.subr.mxu0 0.0
      %1849 = vmatpush1.msra.mxu0 0.0
      %1850 = vmatprep.subr.mxu0 0.0
      %1851 = vmatpush1.msra.mxu0 0.0
      %1852 = vmatprep.subr.mxu0 0.0
      %1853 = vmatpush1.msra.mxu0 0.0
      %1854 = vmatprep.subr.mxu0 0.0
      %1855 = vmatpush1.msra.mxu0 0.0
      %1856 = vmatprep.subr.mxu0 0.0
      %1857 = vmatpush1.msra.mxu0 0.0
      %1858 = vmatprep.subr.mxu0 0.0
      %1859 = vmatpush1.msra.mxu0 0.0
      %1860 = vmatprep.subr.mxu0 0.0
      %1861 = vmatpush1.msra.mxu0 0.0
      %1862 = vmatprep.subr.mxu0 0.0
      %1863 = vmatpush1.msra.mxu0 0.0
      %1864 = vmatprep.subr.mxu0 0.0
      %1865 = vmatpush1.msra.mxu0 0.0
      %1866 = vmatprep.subr.mxu0 0.0
      %1867 = vmatpush1.msra.mxu0 0.0
      %1868 = vmatprep.subr.mxu0 0.0
      %1869 = vmatpush1.msra.mxu0 0.0
      %1870 = vmatprep.subr.mxu0 0.0
      %1871 = vmatpush1.msra.mxu0 0.0
      %1872 = vmatprep.subr.mxu0 0.0
      %1873 = vmatpush1.msra.mxu0 0.0
      %1874 = vmatprep.mubr.f32.mxu0 0.0
      %1875 = vmatmul.mubr.f32.gmra.mrb[0].mxu0 %v1808
      %v1876 = vpop.f32.mrb[0].mxu0
      %v1877 = vadd.f32 0.0, %v1876
      %v1878 = vpop.f32.mrb[0].mxu0
      %1879 = vdwg.mxu0
      %1880 = vrot.lane.b32.xlu0 %v399, 104
      %v1881 = vpop.permute.xlu0 %1880
      %v1882 = vsel %vm575, %v1881, 0
      %1884 = vmatprep.subr.mxu0 0.0
      %1885 = vmatpush1.msra.mxu0 %v1803
      %1886 = vmatprep.subr.mxu0 0.0
      %1887 = vmatpush1.msra.mxu0 0.0
      %1888 = vmatprep.subr.mxu0 0.0
      %1889 = vmatpush1.msra.mxu0 0.0
      %1890 = vmatprep.subr.mxu0 0.0
      %1891 = vmatpush1.msra.mxu0 0.0
      %1892 = vmatprep.subr.mxu0 0.0
      %1893 = vmatpush1.msra.mxu0 0.0
      %1894 = vmatprep.subr.mxu0 0.0
      %1895 = vmatpush1.msra.mxu0 0.0
      %1896 = vmatprep.subr.mxu0 0.0
      %1897 = vmatpush1.msra.mxu0 0.0
      %1898 = vmatprep.subr.mxu0 0.0
      %1899 = vmatpush1.msra.mxu0 0.0
      %1900 = vmatprep.subr.mxu0 0.0
      %1901 = vmatpush1.msra.mxu0 0.0
      %1902 = vmatprep.subr.mxu0 0.0
      %1903 = vmatpush1.msra.mxu0 0.0
      %1904 = vmatprep.subr.mxu0 0.0
      %1905 = vmatpush1.msra.mxu0 0.0
      %1906 = vmatprep.subr.mxu0 0.0
      %1907 = vmatpush1.msra.mxu0 0.0
      %1908 = vmatprep.subr.mxu0 0.0
      %1909 = vmatpush1.msra.mxu0 0.0
      %1910 = vmatprep.subr.mxu0 0.0
      %1911 = vmatpush1.msra.mxu0 0.0
      %1912 = vmatprep.subr.mxu0 0.0
      %1913 = vmatpush1.msra.mxu0 0.0
      %1914 = vmatprep.subr.mxu0 0.0
      %1915 = vmatpush1.msra.mxu0 0.0
      %1916 = vmatprep.subr.mxu0 0.0
      %1917 = vmatpush1.msra.mxu0 0.0
      %1918 = vmatprep.subr.mxu0 0.0
      %1919 = vmatpush1.msra.mxu0 0.0
      %1920 = vmatprep.subr.mxu0 0.0
      %1921 = vmatpush1.msra.mxu0 0.0
      %1922 = vmatprep.subr.mxu0 0.0
      %1923 = vmatpush1.msra.mxu0 0.0
      %1924 = vmatprep.subr.mxu0 0.0
      %1925 = vmatpush1.msra.mxu0 0.0
      %1926 = vmatprep.subr.mxu0 0.0
      %1927 = vmatpush1.msra.mxu0 0.0
      %1928 = vmatprep.subr.mxu0 0.0
      %1929 = vmatpush1.msra.mxu0 0.0
      %1930 = vmatprep.subr.mxu0 0.0
      %1931 = vmatpush1.msra.mxu0 0.0
      %1932 = vmatprep.subr.mxu0 0.0
      %1933 = vmatpush1.msra.mxu0 0.0
      %1934 = vmatprep.subr.mxu0 0.0
      %1935 = vmatpush1.msra.mxu0 0.0
      %1936 = vmatprep.subr.mxu0 0.0
      %1937 = vmatpush1.msra.mxu0 0.0
      %1938 = vmatprep.subr.mxu0 0.0
      %1939 = vmatpush1.msra.mxu0 0.0
      %1940 = vmatprep.subr.mxu0 0.0
      %1941 = vmatpush1.msra.mxu0 0.0
      %1942 = vmatprep.subr.mxu0 0.0
      %1943 = vmatpush1.msra.mxu0 0.0
      %1944 = vmatprep.subr.mxu0 0.0
      %1945 = vmatpush1.msra.mxu0 0.0
      %1946 = vmatprep.subr.mxu0 0.0
      %1947 = vmatpush1.msra.mxu0 0.0
      %1948 = vmatprep.mubr.f32.mxu0 0.0
      %1949 = vmatmul.mubr.f32.gmra.mrb[0].mxu0 %v1882
      %v1950 = vpop.f32.mrb[0].mxu0
      %v1951 = vadd.f32 %v1877, %v1950
      %v1952 = vpop.f32.mrb[0].mxu0
      %1953 = vdwg.mxu0
      %1954 = vrot.lane.b32.xlu0 %v400, 104
      %v1955 = vpop.permute.xlu0 %1954
      %v1956 = vsel %vm575, %v1955, 0
      %1958 = vmatprep.subr.mxu0 0.0
      %1959 = vmatpush1.xpose.msra.mxu0 %v1956
      %1960 = vmatprep.subr.mxu0 0.0
      %1961 = vmatpush1.xpose.msra.mxu0 0.0
      %1962 = vmatprep.subr.mxu0 0.0
      %1963 = vmatpush1.xpose.msra.mxu0 0.0
      %1964 = vmatprep.subr.mxu0 0.0
      %1965 = vmatpush1.xpose.msra.mxu0 0.0
      %1966 = vmatprep.subr.mxu0 0.0
      %1967 = vmatpush1.xpose.msra.mxu0 0.0
      %1968 = vmatprep.subr.mxu0 0.0
      %1969 = vmatpush1.xpose.msra.mxu0 0.0
      %1970 = vmatprep.subr.mxu0 0.0
      %1971 = vmatpush1.xpose.msra.mxu0 0.0
      %1972 = vmatprep.subr.mxu0 0.0
      %1973 = vmatpush1.xpose.msra.mxu0 0.0
      %1974 = vmatprep.subr.mxu0 0.0
      %1975 = vmatpush1.xpose.msra.mxu0 0.0
      %1976 = vmatprep.subr.mxu0 0.0
      %1977 = vmatpush1.xpose.msra.mxu0 0.0
      %1978 = vmatprep.subr.mxu0 0.0
      %1979 = vmatpush1.xpose.msra.mxu0 0.0
      %1980 = vmatprep.subr.mxu0 0.0
      %1981 = vmatpush1.xpose.msra.mxu0 0.0
      %1982 = vmatprep.subr.mxu0 0.0
      %1983 = vmatpush1.xpose.msra.mxu0 0.0
      %1984 = vmatprep.subr.mxu0 0.0
      %1985 = vmatpush1.xpose.msra.mxu0 0.0
      %1986 = vmatprep.subr.mxu0 0.0
      %1987 = vmatpush1.xpose.msra.mxu0 0.0
      %1988 = vmatprep.subr.mxu0 0.0
      %1989 = vmatpush1.xpose.msra.mxu0 0.0
      %1990 = vmatprep.subr.mxu0 0.0
      %1991 = vmatpush1.xpose.msra.mxu0 0.0
      %1992 = vmatprep.subr.mxu0 0.0
      %1993 = vmatpush1.xpose.msra.mxu0 0.0
      %1994 = vmatprep.subr.mxu0 0.0
      %1995 = vmatpush1.xpose.msra.mxu0 0.0
      %1996 = vmatprep.subr.mxu0 0.0
      %1997 = vmatpush1.xpose.msra.mxu0 0.0
      %1998 = vmatprep.subr.mxu0 0.0
      %1999 = vmatpush1.xpose.msra.mxu0 0.0
      %2000 = vmatprep.subr.mxu0 0.0
      %2001 = vmatpush1.xpose.msra.mxu0 0.0
      %2002 = vmatprep.subr.mxu0 0.0
      %2003 = vmatpush1.xpose.msra.mxu0 0.0
      %2004 = vmatprep.subr.mxu0 0.0
      %2005 = vmatpush1.xpose.msra.mxu0 0.0
      %2006 = vmatprep.subr.mxu0 0.0
      %2007 = vmatpush1.xpose.msra.mxu0 0.0
      %2008 = vmatprep.subr.mxu0 0.0
      %2009 = vmatpush1.xpose.msra.mxu0 0.0
      %2010 = vmatprep.subr.mxu0 0.0
      %2011 = vmatpush1.xpose.msra.mxu0 0.0
      %2012 = vmatprep.subr.mxu0 0.0
      %2013 = vmatpush1.xpose.msra.mxu0 0.0
      %2014 = vmatprep.subr.mxu0 0.0
      %2015 = vmatpush1.xpose.msra.mxu0 0.0
      %2016 = vmatprep.subr.mxu0 0.0
      %2017 = vmatpush1.xpose.msra.mxu0 0.0
      %2018 = vmatprep.subr.mxu0 0.0
      %2019 = vmatpush1.xpose.msra.mxu0 0.0
      %2020 = vmatprep.subr.mxu0 0.0
      %2021 = vmatpush1.xpose.msra.mxu0 0.0
      %2022 = vmatprep.mubr.f32.mxu0 0.0
      %2023 = vmatmul.mubr.f32.gmra.mrb[0].mxu0 %v1808
      %v2024 = vpop.f32.mrb[0].mxu0
      %v2025 = vadd.f32 0.0, %v2024
      %v2026 = vpop.f32.mrb[0].mxu0
      %2027 = vdwg.mxu0
      %v2028 = vsel %vm572, %v2025, 0.0
      %2029 = vrot.lane.b32.xlu0 %v372, 104
      %v2030 = vpop.permute.xlu0 %2029
      %v2033 = vsel %vm575, %v2028, 0
      %2035 = vmatprep.subr.mxu0 0.0
      %2036 = vmatpush1.msra.mxu0 %v2030
      %2037 = vmatprep.subr.mxu0 0.0
      %2038 = vmatpush1.msra.mxu0 0.0
      %2039 = vmatprep.subr.mxu0 0.0
      %2040 = vmatpush1.msra.mxu0 0.0
      %2041 = vmatprep.subr.mxu0 0.0
      %2042 = vmatpush1.msra.mxu0 0.0
      %2043 = vmatprep.subr.mxu0 0.0
      %2044 = vmatpush1.msra.mxu0 0.0
      %2045 = vmatprep.subr.mxu0 0.0
      %2046 = vmatpush1.msra.mxu0 0.0
      %2047 = vmatprep.subr.mxu0 0.0
      %2048 = vmatpush1.msra.mxu0 0.0
      %2049 = vmatprep.subr.mxu0 0.0
      %2050 = vmatpush1.msra.mxu0 0.0
      %2051 = vmatprep.subr.mxu0 0.0
      %2052 = vmatpush1.msra.mxu0 0.0
      %2053 = vmatprep.subr.mxu0 0.0
      %2054 = vmatpush1.msra.mxu0 0.0
      %2055 = vmatprep.subr.mxu0 0.0
      %2056 = vmatpush1.msra.mxu0 0.0
      %2057 = vmatprep.subr.mxu0 0.0
      %2058 = vmatpush1.msra.mxu0 0.0
      %2059 = vmatprep.subr.mxu0 0.0
      %2060 = vmatpush1.msra.mxu0 0.0
      %2061 = vmatprep.subr.mxu0 0.0
      %2062 = vmatpush1.msra.mxu0 0.0
      %2063 = vmatprep.subr.mxu0 0.0
      %2064 = vmatpush1.msra.mxu0 0.0
      %2065 = vmatprep.subr.mxu0 0.0
      %2066 = vmatpush1.msra.mxu0 0.0
      %2067 = vmatprep.subr.mxu0 0.0
      %2068 = vmatpush1.msra.mxu0 0.0
      %2069 = vmatprep.subr.mxu0 0.0
      %2070 = vmatpush1.msra.mxu0 0.0
      %2071 = vmatprep.subr.mxu0 0.0
      %2072 = vmatpush1.msra.mxu0 0.0
      %2073 = vmatprep.subr.mxu0 0.0
      %2074 = vmatpush1.msra.mxu0 0.0
      %2075 = vmatprep.subr.mxu0 0.0
      %2076 = vmatpush1.msra.mxu0 0.0
      %2077 = vmatprep.subr.mxu0 0.0
      %2078 = vmatpush1.msra.mxu0 0.0
      %2079 = vmatprep.subr.mxu0 0.0
      %2080 = vmatpush1.msra.mxu0 0.0
      %2081 = vmatprep.subr.mxu0 0.0
      %2082 = vmatpush1.msra.mxu0 0.0
      %2083 = vmatprep.subr.mxu0 0.0
      %2084 = vmatpush1.msra.mxu0 0.0
      %2085 = vmatprep.subr.mxu0 0.0
      %2086 = vmatpush1.msra.mxu0 0.0
      %2087 = vmatprep.subr.mxu0 0.0
      %2088 = vmatpush1.msra.mxu0 0.0
      %2089 = vmatprep.subr.mxu0 0.0
      %2090 = vmatpush1.msra.mxu0 0.0
      %2091 = vmatprep.subr.mxu0 0.0
      %2092 = vmatpush1.msra.mxu0 0.0
      %2093 = vmatprep.subr.mxu0 0.0
      %2094 = vmatpush1.msra.mxu0 0.0
      %2095 = vmatprep.subr.mxu0 0.0
      %2096 = vmatpush1.msra.mxu0 0.0
      %2097 = vmatprep.subr.mxu0 0.0
      %2098 = vmatpush1.msra.mxu0 0.0
      %2099 = vmatprep.mubr.f32.mxu0 0.0
      %2100 = vmatmul.mubr.f32.gmra.mrb[0].mxu0 %v2033
      %v2101 = vpop.f32.mrb[0].mxu0
      %v2102 = vadd.f32 0.0, %v2101
      %v2103 = vpop.f32.mrb[0].mxu0
      %2104 = vdwg.mxu0
      %v2105 = vadd.f32 %v1951, %v2102
      %2107 = vxpose.xlu0.b32.start [1/16] %v1955, 128
      %2108 = vxpose.xlu0.b32.cont [2/16] 0.0, 128
      %2109 = vxpose.xlu0.b32.cont [3/16] 0.0, 128
      %2110 = vxpose.xlu0.b32.cont [4/16] 0.0, 128
      %2111 = vxpose.xlu0.b32.cont [5/16] 0.0, 128
      %2112 = vxpose.xlu0.b32.cont [6/16] 0.0, 128
      %2113 = vxpose.xlu0.b32.cont [7/16] 0.0, 128
      %2114 = vxpose.xlu0.b32.cont [8/16] 0.0, 128
      %2115 = vxpose.xlu0.b32.cont [9/16] 0.0, 128
      %2116 = vxpose.xlu0.b32.cont [10/16] 0.0, 128
      %2117 = vxpose.xlu0.b32.cont [11/16] 0.0, 128
      %2118 = vxpose.xlu0.b32.cont [12/16] 0.0, 128
      %2119 = vxpose.xlu0.b32.cont [13/16] 0.0, 128
      %2120 = vxpose.xlu0.b32.cont [14/16] 0.0, 128
      %2121 = vxpose.xlu0.b32.cont [15/16] 0.0, 128
      %2122 = vxpose.xlu0.b32.end [16/16] 0.0, 128
      %v2123 = vpop.trf.xlu0
      %v2124 = vpop.trf.xlu0
      %v2125 = vpop.trf.xlu0
      %v2126 = vpop.trf.xlu0
      %v2127 = vpop.trf.xlu0
      %v2128 = vpop.trf.xlu0
      %v2129 = vpop.trf.xlu0
      %v2130 = vpop.trf.xlu0
      %v2131 = vpop.trf.xlu0
      %v2132 = vpop.trf.xlu0
      %v2133 = vpop.trf.xlu0
      %v2134 = vpop.trf.xlu0
      %v2135 = vpop.trf.xlu0
      %v2136 = vpop.trf.xlu0
      %v2137 = vpop.trf.xlu0
      %v2138 = vpop.trf.xlu0
      %v2140 = vsel %vm575, %v2123, 0
      %2142 = vmatprep.subr.mxu0 0.0
      %2143 = vmatpush1.msra.mxu0 %v2030
      %2144 = vmatprep.subr.mxu0 0.0
      %2145 = vmatpush1.msra.mxu0 0.0
      %2146 = vmatprep.subr.mxu0 0.0
      %2147 = vmatpush1.msra.mxu0 0.0
      %2148 = vmatprep.subr.mxu0 0.0
      %2149 = vmatpush1.msra.mxu0 0.0
      %2150 = vmatprep.subr.mxu0 0.0
      %2151 = vmatpush1.msra.mxu0 0.0
      %2152 = vmatprep.subr.mxu0 0.0
      %2153 = vmatpush1.msra.mxu0 0.0
      %2154 = vmatprep.subr.mxu0 0.0
      %2155 = vmatpush1.msra.mxu0 0.0
      %2156 = vmatprep.subr.mxu0 0.0
      %2157 = vmatpush1.msra.mxu0 0.0
      %2158 = vmatprep.subr.mxu0 0.0
      %2159 = vmatpush1.msra.mxu0 0.0
      %2160 = vmatprep.subr.mxu0 0.0
      %2161 = vmatpush1.msra.mxu0 0.0
      %2162 = vmatprep.subr.mxu0 0.0
      %2163 = vmatpush1.msra.mxu0 0.0
      %2164 = vmatprep.subr.mxu0 0.0
      %2165 = vmatpush1.msra.mxu0 0.0
      %2166 = vmatprep.subr.mxu0 0.0
      %2167 = vmatpush1.msra.mxu0 0.0
      %2168 = vmatprep.subr.mxu0 0.0
      %2169 = vmatpush1.msra.mxu0 0.0
      %2170 = vmatprep.subr.mxu0 0.0
      %2171 = vmatpush1.msra.mxu0 0.0
      %2172 = vmatprep.subr.mxu0 0.0
      %2173 = vmatpush1.msra.mxu0 0.0
      %2174 = vmatprep.subr.mxu0 0.0
      %2175 = vmatpush1.msra.mxu0 0.0
      %2176 = vmatprep.subr.mxu0 0.0
      %2177 = vmatpush1.msra.mxu0 0.0
      %2178 = vmatprep.subr.mxu0 0.0
      %2179 = vmatpush1.msra.mxu0 0.0
      %2180 = vmatprep.subr.mxu0 0.0
      %2181 = vmatpush1.msra.mxu0 0.0
      %2182 = vmatprep.subr.mxu0 0.0
      %2183 = vmatpush1.msra.mxu0 0.0
      %2184 = vmatprep.subr.mxu0 0.0
      %2185 = vmatpush1.msra.mxu0 0.0
      %2186 = vmatprep.subr.mxu0 0.0
      %2187 = vmatpush1.msra.mxu0 0.0
      %2188 = vmatprep.subr.mxu0 0.0
      %2189 = vmatpush1.msra.mxu0 0.0
      %2190 = vmatprep.subr.mxu0 0.0
      %2191 = vmatpush1.msra.mxu0 0.0
      %2192 = vmatprep.subr.mxu0 0.0
      %2193 = vmatpush1.msra.mxu0 0.0
      %2194 = vmatprep.subr.mxu0 0.0
      %2195 = vmatpush1.msra.mxu0 0.0
      %2196 = vmatprep.subr.mxu0 0.0
      %2197 = vmatpush1.msra.mxu0 0.0
      %2198 = vmatprep.subr.mxu0 0.0
      %2199 = vmatpush1.msra.mxu0 0.0
      %2200 = vmatprep.subr.mxu0 0.0
      %2201 = vmatpush1.msra.mxu0 0.0
      %2202 = vmatprep.subr.mxu0 0.0
      %2203 = vmatpush1.msra.mxu0 0.0
      %2204 = vmatprep.subr.mxu0 0.0
      %2205 = vmatpush1.msra.mxu0 0.0
      %2206 = vmatprep.mubr.f32.mxu0 0.0
      %2207 = vmatmul.mubr.f32.gmra.mrb[0].mxu0 %v2140
      %v2208 = vpop.f32.mrb[0].mxu0
      %v2209 = vadd.f32 0.0, %v2208
      %v2210 = vpop.f32.mrb[0].mxu0
      %2211 = vdwg.mxu0
      %v2212 = vadd.f32 %v1805, %v2209
      %2213 = vst.msk [vmem:[%s1804] sm:$0xff] %vm575, %v2212
      %2215 = vrot.lane.b32.xlu0 %v1281, 8
      %v2216 = vpop.permute.xlu0 %2215
      %2219 = vrot.lane.b32.xlu0 %v1693, 16
      %v2220 = vpop.permute.xlu0 %2219
      %2223 = vrot.lane.b32.xlu0 %v2105, 24
      %v2224 = vpop.permute.xlu0 %2223
      %v2226 = vsel %vm575, %v869, %v2216
      %vm2227 = vcmask 130048
      %v2228 = vsel %vm2227, %v2226, %v2220
      %vm2229 = vcmask 195584
      %v2230 = vsel %vm2229, %v2228, %v2224
      %v2231 = vadd.f32 %v2230, %v569
      %v2232 = vpack.c.bf16 %v2231, %v2231
      %vm2233 = vcmask 257024
      %2234 = vst.msk [vmem:[%s360] sm:$0xf] %vm2233, %v2232
      %p2235 = scmp.lt.s32.totalorder %s22, 1
      %s2236 = scalar_select %p2235, %s22, 1
      %p2237 = scmp.lt.s32.totalorder %s23, 0
      %s2238 = scalar_select %p2237, %s23, 0
      %s2239 = sadd.s32 %s2238, %s2236
      %s2240 = smul.addr %s2239, 4
      %s2241 = scalar_lea.vmem %s7, %s2240
      // Predicated region
      $region53: #{v5tune_forward.12} parent=47 // pred_check
        %p2242 = pneg %p218
      $region54: #{v5tune_forward.12} parent=47 // pred_check_branch
        %2244 = sbr.rel (%p2242) target = $region56
      $region55: #{v5tune_forward.12} parent=47 // pred_region
        _
      $region56: #{v5tune_forward.12} parent=47 // pred_fallthru
        _
    $region48: #{v5tune_forward.12} parent=5 // pred_fallthru
      _
    %p2245 = scmp.le.s32.totalorder 2, %s13
    // Predicated region
    $region57: #{v5tune_forward.12} parent=5 // pred_check
      %p2246 = pneg %p2245
    $region58: #{v5tune_forward.12} parent=5 // pred_check_branch
      %2248 = sbr.rel (%p2246) target = $region60
    $region59: #{v5tune_forward.12} parent=5 // pred_region
      %s2249 = ssub.s32 %s13, 2
      // Predicated region
      $region61: #{v5tune_forward.12} parent=59 // pred_check
        %p2250 = pneg %p224
      $region62: #{v5tune_forward.12} parent=59 // pred_check_branch
        %2252 = sbr.rel (%p2250) target = $region64
      $region63: #{v5tune_forward.12} parent=59 // pred_region
        %p2253 = scmp.lt.s32.totalorder %s24, 1
        %s2254 = scalar_select %p2253, %s24, 1
        %p2255 = scmp.lt.s32.totalorder %s25, 0
        %s2256 = scalar_select %p2255, %s25, 0
        %s2257 = sadd.s32 %s2256, %s2254
        %s2258 = smul.addr %s2257, 4
        %s2259 = scalar_lea.vmem %s7, %s2258
      $region64: #{v5tune_forward.12} parent=59 // pred_fallthru
        _
    $region60: #{v5tune_forward.12} parent=5 // pred_fallthru
      _
  $region6: #{v5tune_forward.12} parent=0 // loop_footer
    %s17 = sadd.s32 1, %s13
  $region7: #{v5tune_forward.12} parent=0 // loop_footer_branch
    %12 = sbr.rel target = $region3
  $region8: #{v5tune_forward.12} parent=0 // loop_exit
    _

// kernel: v5tune_forward.15
$region0: #{v5tune_forward.15}
  #allocation0 [shape = 'u32[]', space=smem, size = 0x4, offset = 0x4, fixed_abs, tag = 'smem constant byte address 0x4 - core index']
  #allocation1 [shape = 'u32[144,128]{1,0:T(1,128)}', space=vmem, size = 0x12000, scoped, tag = 'internal scratch']
  #allocation2 [shape = 'f32[16,32]{1,0:T(8,128)}', space=vmem, size = 0x2000, scoped, tag = 'scratch operand']
  %s0 = inlined_call_operand.vmem [shape: f32[16,32], index: 0, kind: input, shape index: {}]
  %s1 = inlined_call_operand.vmem [shape: f32[16,32], index: 1, kind: input, shape index: {}]
  %s2 = inlined_call_operand.vmem [shape: f32[1,32], index: 2, kind: input, shape index: {}]
  %s3 = inlined_call_operand.vmem [shape: f32[1,32], index: 3, kind: input, shape index: {}]
  %s4 = inlined_call_operand.vmem [shape: bf16[64,32], index: 4, kind: input, shape index: {}]
  %s5 = inlined_call_operand.vmem [shape: bf16[32,64], index: 5, kind: input, shape index: {}]
  %s6 = inlined_call_operand.vmem [shape: bf16[32,32], index: 6, kind: input, shape index: {}]
  %s7 = inlined_call_operand.vmem [shape: f32[16,32], index: 7, kind: output, shape index: {}]
  %s8 = sld [smem:[#allocation0]]
  $region46: #{v5tune_forward.15} parent=0
    _
  %s10 = ssub.s32 1, %s8
  %s11 = scalar_select 0, %s10, %s8
  // Predicated region
  $region2: #{v5tune_forward.15} parent=0 // pred_check
    _
  $region3: #{v5tune_forward.15} parent=0 // pred_check_branch
    %13 = sbr.rel (0) target = $region5
  $region4: #{v5tune_forward.15} parent=0 // pred_region
    _
  $region5: #{v5tune_forward.15} parent=0 // pred_fallthru
    _
  // Predicated region
  $region6: #{v5tune_forward.15} parent=0 // pred_check
    _
  $region7: #{v5tune_forward.15} parent=0 // pred_check_branch
    %15 = sbr.rel (0) target = $region9
  $region8: #{v5tune_forward.15} parent=0 // pred_region
    _
  $region9: #{v5tune_forward.15} parent=0 // pred_fallthru
    _
  // Predicated region
  $region10: #{v5tune_forward.15} parent=0 // pred_check
    _
  $region11: #{v5tune_forward.15} parent=0 // pred_check_branch
    %17 = sbr.rel (0) target = $region13
  $region12: #{v5tune_forward.15} parent=0 // pred_region
    _
  $region13: #{v5tune_forward.15} parent=0 // pred_fallthru
    _
  // Predicated region
  $region14: #{v5tune_forward.15} parent=0 // pred_check
    _
  $region15: #{v5tune_forward.15} parent=0 // pred_check_branch
    %19 = sbr.rel (0) target = $region17
  $region16: #{v5tune_forward.15} parent=0 // pred_region
    _
  $region17: #{v5tune_forward.15} parent=0 // pred_fallthru
    _
  // Predicated region
  $region18: #{v5tune_forward.15} parent=0 // pred_check
    _
  $region19: #{v5tune_forward.15} parent=0 // pred_check_branch
    %21 = sbr.rel (0) target = $region21
  $region20: #{v5tune_forward.15} parent=0 // pred_region
    _
  $region21: #{v5tune_forward.15} parent=0 // pred_fallthru
    _
  // Predicated region
  $region22: #{v5tune_forward.15} parent=0 // pred_check
    _
  $region23: #{v5tune_forward.15} parent=0 // pred_check_branch
    %23 = sbr.rel (0) target = $region25
  $region24: #{v5tune_forward.15} parent=0 // pred_region
    _
  $region25: #{v5tune_forward.15} parent=0 // pred_fallthru
    _
  // Predicated region
  $region26: #{v5tune_forward.15} parent=0 // pred_check
    _
  $region27: #{v5tune_forward.15} parent=0 // pred_check_branch
    %25 = sbr.rel (0) target = $region29
  $region28: #{v5tune_forward.15} parent=0 // pred_region
    _
  $region29: #{v5tune_forward.15} parent=0 // pred_fallthru
    _
  %p27 = scmp.eq.s32.totalorder 0, 0
  // Predicated region
  $region30: #{v5tune_forward.15} parent=0 // pred_check
    %p28 = pneg %p27
  $region31: #{v5tune_forward.15} parent=0 // pred_check_branch
    %30 = sbr.rel (%p28) target = $region33
  $region32: #{v5tune_forward.15} parent=0 // pred_region
    %vm31 = vcmask 261120
    %32 = vst.msk [vmem:[#allocation2] sm:$0xff] %vm31, 0.0
    %33 = vst.msk [vmem:[#allocation2 + $0x8] sm:$0xff] %vm31, 0.0
  $region33: #{v5tune_forward.15} parent=0 // pred_fallthru
    _
  %v34 = vld [vmem:[%s0] sm:$0xff]
  %v35 = vld [vmem:[%s0 + $0x8] sm:$0xff]
  %v36 = vld [vmem:[%s1] sm:$0xff]
  %v37 = vld [vmem:[%s1 + $0x8] sm:$0xff]
  %v38 = vld [vmem:[%s2] sm:$0x1]
  %v40 = vlaneseq
  %v41 = vshrl.u32 %v40, 7
  %v42 = vsub.s32 0, %v41
  %v43 = vrot.slane %v38, %v42
  %v45 = vmul.f32 %v34, %v43
  %v46 = vmul.f32 %v35, %v43
  %v47 = vsub.f32 1.0, %v38
  %v49 = vlaneseq
  %v50 = vshrl.u32 %v49, 7
  %v51 = vsub.s32 0, %v50
  %v52 = vrot.slane %v47, %v51
  %v54 = vmul.f32 %v36, %v52
  %v55 = vmul.f32 %v37, %v52
  %v56 = vadd.f32 %v45, %v54
  %v57 = vadd.f32 %v46, %v55
  %v58 = vpack.c.bf16 %v57, %v56
  %v59 = vld [vmem:[%s4] sm:$0xf]
  %v60 = vld [vmem:[%s4 + $0x4] sm:$0xf]
  %v61 = vld [vmem:[%s4 + $0x8] sm:$0xf]
  %v62 = vld [vmem:[%s4 + $0xc] sm:$0xf]
  %v63 = vld [vmem:[%s4 + $0x10] sm:$0xf]
  %v64 = vld [vmem:[%s4 + $0x14] sm:$0xf]
  %v65 = vld [vmem:[%s4 + $0x18] sm:$0xf]
  %v66 = vld [vmem:[%s4 + $0x1c] sm:$0xf]
  %v75 = vunpack.c.l.b16 %v59
  %v76 = vunpack.c.l.b16 %v60
  %v77 = vunpack.c.l.b16 %v61
  %v78 = vunpack.c.l.b16 %v62
  %v79 = vunpack.c.l.b16 %v63
  %v80 = vunpack.c.l.b16 %v64
  %v81 = vunpack.c.l.b16 %v65
  %v82 = vunpack.c.l.b16 %v66
  %v83 = vpack.c.b16 %v76, %v75
  %v84 = vpack.c.b16 %v78, %v77
  %v85 = vpack.c.b16 %v80, %v79
  %v86 = vpack.c.b16 %v82, %v81
  %vm87 = vcmask 261120
  %v89 = vsel %vm87, %v58, 0
  %v92 = vsel %vm87, %v83, 0
  %v95 = vsel %vm87, %v84, 0
  %v98 = vsel %vm87, %v85, 0
  %v101 = vsel %vm87, %v86, 0
  %103 = vmatprep.subr.bf16.mxu0 0
  %104 = vmatpush1.bf16.xpose.msra.mxu0 %v92
  %105 = vmatprep.subr.bf16.mxu0 0
  %106 = vmatpush1.bf16.xpose.msra.mxu0 %v95
  %107 = vmatprep.subr.bf16.mxu0 0
  %108 = vmatpush1.bf16.xpose.msra.mxu0 %v98
  %109 = vmatprep.subr.bf16.mxu0 0
  %110 = vmatpush1.bf16.xpose.msra.mxu0 %v101
  %111 = vmatprep.subr.bf16.mxu0 0
  %112 = vmatpush1.bf16.xpose.msra.mxu0 0
  %113 = vmatprep.subr.bf16.mxu0 0
  %114 = vmatpush1.bf16.xpose.msra.mxu0 0
  %115 = vmatprep.subr.bf16.mxu0 0
  %116 = vmatpush1.bf16.xpose.msra.mxu0 0
  %117 = vmatprep.subr.bf16.mxu0 0
  %118 = vmatpush1.bf16.xpose.msra.mxu0 0
  %119 = vmatprep.subr.bf16.mxu0 0
  %120 = vmatpush1.bf16.xpose.msra.mxu0 0
  %121 = vmatprep.subr.bf16.mxu0 0
  %122 = vmatpush1.bf16.xpose.msra.mxu0 0
  %123 = vmatprep.subr.bf16.mxu0 0
  %124 = vmatpush1.bf16.xpose.msra.mxu0 0
  %125 = vmatprep.subr.bf16.mxu0 0
  %126 = vmatpush1.bf16.xpose.msra.mxu0 0
  %127 = vmatprep.subr.bf16.mxu0 0
  %128 = vmatpush1.bf16.xpose.msra.mxu0 0
  %129 = vmatprep.subr.bf16.mxu0 0
  %130 = vmatpush1.bf16.xpose.msra.mxu0 0
  %131 = vmatprep.subr.bf16.mxu0 0
  %132 = vmatpush1.bf16.xpose.msra.mxu0 0
  %133 = vmatprep.subr.bf16.mxu0 0
  %134 = vmatpush1.bf16.xpose.msra.mxu0 0
  %135 = vmatprep.mubr.bf16.mxu0 0
  %136 = vmatmul.mubr.bf16.gmra.mrb[0].mxu0 %v89
  %v137 = vpop.f32.mrb[0].mxu0
  %v138 = vadd.f32 0.0, %v137
  %v139 = vpop.f32.mrb[0].mxu0
  %v140 = vpop.f32.mrb[0].mxu0
  %v141 = vadd.f32 0.0, %v140
  %v142 = vpop.f32.mrb[0].mxu0
  %143 = vdwg.mxu0
  %v144 = vmax.f32 %v138, 0.0
  %v145 = vmax.f32 %v141, 0.0
  %v146 = vmul.f32 %v144, %v144
  %v147 = vmul.f32 %v145, %v145
  %v148 = vld [vmem:[#allocation2] sm:$0xff]
  %v149 = vld [vmem:[#allocation2 + $0x8] sm:$0xff]
  %v150 = vpack.c.bf16 %v147, %v146
  %v151 = vld [vmem:[%s5] sm:$0xf]
  %v152 = vld [vmem:[%s5 + $0x4] sm:$0xf]
  %v153 = vld [vmem:[%s5 + $0x8] sm:$0xf]
  %v154 = vld [vmem:[%s5 + $0xc] sm:$0xf]
  %v159 = vunpack.c.l.b16 %v151
  %v160 = vunpack.c.l.b16 %v152
  %v161 = vunpack.c.l.b16 %v153
  %v162 = vunpack.c.l.b16 %v154
  %v163 = vpack.c.b16 %v160, %v159
  %v164 = vpack.c.b16 %v162, %v161
  %vm165 = vcmask 523264
  %v167 = vsel %vm165, %v150, 0
  %v170 = vsel %vm165, %v163, 0
  %v173 = vsel %vm165, %v164, 0
  %175 = vmatprep.subr.bf16.mxu0 0
  %176 = vmatpush1.bf16.xpose.msra.mxu0 %v170
  %177 = vmatprep.subr.bf16.mxu0 0
  %178 = vmatpush1.bf16.xpose.msra.mxu0 %v173
  %179 = vmatprep.subr.bf16.mxu0 0
  %180 = vmatpush1.bf16.xpose.msra.mxu0 0
  %181 = vmatprep.subr.bf16.mxu0 0
  %182 = vmatpush1.bf16.xpose.msra.mxu0 0
  %183 = vmatprep.subr.bf16.mxu0 0
  %184 = vmatpush1.bf16.xpose.msra.mxu0 0
  %185 = vmatprep.subr.bf16.mxu0 0
  %186 = vmatpush1.bf16.xpose.msra.mxu0 0
  %187 = vmatprep.subr.bf16.mxu0 0
  %188 = vmatpush1.bf16.xpose.msra.mxu0 0
  %189 = vmatprep.subr.bf16.mxu0 0
  %190 = vmatpush1.bf16.xpose.msra.mxu0 0
  %191 = vmatprep.subr.bf16.mxu0 0
  %192 = vmatpush1.bf16.xpose.msra.mxu0 0
  %193 = vmatprep.subr.bf16.mxu0 0
  %194 = vmatpush1.bf16.xpose.msra.mxu0 0
  %195 = vmatprep.subr.bf16.mxu0 0
  %196 = vmatpush1.bf16.xpose.msra.mxu0 0
  %197 = vmatprep.subr.bf16.mxu0 0
  %198 = vmatpush1.bf16.xpose.msra.mxu0 0
  %199 = vmatprep.subr.bf16.mxu0 0
  %200 = vmatpush1.bf16.xpose.msra.mxu0 0
  %201 = vmatprep.subr.bf16.mxu0 0
  %202 = vmatpush1.bf16.xpose.msra.mxu0 0
  %203 = vmatprep.subr.bf16.mxu0 0
  %204 = vmatpush1.bf16.xpose.msra.mxu0 0
  %205 = vmatprep.subr.bf16.mxu0 0
  %206 = vmatpush1.bf16.xpose.msra.mxu0 0
  %207 = vmatprep.mubr.bf16.mxu0 0
  %208 = vmatmul.mubr.bf16.gmra.mrb[0].mxu0 %v167
  %v209 = vpop.f32.mrb[0].mxu0
  %v210 = vadd.f32 0.0, %v209
  %v211 = vpop.f32.mrb[0].mxu0
  %v212 = vpop.f32.mrb[0].mxu0
  %v213 = vadd.f32 0.0, %v212
  %v214 = vpop.f32.mrb[0].mxu0
  %215 = vdwg.mxu0
  %v216 = vadd.f32 %v148, %v210
  %v217 = vadd.f32 %v149, %v213
  %218 = vst.msk [vmem:[#allocation2] sm:$0xff] %vm87, %v216
  %219 = vst.msk [vmem:[#allocation2 + $0x8] sm:$0xff] %vm87, %v217
  // Predicated region
  $region34: #{v5tune_forward.15} parent=0 // pred_check
    %p220 = pneg %p27
  $region35: #{v5tune_forward.15} parent=0 // pred_check_branch
    %222 = sbr.rel (%p220) target = $region37
  $region36: #{v5tune_forward.15} parent=0 // pred_region
    %v223 = vld [vmem:[%s3] sm:$0x1]
    %v225 = vlaneseq
    %v226 = vshrl.u32 %v225, 7
    %v227 = vsub.s32 0, %v226
    %v228 = vrot.slane %v223, %v227
    %v230 = vmul.f32 %v34, %v228
    %v231 = vmul.f32 %v35, %v228
    %v232 = vsub.f32 1.0, %v223
    %v234 = vlaneseq
    %v235 = vshrl.u32 %v234, 7
    %v236 = vsub.s32 0, %v235
    %v237 = vrot.slane %v232, %v236
    %v239 = vmul.f32 %v36, %v237
    %v240 = vmul.f32 %v37, %v237
    %v241 = vadd.f32 %v230, %v239
    %v242 = vadd.f32 %v231, %v240
    %v243 = vpack.c.bf16 %v242, %v241
    %v244 = vld [vmem:[%s6] sm:$0xf]
    %v245 = vld [vmem:[%s6 + $0x4] sm:$0xf]
    %v246 = vld [vmem:[%s6 + $0x8] sm:$0xf]
    %v247 = vld [vmem:[%s6 + $0xc] sm:$0xf]
    %v252 = vunpack.c.l.b16 %v244
    %v253 = vunpack.c.l.b16 %v245
    %v254 = vunpack.c.l.b16 %v246
    %v255 = vunpack.c.l.b16 %v247
    %v256 = vpack.c.b16 %v253, %v252
    %v257 = vpack.c.b16 %v255, %v254
    %v259 = vsel %vm87, %v243, 0
    %v262 = vsel %vm87, %v256, 0
    %v265 = vsel %vm87, %v257, 0
    %267 = vmatprep.subr.bf16.mxu0 0
    %268 = vmatpush1.bf16.xpose.msra.mxu0 %v262
    %269 = vmatprep.subr.bf16.mxu0 0
    %270 = vmatpush1.bf16.xpose.msra.mxu0 %v265
    %271 = vmatprep.subr.bf16.mxu0 0
    %272 = vmatpush1.bf16.xpose.msra.mxu0 0
    %273 = vmatprep.subr.bf16.mxu0 0
    %274 = vmatpush1.bf16.xpose.msra.mxu0 0
    %275 = vmatprep.subr.bf16.mxu0 0
    %276 = vmatpush1.bf16.xpose.msra.mxu0 0
    %277 = vmatprep.subr.bf16.mxu0 0
    %278 = vmatpush1.bf16.xpose.msra.mxu0 0
    %279 = vmatprep.subr.bf16.mxu0 0
    %280 = vmatpush1.bf16.xpose.msra.mxu0 0
    %281 = vmatprep.subr.bf16.mxu0 0
    %282 = vmatpush1.bf16.xpose.msra.mxu0 0
    %283 = vmatprep.subr.bf16.mxu0 0
    %284 = vmatpush1.bf16.xpose.msra.mxu0 0
    %285 = vmatprep.subr.bf16.mxu0 0
    %286 = vmatpush1.bf16.xpose.msra.mxu0 0
    %287 = vmatprep.subr.bf16.mxu0 0
    %288 = vmatpush1.bf16.xpose.msra.mxu0 0
    %289 = vmatprep.subr.bf16.mxu0 0
    %290 = vmatpush1.bf16.xpose.msra.mxu0 0
    %291 = vmatprep.subr.bf16.mxu0 0
    %292 = vmatpush1.bf16.xpose.msra.mxu0 0
    %293 = vmatprep.subr.bf16.mxu0 0
    %294 = vmatpush1.bf16.xpose.msra.mxu0 0
    %295 = vmatprep.subr.bf16.mxu0 0
    %296 = vmatpush1.bf16.xpose.msra.mxu0 0
    %297 = vmatprep.subr.bf16.mxu0 0
    %298 = vmatpush1.bf16.xpose.msra.mxu0 0
    %299 = vmatprep.mubr.bf16.mxu0 0
    %300 = vmatmul.mubr.bf16.gmra.mrb[0].mxu0 %v259
    %v301 = vpop.f32.mrb[0].mxu0
    %v302 = vadd.f32 0.0, %v301
    %v303 = vpop.f32.mrb[0].mxu0
    %v304 = vpop.f32.mrb[0].mxu0
    %v305 = vadd.f32 0.0, %v304
    %v306 = vpop.f32.mrb[0].mxu0
    %307 = vdwg.mxu0
    %v308 = vsub.f32 0.0, %v302
    %v309 = vsub.f32 0.0, %v305
    %v310 = vmul.f32 %v308, 1.442695
    %v311 = vpow.pop %v310
    %v312 = vmul.f32 %v309, 1.442695
    %v313 = vpow.pop %v312
    %v314 = vadd.f32 %v311, 1.0
    %v315 = vadd.f32 %v313, 1.0
    %v316 = vrcp.pop %v314
    %v317 = vrcp.pop %v315
    %v318 = vld [vmem:[#allocation2] sm:$0xff]
    %v319 = vld [vmem:[#allocation2 + $0x8] sm:$0xff]
    %v320 = vmul.f32 %v316, %v318
    %v321 = vmul.f32 %v317, %v319
    %322 = vst.msk [vmem:[%s7] sm:$0xff] %vm87, %v320
    %323 = vst.msk [vmem:[%s7 + $0x8] sm:$0xff] %vm87, %v321
  $region37: #{v5tune_forward.15} parent=0 // pred_fallthru
    _
  // Predicated region
  $region38: #{v5tune_forward.15} parent=0 // pred_check
    _
  $region39: #{v5tune_forward.15} parent=0 // pred_check_branch
    %325 = sbr.rel (0) target = $region41
  $region40: #{v5tune_forward.15} parent=0 // pred_region
    _
  $region41: #{v5tune_forward.15} parent=0 // pred_fallthru
    _
  // Predicated region
  $region42: #{v5tune_forward.15} parent=0 // pred_check
    _
  $region43: #{v5tune_forward.15} parent=0 // pred_check_branch
    %327 = sbr.rel (0) target = $region45
  $region44: #{v5tune_forward.15} parent=0 // pred_region
    _
  $region45: #{v5tune_forward.15} parent=0 // pred_fallthru
    _

// kernel: v5tune_forward.21
$region0: #{v5tune_forward.21}
  #allocation0 [shape = 'u32[]', space=smem, size = 0x4, offset = 0x4, fixed_abs, tag = 'smem constant byte address 0x4 - core index']
  #allocation1 [shape = 'u32[144,128]{1,0:T(1,128)}', space=vmem, size = 0x12000, scoped, tag = 'internal scratch']
  #allocation2 [shape = 'f32[16,48]{1,0:T(8,128)}', space=vmem, size = 0x2000, scoped, tag = 'scratch operand']
  %s0 = inlined_call_operand.vmem [shape: f32[16,32], index: 0, kind: input, shape index: {}]
  %s1 = inlined_call_operand.vmem [shape: bf16[48,32], index: 1, kind: input, shape index: {}]
  %s2 = inlined_call_operand.hbm [shape: f32[16,48], index: 2, kind: output, shape index: {}]
  %s3 = sld [smem:[#allocation0]]
  $region26: #{v5tune_forward.21} parent=0
    _
  %s5 = ssub.s32 1, %s3
  %s6 = scalar_select 0, %s5, %s3
  $region1: #{v5tune_forward.21} parent=0
    #allocation3 [shape = 'u8[8192]{0}', space=vmem, size = 0x2000, scoped, tag = 'output window, operand 0, single buffered']
    #allocation4 [shape = 's32[1]{0}', space=sflag, size = 0x4, scoped, tag = 'scoped memory for v5tune_forward.21']
    %7 = vsyncpa [#allocation4], 0
    // Predicated region
    $region2: #{v5tune_forward.21} parent=1 // pred_check
      _
    $region3: #{v5tune_forward.21} parent=1 // pred_check_branch
      %9 = sbr.rel (0) target = $region5
    $region4: #{v5tune_forward.21} parent=1 // pred_region
      _
    $region5: #{v5tune_forward.21} parent=1 // pred_fallthru
      _
    // Predicated region
    $region6: #{v5tune_forward.21} parent=1 // pred_check
      _
    $region7: #{v5tune_forward.21} parent=1 // pred_check_branch
      %11 = sbr.rel (0) target = $region9
    $region8: #{v5tune_forward.21} parent=1 // pred_region
      _
    $region9: #{v5tune_forward.21} parent=1 // pred_fallthru
      _
    %p13 = scmp.eq.s32.totalorder 0, 0
    // Predicated region
    $region10: #{v5tune_forward.21} parent=1 // pred_check
      %p14 = pneg %p13
    $region11: #{v5tune_forward.21} parent=1 // pred_check_branch
      %16 = sbr.rel (%p14) target = $region13
    $region12: #{v5tune_forward.21} parent=1 // pred_region
      %vm17 = vcmask 392192
      %18 = vst.msk [vmem:[#allocation2] sm:$0xff] %vm17, 0.0
      %19 = vst.msk [vmem:[#allocation2 + $0x8] sm:$0xff] %vm17, 0.0
    $region13: #{v5tune_forward.21} parent=1 // pred_fallthru
      _
    %v20 = vld [vmem:[#allocation2] sm:$0xff]
    %v21 = vld [vmem:[#allocation2 + $0x8] sm:$0xff]
    %v22 = vld [vmem:[%s0] sm:$0xff]
    %v23 = vld [vmem:[%s0 + $0x8] sm:$0xff]
    %v24 = vpack.c.bf16 %v23, %v22
    %v25 = vld [vmem:[%s1] sm:$0xf]
    %v26 = vld [vmem:[%s1 + $0x4] sm:$0xf]
    %v27 = vld [vmem:[%s1 + $0x8] sm:$0xf]
    %v28 = vld [vmem:[%s1 + $0xc] sm:$0xf]
    %v29 = vld [vmem:[%s1 + $0x10] sm:$0xf]
    %v30 = vld [vmem:[%s1 + $0x14] sm:$0xf]
    %v37 = vunpack.c.l.b16 %v25
    %v38 = vunpack.c.l.b16 %v26
    %v39 = vunpack.c.l.b16 %v27
    %v40 = vunpack.c.l.b16 %v28
    %v41 = vunpack.c.l.b16 %v29
    %v42 = vunpack.c.l.b16 %v30
    %v43 = vpack.c.b16 %v38, %v37
    %v44 = vpack.c.b16 %v40, %v39
    %v45 = vpack.c.b16 %v42, %v41
    %vm46 = vcmask 261120
    %v48 = vsel %vm46, %v24, 0
    %v51 = vsel %vm46, %v43, 0
    %v54 = vsel %vm46, %v44, 0
    %v57 = vsel %vm46, %v45, 0
    %59 = vmatprep.subr.bf16.mxu0 0
    %60 = vmatpush1.bf16.xpose.msra.mxu0 %v51
    %61 = vmatprep.subr.bf16.mxu0 0
    %62 = vmatpush1.bf16.xpose.msra.mxu0 %v54
    %63 = vmatprep.subr.bf16.mxu0 0
    %64 = vmatpush1.bf16.xpose.msra.mxu0 %v57
    %65 = vmatprep.subr.bf16.mxu0 0
    %66 = vmatpush1.bf16.xpose.msra.mxu0 0
    %67 = vmatprep.subr.bf16.mxu0 0
    %68 = vmatpush1.bf16.xpose.msra.mxu0 0
    %69 = vmatprep.subr.bf16.mxu0 0
    %70 = vmatpush1.bf16.xpose.msra.mxu0 0
    %71 = vmatprep.subr.bf16.mxu0 0
    %72 = vmatpush1.bf16.xpose.msra.mxu0 0
    %73 = vmatprep.subr.bf16.mxu0 0
    %74 = vmatpush1.bf16.xpose.msra.mxu0 0
    %75 = vmatprep.subr.bf16.mxu0 0
    %76 = vmatpush1.bf16.xpose.msra.mxu0 0
    %77 = vmatprep.subr.bf16.mxu0 0
    %78 = vmatpush1.bf16.xpose.msra.mxu0 0
    %79 = vmatprep.subr.bf16.mxu0 0
    %80 = vmatpush1.bf16.xpose.msra.mxu0 0
    %81 = vmatprep.subr.bf16.mxu0 0
    %82 = vmatpush1.bf16.xpose.msra.mxu0 0
    %83 = vmatprep.subr.bf16.mxu0 0
    %84 = vmatpush1.bf16.xpose.msra.mxu0 0
    %85 = vmatprep.subr.bf16.mxu0 0
    %86 = vmatpush1.bf16.xpose.msra.mxu0 0
    %87 = vmatprep.subr.bf16.mxu0 0
    %88 = vmatpush1.bf16.xpose.msra.mxu0 0
    %89 = vmatprep.subr.bf16.mxu0 0
    %90 = vmatpush1.bf16.xpose.msra.mxu0 0
    %91 = vmatprep.mubr.bf16.mxu0 0
    %92 = vmatmul.mubr.bf16.gmra.mrb[0].mxu0 %v48
    %v93 = vpop.f32.mrb[0].mxu0
    %v94 = vadd.f32 0.0, %v93
    %v95 = vpop.f32.mrb[0].mxu0
    %v96 = vpop.f32.mrb[0].mxu0
    %v97 = vadd.f32 0.0, %v96
    %v98 = vpop.f32.mrb[0].mxu0
    %99 = vdwg.mxu0
    %v100 = vadd.f32 %v20, %v94
    %v101 = vadd.f32 %v21, %v97
    %vm102 = vcmask 392192
    %103 = vst.msk [vmem:[#allocation2] sm:$0xff] %vm102, %v100
    %104 = vst.msk [vmem:[#allocation2 + $0x8] sm:$0xff] %vm102, %v101
    // Predicated region
    $region14: #{v5tune_forward.21} parent=1 // pred_check
      %p105 = pneg %p13
    $region15: #{v5tune_forward.21} parent=1 // pred_check_branch
      %107 = sbr.rel (%p105) target = $region17
    $region16: #{v5tune_forward.21} parent=1 // pred_region
      %v108 = vld [vmem:[#allocation2] sm:$0xff]
      %v109 = vld [vmem:[#allocation2 + $0x8] sm:$0xff]
      %110 = vst.msk [vmem:[#allocation3] sm:$0xff] %vm102, %v108
      %111 = vst.msk [vmem:[#allocation3 + $0x8] sm:$0xff] %vm102, %v109
    $region17: #{v5tune_forward.21} parent=1 // pred_fallthru
      _
    // Predicated region
    $region18: #{v5tune_forward.21} parent=1 // pred_check
      _
    $region19: #{v5tune_forward.21} parent=1 // pred_check_branch
      %113 = sbr.rel (0) target = $region21
    $region20: #{v5tune_forward.21} parent=1 // pred_region
      %s115 = ssub.s32 256, 256
      %116 = vsyncadd [#allocation4], %s115
      %s117 = sshll.u32 [#allocation3], 4
      %s118 = int_to_ptr.vmem [resolvable:$true] %s117
      %123 = dma.vmem_to_hbm [thread:$0]  %s118, 256, %s2, [#allocation4], 128, 128, 8
    $region21: #{v5tune_forward.21} parent=1 // pred_fallthru
      _
    // Predicated region
    $region22: #{v5tune_forward.21} parent=1 // pred_check
      _
    $region23: #{v5tune_forward.21} parent=1 // pred_check_branch
      %125 = sbr.rel (0) target = $region25
    $region24: #{v5tune_forward.21} parent=1 // pred_region
      %126 = dma.done [#allocation4], 256
    $region25: #{v5tune_forward.21} parent=1 // pred_fallthru
      _
    %127 = vsyncpa [#allocation4], 1

</llo_original>
